<compile_context>
chip_gen: v5e
topology: v5e:2x2
jax: 0.10.0
libtpu: 0.0.40
codegen_flags: <defaults>
</compile_context>

<pallas_src>
import math
import jax
import jax.numpy as jnp
from jax.experimental import pallas as pl
from jax.experimental.pallas import tpu as pltpu

_EPS = 1e-5
_BLOCK_NAMES = ("enc0", "enc1", "bott", "dec0", "dec1")


# ---------------------------------------------------------------------------
# Small math helpers (usable both inside the kernel and in the JAX reference).
# ---------------------------------------------------------------------------
def _dot(a, w):
    return jnp.dot(a, w, preferred_element_type=jnp.float32)


def _bn_train(x, g, b):
    # nn.BatchNorm1d in default training mode: biased batch stats over axis 0.
    mean = jnp.mean(x, axis=0, keepdims=True)
    var = jnp.mean((x - mean) ** 2, axis=0, keepdims=True)
    return (x - mean) * jax.lax.rsqrt(var + _EPS) * g + b


def _ln(x, g, b):
    mean = jnp.mean(x, axis=-1, keepdims=True)
    var = jnp.mean((x - mean) ** 2, axis=-1, keepdims=True)
    return (x - mean) * jax.lax.rsqrt(var + _EPS) * g + b


def _concat_cols(a, b):
    """Exact concat along the feature axis via 0/1 selection matmuls.

    Guaranteed-to-lower alternative to minor-dim concatenate for tiny,
    non-128-aligned widths; exact because every output element is x*1 + 0.
    """
    da, db = a.shape[-1], b.shape[-1]
    d = da + db
    ra = jax.lax.broadcasted_iota(jnp.int32, (da, d), 0)
    ca = jax.lax.broadcasted_iota(jnp.int32, (da, d), 1)
    rb = jax.lax.broadcasted_iota(jnp.int32, (db, d), 0)
    cb = jax.lax.broadcasted_iota(jnp.int32, (db, d), 1)
    ea = (ca == ra).astype(jnp.float32)
    eb = (cb == rb + da).astype(jnp.float32)
    return _dot(a, ea) + _dot(b, eb)


# ---------------------------------------------------------------------------
# Parameter init (PyTorch-default Linear/Norm init; math convention y = x@W+b).
# q/k projections of nn.MultiheadAttention are mathematically dead here
# (softmax over a single key position == 1) and are not materialized.
# ---------------------------------------------------------------------------
def _lin_init(key, fan_in, fan_out):
    k1, k2 = jax.random.split(key)
    bound = 1.0 / math.sqrt(fan_in)
    w = jax.random.uniform(k1, (fan_in, fan_out), jnp.float32, -bound, bound)
    b = jax.random.uniform(k2, (1, fan_out), jnp.float32, -bound, bound)
    return w, b


def _norm_init(dim):
    return jnp.ones((1, dim), jnp.float32), jnp.zeros((1, dim), jnp.float32)


def _block_init(key, in_dim, out_dim, time_emb):
    d = out_dim
    keys = iter(jax.random.split(key, 16))
    p = {}
    p["time_w"], p["time_b"] = _lin_init(next(keys), time_emb, in_dim)
    # ResidualBlock(in_dim, out_dim)
    p["rb1_l1_w"], p["rb1_l1_b"] = _lin_init(next(keys), in_dim, 2 * in_dim)
    p["rb1_bn1_g"], p["rb1_bn1_b"] = _norm_init(2 * in_dim)
    p["rb1_l2_w"], p["rb1_l2_b"] = _lin_init(next(keys), 2 * in_dim, out_dim)
    p["rb1_bno_g"], p["rb1_bno_b"] = _norm_init(out_dim)
    if in_dim != out_dim:
        p["rb1_btl_w"], p["rb1_btl_b"] = _lin_init(next(keys), in_dim, out_dim)
    # CrossAttention1D(out_dim): only v_proj/out_proj affect the forward value.
    p["ca_v_w"], p["ca_v_b"] = _lin_init(next(keys), d, d)
    p["ca_o_w"], p["ca_o_b"] = _lin_init(next(keys), d, d)
    p["ca_n1_g"], p["ca_n1_b"] = _norm_init(d)
    p["ca_m1_w"], p["ca_m1_b"] = _lin_init(next(keys), d, 4 * d)
    p["ca_m2_w"], p["ca_m2_b"] = _lin_init(next(keys), 4 * d, d)
    p["ca_n2_g"], p["ca_n2_b"] = _norm_init(d)
    # ResidualBlock(out_dim, out_dim) — never has a bottleneck.
    p["rb2_l1_w"], p["rb2_l1_b"] = _lin_init(next(keys), d, 2 * d)
    p["rb2_bn1_g"], p["rb2_bn1_b"] = _norm_init(2 * d)
    p["rb2_l2_w"], p["rb2_l2_b"] = _lin_init(next(keys), 2 * d, d)
    p["rb2_bno_g"], p["rb2_bno_b"] = _norm_init(d)
    return p


def init_latent_network_params(key, latent_dim, time_emb_dim, emb_dim):
    L, T, E = latent_dim, time_emb_dim, emb_dim
    keys = iter(jax.random.split(key, 32))
    p = {}
    freqs = jnp.exp(jnp.linspace(0.0, math.log(1000.0), T // 2))
    p["ang_speeds"] = (2.0 * math.pi * freqs).reshape(1, T // 2).astype(jnp.float32)
    p["tm_w"], p["tm_b"] = _lin_init(next(keys), T, T)
    p["ce0_w"], p["ce0_b"] = _lin_init(next(keys), L, E // 2)
    p["ce1_w"], p["ce1_b"] = _lin_init(next(keys), L, E // 4)
    p["ce2_w"], p["ce2_b"] = _lin_init(next(keys), L, E // 4)
    p["cd0_w"], p["cd0_b"] = _lin_init(next(keys), L, E // 2)
    p["cd1_w"], p["cd1_b"] = _lin_init(next(keys), L, E)
    p["init_w"], p["init_b"] = _lin_init(next(keys), L, E)
    p["init_bn_g"], p["init_bn_b"] = _norm_init(E)
    p["init_time_w"], p["init_time_b"] = _lin_init(next(keys), T, L)
    p["enc0"] = _block_init(next(keys), E, E // 2, T)
    p["enc1"] = _block_init(next(keys), E // 2, E // 4, T)
    p["bott"] = _block_init(next(keys), E // 4, E // 4, T)
    p["dec0"] = _block_init(next(keys), E // 2, E // 2, T)
    p["dec1"] = _block_init(next(keys), E, E, T)
    p["out_time_w"], p["out_time_b"] = _lin_init(next(keys), T, 2 * E)
    p["out_w"], p["out_b"] = _lin_init(next(keys), 2 * E, L)
    return p


# ---------------------------------------------------------------------------
# Packing: fold dead/chained projections and build ONE parameter slab.
# ---------------------------------------------------------------------------
def _round_up(x, m):
    return (x + m - 1) // m * m


class _SlabPacker:
    """Packs many small parameter arrays into one 2-D f32 VMEM slab so the
    kernel needs a single parameter DMA instead of ~150 tiny ones."""

    def __init__(self):
        self._entries = []

    def add(self, name, arr):
        a = jnp.asarray(arr, jnp.float32)
        if a.ndim == 1:
            a = a.reshape(1, -1)
        assert a.ndim == 2, name
        self._entries.append((name, a))

    def finalize(self):
        ncols = _round_up(max(a.shape[1] for _, a in self._entries), 128)
        index, rows, cur = {}, [], 0
        for name, a in self._entries:
            r, c = a.shape
            rp = _round_up(r, 8)                       # keep 8-sublane alignment
            buf = jnp.zeros((rp, ncols), jnp.float32).at[:r, :c].set(a)
            rows.append(buf)
            index[name] = (cur, r, c)                  # static Python ints
            cur += rp
        return jnp.concatenate(rows, axis=0), index


def pack_latent_network(params, latent_dim, time_emb_dim, emb_dim):
    L, T, E = latent_dim, time_emb_dim, emb_dim
    dims = dict(
        L=L, T=T, E=E,
        block_in=dict(enc0=E, enc1=E // 2, bott=E // 4, dec0=E // 2, dec1=E),
        block_out=dict(enc0=E // 2, enc1=E // 4, bott=E // 4, dec0=E // 2, dec1=E),
    )
    pk = _SlabPacker()
    pk.add("tm_w", params["tm_w"]); pk.add("tm_b", params["tm_b"])
    pk.add("init_time_w", params["init_time_w"]); pk.add("init_time_b", params["init_time_b"])
    pk.add("init_w", params["init_w"]); pk.add("init_b", params["init_b"])
    pk.add("init_bn_g", params["init_bn_g"]); pk.add("init_bn_b", params["init_bn_b"])

    # Fold the entire conditioning path of every Block into one fused matmul:
    #   attn = out_proj(v_proj(cond_proj(condition)))
    #        = condition @ (Wp@Wv@Wo) + (bp@Wv@Wo + bv@Wo + bo)
    cond_proj = dict(enc0=("ce0_w", "ce0_b"), enc1=("ce1_w", "ce1_b"),
                     bott=("ce2_w", "ce2_b"), dec0=("cd0_w", "cd0_b"),
                     dec1=("cd1_w", "cd1_b"))
    ws, bs, attn_slices, off = [], [], {}, 0
    for name in _BLOCK_NAMES:
        bp = params[name]
        wpn, bpn = cond_proj[name]
        wvo = bp["ca_v_w"] @ bp["ca_o_w"]
        bvo = bp["ca_v_b"] @ bp["ca_o_w"] + bp["ca_o_b"]
        ws.append(params[wpn] @ wvo)
        bs.append(params[bpn] @ wvo + bvo)
        d = dims["block_out"][name]
        attn_slices[name] = (off, d)
        off += d
    pk.add("attn_w", jnp.concatenate(ws, axis=1))
    pk.add("attn_b", jnp.concatenate(bs, axis=1))

    # Per-block params (bottleneck | first-linear fused when bottleneck exists).
    per_block_keys = ("rb1_bn1_g", "rb1_bn1_b", "rb1_l2_w", "rb1_l2_b",
                      "rb1_bno_g", "rb1_bno_b",
                      "ca_n1_g", "ca_n1_b", "ca_m1_w", "ca_m1_b",
                      "ca_m2_w", "ca_m2_b", "ca_n2_g", "ca_n2_b",
                      "rb2_l1_w", "rb2_l1_b", "rb2_bn1_g", "rb2_bn1_b",
                      "rb2_l2_w", "rb2_l2_b", "rb2_bno_g", "rb2_bno_b")
    for name in _BLOCK_NAMES:
        bp = params[name]
        in_dim, out_dim = dims["block_in"][name], dims["block_out"][name]
        pfx = name + "/"
        pk.add(pfx + "time_w", bp["time_w"]); pk.add(pfx + "time_b", bp["time_b"])
        if in_dim != out_dim:
            pk.add(pfx + "rb1_fused_w",
                   jnp.concatenate([bp["rb1_btl_w"], bp["rb1_l1_w"]], axis=1))
            pk.add(pfx + "rb1_fused_b",
                   jnp.concatenate([bp["rb1_btl_b"], bp["rb1_l1_b"]], axis=1))
        else:
            pk.add(pfx + "rb1_l1_w", bp["rb1_l1_w"])
            pk.add(pfx + "rb1_l1_b", bp["rb1_l1_b"])
        for k in per_block_keys:
            pk.add(pfx + k, bp[k])

    pk.add("out_time_w", params["out_time_w"]); pk.add("out_time_b", params["out_time_b"])
    pk.add("out_w", params["out_w"]); pk.add("out_b", params["out_b"])

    slab, index = pk.finalize()
    return slab, index, attn_slices, dims


# ---------------------------------------------------------------------------
# The fused Pallas kernel (whole LatentNetwork forward, one invocation).
# ---------------------------------------------------------------------------
def make_latent_network_forward(index, attn_slices, dims, ang_speeds):
    L, T, E = dims["L"], dims["T"], dims["E"]
    block_in, block_out = dims["block_in"], dims["block_out"]

    def kernel(x_ref, sc_ref, cond_ref, slab_ref, out_ref):
        def P(name):
            r, n, c = index[name]                 # static slice -> single load
            return slab_ref[r:r + n, :c]

        x = x_ref[...]                            # (B, L)
        sincos = sc_ref[...]                      # (B, T) = [sin | cos]
        cond = cond_ref[...]                      # (B, L)

        # time_model: Linear + ReLU on the sinusoidal features
        te = jnp.maximum(_dot(sincos, P("tm_w")) + P("tm_b"), 0.0)       # (B, T)

        # All five Blocks' attention inputs in one matmul on `condition`.
        attn_all = _dot(cond, P("attn_w")) + P("attn_b")                 # (B, 2.5E)

        # initial time add + initial layer
        h = x + _dot(te, P("init_time_w")) + P("init_time_b")
        h = _dot(h, P("init_w")) + P("init_b")
        h = jnp.maximum(_bn_train(h, P("init_bn_g"), P("init_bn_b")), 0.0)  # (B, E)

        def block(name, h_in):
            pfx = name + "/"
            in_dim, out_dim = block_in[name], block_out[name]
            off, d = attn_slices[name]
            attn = attn_all[:, off:off + d]

            hh = h_in + _dot(te, P(pfx + "time_w")) + P(pfx + "time_b")
            # ResidualBlock(in_dim, out_dim)
            if in_dim != out_dim:
                # bottleneck + first Linear fused into one matmul (shared input)
                y = _dot(hh, P(pfx + "rb1_fused_w")) + P(pfx + "rb1_fused_b")
                x_add, u = y[:, :out_dim], y[:, out_dim:]
            else:
                x_add = hh
                u = _dot(hh, P(pfx + "rb1_l1_w")) + P(pfx + "rb1_l1_b")
            u = jnp.maximum(_bn_train(u, P(pfx + "rb1_bn1_g"), P(pfx + "rb1_bn1_b")), 0.0)
            v = _dot(u, P(pfx + "rb1_l2_w")) + P(pfx + "rb1_l2_b")
            hh = jnp.maximum(_bn_train(x_add + v, P(pfx + "rb1_bno_g"),
                                       P(pfx + "rb1_bno_b")), 0.0)
            # CrossAttention1D (attention collapsed into attn_all above)
            h1 = _ln(hh + attn, P(pfx + "ca_n1_g"), P(pfx + "ca_n1_b"))
            m = jnp.maximum(_dot(h1, P(pfx + "ca_m1_w")) + P(pfx + "ca_m1_b"), 0.0)
            m = _dot(m, P(pfx + "ca_m2_w")) + P(pfx + "ca_m2_b")
            h2 = _ln(h1 + m, P(pfx + "ca_n2_g"), P(pfx + "ca_n2_b"))
            # ResidualBlock(out_dim, out_dim)
            u2 = _dot(h2, P(pfx + "rb2_l1_w")) + P(pfx + "rb2_l1_b")
            u2 = jnp.maximum(_bn_train(u2, P(pfx + "rb2_bn1_g"), P(pfx + "rb2_bn1_b")), 0.0)
            v2 = _dot(u2, P(pfx + "rb2_l2_w")) + P(pfx + "rb2_l2_b")
            return jnp.maximum(_bn_train(h2 + v2, P(pfx + "rb2_bno_g"),
                                         P(pfx + "rb2_bno_b")), 0.0)

        skip0 = h
        h1_ = block("enc0", h)                               # (B, E/2)
        skip1 = h1_
        h2_ = block("enc1", h1_)                             # (B, E/4)
        skip2 = h2_
        h3_ = block("bott", h2_)                             # (B, E/4)
        h4_ = block("dec0", _concat_cols(h3_, skip2))        # (B, E/2)
        h5_ = block("dec1", _concat_cols(h4_, skip1))        # (B, E)

        xf = _concat_cols(h5_, skip0)                        # (B, 2E)
        xf = xf + _dot(te, P("out_time_w")) + P("out_time_b")
        out_ref[...] = _dot(xf, P("out_w")) + P("out_b")     # (B, L)

    vmem = pl.BlockSpec(memory_space=pltpu.MemorySpace.VMEM)

    def forward(x, time, condition, slab):
        t = jnp.asarray(time, jnp.float32).reshape(-1, 1)
        arg = t * ang_speeds
        sincos = jnp.concatenate([jnp.sin(arg), jnp.cos(arg)], axis=-1)  # (B, T)
        return pl.pallas_call(
            kernel,
            out_shape=jax.ShapeDtypeStruct((x.shape[0], L), jnp.float32),
            in_specs=[vmem, vmem, vmem, vmem],
            out_specs=vmem,
            compiler_params=pltpu.CompilerParams(
                vmem_limit_bytes=32 * 1024 * 1024),
        )(x, sincos, condition, slab)

    return jax.jit(forward)


# ---------------------------------------------------------------------------
# Faithful pure-JAX reference (unfused, follows the PyTorch graph) for checking.
# ---------------------------------------------------------------------------
def _block_ref(bp, x, cond_tokens, te, in_dim, out_dim):
    x = x + te @ bp["time_w"] + bp["time_b"]
    x_add = x if in_dim == out_dim else x @ bp["rb1_btl_w"] + bp["rb1_btl_b"]
    u = jnp.maximum(_bn_train(x @ bp["rb1_l1_w"] + bp["rb1_l1_b"],
                              bp["rb1_bn1_g"], bp["rb1_bn1_b"]), 0.0)
    x = jnp.maximum(_bn_train(x_add + u @ bp["rb1_l2_w"] + bp["rb1_l2_b"],
                              bp["rb1_bno_g"], bp["rb1_bno_b"]), 0.0)
    # softmax over a single key == 1 -> attention output is out_proj(v_proj(cond))
    attn = (cond_tokens @ bp["ca_v_w"] + bp["ca_v_b"]) @ bp["ca_o_w"] + bp["ca_o_b"]
    h1 = _ln(x + attn, bp["ca_n1_g"], bp["ca_n1_b"])
    m = jnp.maximum(h1 @ bp["ca_m1_w"] + bp["ca_m1_b"], 0.0) @ bp["ca_m2_w"] + bp["ca_m2_b"]
    h2 = _ln(h1 + m, bp["ca_n2_g"], bp["ca_n2_b"])
    u = jnp.maximum(_bn_train(h2 @ bp["rb2_l1_w"] + bp["rb2_l1_b"],
                              bp["rb2_bn1_g"], bp["rb2_bn1_b"]), 0.0)
    return jnp.maximum(_bn_train(h2 + u @ bp["rb2_l2_w"] + bp["rb2_l2_b"],
                                 bp["rb2_bno_g"], bp["rb2_bno_b"]), 0.0)


def reference_forward(p, x, time, condition, latent_dim, time_emb_dim, emb_dim):
    E = emb_dim
    t = jnp.asarray(time, jnp.float32).reshape(-1, 1)
    emb = jnp.concatenate([jnp.sin(t * p["ang_speeds"]),
                           jnp.cos(t * p["ang_speeds"])], axis=-1)
    te = jnp.maximum(emb @ p["tm_w"] + p["tm_b"], 0.0)
    x = x + te @ p["init_time_w"] + p["init_time_b"]
    cond_enc = [condition @ p["ce0_w"] + p["ce0_b"],
                condition @ p["ce1_w"] + p["ce1_b"],
                condition @ p["ce2_w"] + p["ce2_b"]]
    cond_dec = [condition @ p["cd0_w"] + p["cd0_b"],
                condition @ p["cd1_w"] + p["cd1_b"]]
    x = jnp.maximum(_bn_train(x @ p["init_w"] + p["init_b"],
                              p["init_bn_g"], p["init_bn_b"]), 0.0)
    skips = [x]
    x = _block_ref(p["enc0"], x, cond_enc[0], te, E, E // 2); skips.append(x)
    x = _block_ref(p["enc1"], x, cond_enc[1], te, E // 2, E // 4); skips.append(x)
    x = _block_ref(p["bott"], x, cond_enc[2], te, E // 4, E // 4)
    x = _block_ref(p["dec0"], jnp.concatenate([x, skips.pop()], axis=1),
                   cond_dec[0], te, E // 2, E // 2)
    x = _block_ref(p["dec1"], jnp.concatenate([x, skips.pop()], axis=1),
                   cond_dec[1], te, E, E)
    x = jnp.concatenate([x, skips.pop()], axis=1)
    x = x + te @ p["out_time_w"] + p["out_time_b"]
    return x @ p["out_w"] + p["out_b"]


if __name__ == "__main__":
    B, latent_dim, time_emb_dim, emb_dim = 8, 16, 8, 32
    key = jax.random.PRNGKey(0)
    kp, kx, kt, kc = jax.random.split(key, 4)
    params = init_latent_network_params(kp, latent_dim, time_emb_dim, emb_dim)

    x = jax.random.normal(kx, (B, latent_dim), jnp.float32)
    time = jax.random.uniform(kt, (B,), jnp.float32, 0.0, 1.0)
    condition = jax.random.normal(kc, (B, latent_dim), jnp.float32)

    slab, index, attn_slices, dims = pack_latent_network(
        params, latent_dim, time_emb_dim, emb_dim)
    forward = make_latent_network_forward(index, attn_slices, dims,
                                          params["ang_speeds"])

    out = jax.block_until_ready(forward(x, time, condition, slab))
    ref = reference_forward(params, x, time, condition,
                            latent_dim, time_emb_dim, emb_dim)

    assert out.shape == (B, latent_dim), out.shape
    err = float(jnp.max(jnp.abs(out - ref)))
    # Tolerance allows for the (mathematically exact) algebraic foldings, which
    # reassociate f32 summation order relative to the unfused reference.
    assert jnp.allclose(out, ref, atol=1e-3, rtol=1e-3), f"max abs err {err}"
    print("KERNEL_OK")
</pallas_src>

<mosaic_0001>
module attributes {stable_mosaic.version = 11 : i64} {
  func.func @kernel(%arg0: memref<8x16xf32, #tpu.memory_space<vmem>>, %arg1: memref<8x8xf32, #tpu.memory_space<vmem>>, %arg2: memref<8x16xf32, #tpu.memory_space<vmem>>, %arg3: memref<1936x128xf32, #tpu.memory_space<vmem>>, %arg4: memref<8x16xf32, #tpu.memory_space<vmem>>) attributes {dimension_semantics = [], scalar_prefetch = 0 : i64, scratch_operands = 0 : i64, tpu.core_type = #tpu.core_type<tc>} {
    %c0 = arith.constant 0 : index
    %c0_0 = arith.constant 0 : index
    %0 = vector.load %arg0[%c0, %c0_0] : memref<8x16xf32, #tpu.memory_space<vmem>>, vector<8x16xf32>
    %c0_1 = arith.constant 0 : index
    %c0_2 = arith.constant 0 : index
    %1 = vector.load %arg1[%c0_1, %c0_2] : memref<8x8xf32, #tpu.memory_space<vmem>>, vector<8x8xf32>
    %c0_3 = arith.constant 0 : index
    %c0_4 = arith.constant 0 : index
    %2 = vector.load %arg2[%c0_3, %c0_4] : memref<8x16xf32, #tpu.memory_space<vmem>>, vector<8x16xf32>
    %c0_5 = arith.constant 0 : index
    %c0_6 = arith.constant 0 : index
    %3 = vector.load %arg3[%c0_5, %c0_6] : memref<1936x128xf32, #tpu.memory_space<vmem>>, vector<8x8xf32>
    %cst = arith.constant dense<0.000000e+00> : vector<8x8xf32>
    %4 = tpu.matmul %1, %3, %cst {dimension_numbers = #tpu.dot_dimension_numbers<[1], [0], [0], [1], [0, 0, 1, 1], [], []>} : vector<8x8xf32>, vector<8x8xf32>, vector<8x8xf32> -> vector<8x8xf32>
    %c8 = arith.constant 8 : index
    %c0_7 = arith.constant 0 : index
    %5 = vector.load %arg3[%c8, %c0_7] : memref<1936x128xf32, #tpu.memory_space<vmem>>, vector<1x8xf32>
    %6 = vector.broadcast %5 : vector<1x8xf32> to vector<8x8xf32>
    %7 = arith.addf %4, %6 : vector<8x8xf32>
    %cst_8 = arith.constant 0.000000e+00 : f32
    %8 = vector.broadcast %cst_8 : f32 to vector<8x8xf32>
    %9 = arith.maximumf %7, %8 : vector<8x8xf32>
    %c72 = arith.constant 72 : index
    %c0_9 = arith.constant 0 : index
    %10 = vector.load %arg3[%c72, %c0_9] : memref<1936x128xf32, #tpu.memory_space<vmem>>, vector<16x80xf32>
    %cst_10 = arith.constant dense<0.000000e+00> : vector<8x80xf32>
    %11 = tpu.matmul %2, %10, %cst_10 {dimension_numbers = #tpu.dot_dimension_numbers<[1], [0], [0], [1], [0, 0, 1, 1], [], []>} : vector<8x16xf32>, vector<16x80xf32>, vector<8x80xf32> -> vector<8x80xf32>
    %c88 = arith.constant 88 : index
    %c0_11 = arith.constant 0 : index
    %12 = vector.load %arg3[%c88, %c0_11] : memref<1936x128xf32, #tpu.memory_space<vmem>>, vector<1x80xf32>
    %13 = vector.broadcast %12 : vector<1x80xf32> to vector<8x80xf32>
    %14 = arith.addf %11, %13 : vector<8x80xf32>
    %c16 = arith.constant 16 : index
    %c0_12 = arith.constant 0 : index
    %15 = vector.load %arg3[%c16, %c0_12] : memref<1936x128xf32, #tpu.memory_space<vmem>>, vector<8x16xf32>
    %cst_13 = arith.constant dense<0.000000e+00> : vector<8x16xf32>
    %16 = tpu.matmul %9, %15, %cst_13 {dimension_numbers = #tpu.dot_dimension_numbers<[1], [0], [0], [1], [0, 0, 1, 1], [], []>} : vector<8x8xf32>, vector<8x16xf32>, vector<8x16xf32> -> vector<8x16xf32>
    %17 = arith.addf %0, %16 : vector<8x16xf32>
    %c24 = arith.constant 24 : index
    %c0_14 = arith.constant 0 : index
    %18 = vector.load %arg3[%c24, %c0_14] : memref<1936x128xf32, #tpu.memory_space<vmem>>, vector<1x16xf32>
    %19 = vector.broadcast %18 : vector<1x16xf32> to vector<8x16xf32>
    %20 = arith.addf %17, %19 : vector<8x16xf32>
    %c32 = arith.constant 32 : index
    %c0_15 = arith.constant 0 : index
    %21 = vector.load %arg3[%c32, %c0_15] : memref<1936x128xf32, #tpu.memory_space<vmem>>, vector<16x32xf32>
    %cst_16 = arith.constant dense<0.000000e+00> : vector<8x32xf32>
    %22 = tpu.matmul %20, %21, %cst_16 {dimension_numbers = #tpu.dot_dimension_numbers<[1], [0], [0], [1], [0, 0, 1, 1], [], []>} : vector<8x16xf32>, vector<16x32xf32>, vector<8x32xf32> -> vector<8x32xf32>
    %c48 = arith.constant 48 : index
    %c0_17 = arith.constant 0 : index
    %23 = vector.load %arg3[%c48, %c0_17] : memref<1936x128xf32, #tpu.memory_space<vmem>>, vector<1x32xf32>
    %24 = vector.broadcast %23 : vector<1x32xf32> to vector<8x32xf32>
    %25 = arith.addf %22, %24 : vector<8x32xf32>
    %c56 = arith.constant 56 : index
    %c0_18 = arith.constant 0 : index
    %26 = vector.load %arg3[%c56, %c0_18] : memref<1936x128xf32, #tpu.memory_space<vmem>>, vector<1x32xf32>
    %c64 = arith.constant 64 : index
    %c0_19 = arith.constant 0 : index
    %27 = vector.load %arg3[%c64, %c0_19] : memref<1936x128xf32, #tpu.memory_space<vmem>>, vector<1x32xf32>
    %cst_20 = arith.constant dense<0.000000e+00> : vector<32xf32>
    %28 = vector.multi_reduction <add>, %25, %cst_20 [0] : vector<8x32xf32> to vector<32xf32>
    %29 = vector.shape_cast %28 : vector<32xf32> to vector<1x32xf32>
    %cst_21 = arith.constant 8.000000e+00 : f32
    %30 = vector.broadcast %cst_21 : f32 to vector<1x32xf32>
    %31 = arith.divf %29, %30 : vector<1x32xf32>
    %32 = vector.broadcast %31 : vector<1x32xf32> to vector<8x32xf32>
    %33 = arith.subf %25, %32 : vector<8x32xf32>
    %34 = arith.mulf %33, %33 : vector<8x32xf32>
    %cst_22 = arith.constant dense<0.000000e+00> : vector<32xf32>
    %35 = vector.multi_reduction <add>, %34, %cst_22 [0] : vector<8x32xf32> to vector<32xf32>
    %36 = vector.shape_cast %35 : vector<32xf32> to vector<1x32xf32>
    %cst_23 = arith.constant 8.000000e+00 : f32
    %37 = vector.broadcast %cst_23 : f32 to vector<1x32xf32>
    %38 = arith.divf %36, %37 : vector<1x32xf32>
    %39 = vector.broadcast %31 : vector<1x32xf32> to vector<8x32xf32>
    %40 = arith.subf %25, %39 : vector<8x32xf32>
    %cst_24 = arith.constant 9.99999974E-6 : f32
    %41 = vector.broadcast %cst_24 : f32 to vector<1x32xf32>
    %42 = arith.addf %38, %41 : vector<1x32xf32>
    %43 = math.rsqrt %42 : vector<1x32xf32>
    %44 = vector.broadcast %43 : vector<1x32xf32> to vector<8x32xf32>
    %45 = arith.mulf %40, %44 : vector<8x32xf32>
    %46 = vector.broadcast %26 : vector<1x32xf32> to vector<8x32xf32>
    %47 = arith.mulf %45, %46 : vector<8x32xf32>
    %48 = vector.broadcast %27 : vector<1x32xf32> to vector<8x32xf32>
    %49 = arith.addf %47, %48 : vector<8x32xf32>
    %cst_25 = arith.constant 0.000000e+00 : f32
    %50 = vector.broadcast %cst_25 : f32 to vector<8x32xf32>
    %51 = arith.maximumf %49, %50 : vector<8x32xf32>
    %52 = vector.extract_strided_slice %14 {offsets = [0, 0], sizes = [8, 16], strides = [1, 1]} : vector<8x80xf32> to vector<8x16xf32>
    %c96 = arith.constant 96 : index
    %c0_26 = arith.constant 0 : index
    %53 = vector.load %arg3[%c96, %c0_26] : memref<1936x128xf32, #tpu.memory_space<vmem>>, vector<8x32xf32>
    %cst_27 = arith.constant dense<0.000000e+00> : vector<8x32xf32>
    %54 = tpu.matmul %9, %53, %cst_27 {dimension_numbers = #tpu.dot_dimension_numbers<[1], [0], [0], [1], [0, 0, 1, 1], [], []>} : vector<8x8xf32>, vector<8x32xf32>, vector<8x32xf32> -> vector<8x32xf32>
    %55 = arith.addf %51, %54 : vector<8x32xf32>
    %c104 = arith.constant 104 : index
    %c0_28 = arith.constant 0 : index
    %56 = vector.load %arg3[%c104, %c0_28] : memref<1936x128xf32, #tpu.memory_space<vmem>>, vector<1x32xf32>
    %57 = vector.broadcast %56 : vector<1x32xf32> to vector<8x32xf32>
    %58 = arith.addf %55, %57 : vector<8x32xf32>
    %c112 = arith.constant 112 : index
    %c0_29 = arith.constant 0 : index
    %59 = vector.load %arg3[%c112, %c0_29] : memref<1936x128xf32, #tpu.memory_space<vmem>>, vector<32x80xf32>
    %cst_30 = arith.constant dense<0.000000e+00> : vector<8x80xf32>
    %60 = tpu.matmul %58, %59, %cst_30 {dimension_numbers = #tpu.dot_dimension_numbers<[1], [0], [0], [1], [0, 0, 1, 1], [], []>} : vector<8x32xf32>, vector<32x80xf32>, vector<8x80xf32> -> vector<8x80xf32>
    %c144 = arith.constant 144 : index
    %c0_31 = arith.constant 0 : index
    %61 = vector.load %arg3[%c144, %c0_31] : memref<1936x128xf32, #tpu.memory_space<vmem>>, vector<1x80xf32>
    %62 = vector.broadcast %61 : vector<1x80xf32> to vector<8x80xf32>
    %63 = arith.addf %60, %62 : vector<8x80xf32>
    %64 = vector.extract_strided_slice %63 {offsets = [0, 0], sizes = [8, 16], strides = [1, 1]} : vector<8x80xf32> to vector<8x16xf32>
    %65 = vector.extract_strided_slice %63 {offsets = [0, 16], sizes = [8, 64], strides = [1, 1]} : vector<8x80xf32> to vector<8x64xf32>
    %c152 = arith.constant 152 : index
    %c0_32 = arith.constant 0 : index
    %66 = vector.load %arg3[%c152, %c0_32] : memref<1936x128xf32, #tpu.memory_space<vmem>>, vector<1x64xf32>
    %c160 = arith.constant 160 : index
    %c0_33 = arith.constant 0 : index
    %67 = vector.load %arg3[%c160, %c0_33] : memref<1936x128xf32, #tpu.memory_space<vmem>>, vector<1x64xf32>
    %cst_34 = arith.constant dense<0.000000e+00> : vector<64xf32>
    %68 = vector.multi_reduction <add>, %65, %cst_34 [0] : vector<8x64xf32> to vector<64xf32>
    %69 = vector.shape_cast %68 : vector<64xf32> to vector<1x64xf32>
    %cst_35 = arith.constant 8.000000e+00 : f32
    %70 = vector.broadcast %cst_35 : f32 to vector<1x64xf32>
    %71 = arith.divf %69, %70 : vector<1x64xf32>
    %72 = vector.broadcast %71 : vector<1x64xf32> to vector<8x64xf32>
    %73 = arith.subf %65, %72 : vector<8x64xf32>
    %74 = arith.mulf %73, %73 : vector<8x64xf32>
    %cst_36 = arith.constant dense<0.000000e+00> : vector<64xf32>
    %75 = vector.multi_reduction <add>, %74, %cst_36 [0] : vector<8x64xf32> to vector<64xf32>
    %76 = vector.shape_cast %75 : vector<64xf32> to vector<1x64xf32>
    %cst_37 = arith.constant 8.000000e+00 : f32
    %77 = vector.broadcast %cst_37 : f32 to vector<1x64xf32>
    %78 = arith.divf %76, %77 : vector<1x64xf32>
    %79 = vector.broadcast %71 : vector<1x64xf32> to vector<8x64xf32>
    %80 = arith.subf %65, %79 : vector<8x64xf32>
    %cst_38 = arith.constant 9.99999974E-6 : f32
    %81 = vector.broadcast %cst_38 : f32 to vector<1x64xf32>
    %82 = arith.addf %78, %81 : vector<1x64xf32>
    %83 = math.rsqrt %82 : vector<1x64xf32>
    %84 = vector.broadcast %83 : vector<1x64xf32> to vector<8x64xf32>
    %85 = arith.mulf %80, %84 : vector<8x64xf32>
    %86 = vector.broadcast %66 : vector<1x64xf32> to vector<8x64xf32>
    %87 = arith.mulf %85, %86 : vector<8x64xf32>
    %88 = vector.broadcast %67 : vector<1x64xf32> to vector<8x64xf32>
    %89 = arith.addf %87, %88 : vector<8x64xf32>
    %cst_39 = arith.constant 0.000000e+00 : f32
    %90 = vector.broadcast %cst_39 : f32 to vector<8x64xf32>
    %91 = arith.maximumf %89, %90 : vector<8x64xf32>
    %c168 = arith.constant 168 : index
    %c0_40 = arith.constant 0 : index
    %92 = vector.load %arg3[%c168, %c0_40] : memref<1936x128xf32, #tpu.memory_space<vmem>>, vector<64x16xf32>
    %cst_41 = arith.constant dense<0.000000e+00> : vector<8x16xf32>
    %93 = tpu.matmul %91, %92, %cst_41 {dimension_numbers = #tpu.dot_dimension_numbers<[1], [0], [0], [1], [0, 0, 1, 1], [], []>} : vector<8x64xf32>, vector<64x16xf32>, vector<8x16xf32> -> vector<8x16xf32>
    %c232 = arith.constant 232 : index
    %c0_42 = arith.constant 0 : index
    %94 = vector.load %arg3[%c232, %c0_42] : memref<1936x128xf32, #tpu.memory_space<vmem>>, vector<1x16xf32>
    %95 = vector.broadcast %94 : vector<1x16xf32> to vector<8x16xf32>
    %96 = arith.addf %93, %95 : vector<8x16xf32>
    %97 = arith.addf %64, %96 : vector<8x16xf32>
    %c240 = arith.constant 240 : index
    %c0_43 = arith.constant 0 : index
    %98 = vector.load %arg3[%c240, %c0_43] : memref<1936x128xf32, #tpu.memory_space<vmem>>, vector<1x16xf32>
    %c248 = arith.constant 248 : index
    %c0_44 = arith.constant 0 : index
    %99 = vector.load %arg3[%c248, %c0_44] : memref<1936x128xf32, #tpu.memory_space<vmem>>, vector<1x16xf32>
    %cst_45 = arith.constant dense<0.000000e+00> : vector<16xf32>
    %100 = vector.multi_reduction <add>, %97, %cst_45 [0] : vector<8x16xf32> to vector<16xf32>
    %101 = vector.shape_cast %100 : vector<16xf32> to vector<1x16xf32>
    %cst_46 = arith.constant 8.000000e+00 : f32
    %102 = vector.broadcast %cst_46 : f32 to vector<1x16xf32>
    %103 = arith.divf %101, %102 : vector<1x16xf32>
    %104 = vector.broadcast %103 : vector<1x16xf32> to vector<8x16xf32>
    %105 = arith.subf %97, %104 : vector<8x16xf32>
    %106 = arith.mulf %105, %105 : vector<8x16xf32>
    %cst_47 = arith.constant dense<0.000000e+00> : vector<16xf32>
    %107 = vector.multi_reduction <add>, %106, %cst_47 [0] : vector<8x16xf32> to vector<16xf32>
    %108 = vector.shape_cast %107 : vector<16xf32> to vector<1x16xf32>
    %cst_48 = arith.constant 8.000000e+00 : f32
    %109 = vector.broadcast %cst_48 : f32 to vector<1x16xf32>
    %110 = arith.divf %108, %109 : vector<1x16xf32>
    %111 = vector.broadcast %103 : vector<1x16xf32> to vector<8x16xf32>
    %112 = arith.subf %97, %111 : vector<8x16xf32>
    %cst_49 = arith.constant 9.99999974E-6 : f32
    %113 = vector.broadcast %cst_49 : f32 to vector<1x16xf32>
    %114 = arith.addf %110, %113 : vector<1x16xf32>
    %115 = math.rsqrt %114 : vector<1x16xf32>
    %116 = vector.broadcast %115 : vector<1x16xf32> to vector<8x16xf32>
    %117 = arith.mulf %112, %116 : vector<8x16xf32>
    %118 = vector.broadcast %98 : vector<1x16xf32> to vector<8x16xf32>
    %119 = arith.mulf %117, %118 : vector<8x16xf32>
    %120 = vector.broadcast %99 : vector<1x16xf32> to vector<8x16xf32>
    %121 = arith.addf %119, %120 : vector<8x16xf32>
    %cst_50 = arith.constant 0.000000e+00 : f32
    %122 = vector.broadcast %cst_50 : f32 to vector<8x16xf32>
    %123 = arith.maximumf %121, %122 : vector<8x16xf32>
    %124 = arith.addf %123, %52 : vector<8x16xf32>
    %c256 = arith.constant 256 : index
    %c0_51 = arith.constant 0 : index
    %125 = vector.load %arg3[%c256, %c0_51] : memref<1936x128xf32, #tpu.memory_space<vmem>>, vector<1x16xf32>
    %c264 = arith.constant 264 : index
    %c0_52 = arith.constant 0 : index
    %126 = vector.load %arg3[%c264, %c0_52] : memref<1936x128xf32, #tpu.memory_space<vmem>>, vector<1x16xf32>
    %cst_53 = arith.constant dense<0.000000e+00> : vector<8xf32>
    %127 = vector.multi_reduction <add>, %124, %cst_53 [1] : vector<8x16xf32> to vector<8xf32>
    %128 = vector.shape_cast %127 : vector<8xf32> to vector<8x1xf32>
    %cst_54 = arith.constant 1.600000e+01 : f32
    %129 = vector.broadcast %cst_54 : f32 to vector<8x1xf32>
    %130 = arith.divf %128, %129 : vector<8x1xf32>
    %131 = vector.broadcast %130 : vector<8x1xf32> to vector<8x16xf32>
    %132 = arith.subf %124, %131 : vector<8x16xf32>
    %133 = arith.mulf %132, %132 : vector<8x16xf32>
    %cst_55 = arith.constant dense<0.000000e+00> : vector<8xf32>
    %134 = vector.multi_reduction <add>, %133, %cst_55 [1] : vector<8x16xf32> to vector<8xf32>
    %135 = vector.shape_cast %134 : vector<8xf32> to vector<8x1xf32>
    %cst_56 = arith.constant 1.600000e+01 : f32
    %136 = vector.broadcast %cst_56 : f32 to vector<8x1xf32>
    %137 = arith.divf %135, %136 : vector<8x1xf32>
    %138 = vector.broadcast %130 : vector<8x1xf32> to vector<8x16xf32>
    %139 = arith.subf %124, %138 : vector<8x16xf32>
    %cst_57 = arith.constant 9.99999974E-6 : f32
    %140 = vector.broadcast %cst_57 : f32 to vector<8x1xf32>
    %141 = arith.addf %137, %140 : vector<8x1xf32>
    %142 = math.rsqrt %141 : vector<8x1xf32>
    %143 = vector.broadcast %142 : vector<8x1xf32> to vector<8x16xf32>
    %144 = arith.mulf %139, %143 : vector<8x16xf32>
    %145 = vector.broadcast %125 : vector<1x16xf32> to vector<8x16xf32>
    %146 = arith.mulf %144, %145 : vector<8x16xf32>
    %147 = vector.broadcast %126 : vector<1x16xf32> to vector<8x16xf32>
    %148 = arith.addf %146, %147 : vector<8x16xf32>
    %c272 = arith.constant 272 : index
    %c0_58 = arith.constant 0 : index
    %149 = vector.load %arg3[%c272, %c0_58] : memref<1936x128xf32, #tpu.memory_space<vmem>>, vector<16x64xf32>
    %cst_59 = arith.constant dense<0.000000e+00> : vector<8x64xf32>
    %150 = tpu.matmul %148, %149, %cst_59 {dimension_numbers = #tpu.dot_dimension_numbers<[1], [0], [0], [1], [0, 0, 1, 1], [], []>} : vector<8x16xf32>, vector<16x64xf32>, vector<8x64xf32> -> vector<8x64xf32>
    %c288 = arith.constant 288 : index
    %c0_60 = arith.constant 0 : index
    %151 = vector.load %arg3[%c288, %c0_60] : memref<1936x128xf32, #tpu.memory_space<vmem>>, vector<1x64xf32>
    %152 = vector.broadcast %151 : vector<1x64xf32> to vector<8x64xf32>
    %153 = arith.addf %150, %152 : vector<8x64xf32>
    %cst_61 = arith.constant 0.000000e+00 : f32
    %154 = vector.broadcast %cst_61 : f32 to vector<8x64xf32>
    %155 = arith.maximumf %153, %154 : vector<8x64xf32>
    %c296 = arith.constant 296 : index
    %c0_62 = arith.constant 0 : index
    %156 = vector.load %arg3[%c296, %c0_62] : memref<1936x128xf32, #tpu.memory_space<vmem>>, vector<64x16xf32>
    %cst_63 = arith.constant dense<0.000000e+00> : vector<8x16xf32>
    %157 = tpu.matmul %155, %156, %cst_63 {dimension_numbers = #tpu.dot_dimension_numbers<[1], [0], [0], [1], [0, 0, 1, 1], [], []>} : vector<8x64xf32>, vector<64x16xf32>, vector<8x16xf32> -> vector<8x16xf32>
    %c360 = arith.constant 360 : index
    %c0_64 = arith.constant 0 : index
    %158 = vector.load %arg3[%c360, %c0_64] : memref<1936x128xf32, #tpu.memory_space<vmem>>, vector<1x16xf32>
    %159 = vector.broadcast %158 : vector<1x16xf32> to vector<8x16xf32>
    %160 = arith.addf %157, %159 : vector<8x16xf32>
    %161 = arith.addf %148, %160 : vector<8x16xf32>
    %c368 = arith.constant 368 : index
    %c0_65 = arith.constant 0 : index
    %162 = vector.load %arg3[%c368, %c0_65] : memref<1936x128xf32, #tpu.memory_space<vmem>>, vector<1x16xf32>
    %c376 = arith.constant 376 : index
    %c0_66 = arith.constant 0 : index
    %163 = vector.load %arg3[%c376, %c0_66] : memref<1936x128xf32, #tpu.memory_space<vmem>>, vector<1x16xf32>
    %cst_67 = arith.constant dense<0.000000e+00> : vector<8xf32>
    %164 = vector.multi_reduction <add>, %161, %cst_67 [1] : vector<8x16xf32> to vector<8xf32>
    %165 = vector.shape_cast %164 : vector<8xf32> to vector<8x1xf32>
    %cst_68 = arith.constant 1.600000e+01 : f32
    %166 = vector.broadcast %cst_68 : f32 to vector<8x1xf32>
    %167 = arith.divf %165, %166 : vector<8x1xf32>
    %168 = vector.broadcast %167 : vector<8x1xf32> to vector<8x16xf32>
    %169 = arith.subf %161, %168 : vector<8x16xf32>
    %170 = arith.mulf %169, %169 : vector<8x16xf32>
    %cst_69 = arith.constant dense<0.000000e+00> : vector<8xf32>
    %171 = vector.multi_reduction <add>, %170, %cst_69 [1] : vector<8x16xf32> to vector<8xf32>
    %172 = vector.shape_cast %171 : vector<8xf32> to vector<8x1xf32>
    %cst_70 = arith.constant 1.600000e+01 : f32
    %173 = vector.broadcast %cst_70 : f32 to vector<8x1xf32>
    %174 = arith.divf %172, %173 : vector<8x1xf32>
    %175 = vector.broadcast %167 : vector<8x1xf32> to vector<8x16xf32>
    %176 = arith.subf %161, %175 : vector<8x16xf32>
    %cst_71 = arith.constant 9.99999974E-6 : f32
    %177 = vector.broadcast %cst_71 : f32 to vector<8x1xf32>
    %178 = arith.addf %174, %177 : vector<8x1xf32>
    %179 = math.rsqrt %178 : vector<8x1xf32>
    %180 = vector.broadcast %179 : vector<8x1xf32> to vector<8x16xf32>
    %181 = arith.mulf %176, %180 : vector<8x16xf32>
    %182 = vector.broadcast %162 : vector<1x16xf32> to vector<8x16xf32>
    %183 = arith.mulf %181, %182 : vector<8x16xf32>
    %184 = vector.broadcast %163 : vector<1x16xf32> to vector<8x16xf32>
    %185 = arith.addf %183, %184 : vector<8x16xf32>
    %c384 = arith.constant 384 : index
    %c0_72 = arith.constant 0 : index
    %186 = vector.load %arg3[%c384, %c0_72] : memref<1936x128xf32, #tpu.memory_space<vmem>>, vector<16x32xf32>
    %cst_73 = arith.constant dense<0.000000e+00> : vector<8x32xf32>
    %187 = tpu.matmul %185, %186, %cst_73 {dimension_numbers = #tpu.dot_dimension_numbers<[1], [0], [0], [1], [0, 0, 1, 1], [], []>} : vector<8x16xf32>, vector<16x32xf32>, vector<8x32xf32> -> vector<8x32xf32>
    %c400 = arith.constant 400 : index
    %c0_74 = arith.constant 0 : index
    %188 = vector.load %arg3[%c400, %c0_74] : memref<1936x128xf32, #tpu.memory_space<vmem>>, vector<1x32xf32>
    %189 = vector.broadcast %188 : vector<1x32xf32> to vector<8x32xf32>
    %190 = arith.addf %187, %189 : vector<8x32xf32>
    %c408 = arith.constant 408 : index
    %c0_75 = arith.constant 0 : index
    %191 = vector.load %arg3[%c408, %c0_75] : memref<1936x128xf32, #tpu.memory_space<vmem>>, vector<1x32xf32>
    %c416 = arith.constant 416 : index
    %c0_76 = arith.constant 0 : index
    %192 = vector.load %arg3[%c416, %c0_76] : memref<1936x128xf32, #tpu.memory_space<vmem>>, vector<1x32xf32>
    %cst_77 = arith.constant dense<0.000000e+00> : vector<32xf32>
    %193 = vector.multi_reduction <add>, %190, %cst_77 [0] : vector<8x32xf32> to vector<32xf32>
    %194 = vector.shape_cast %193 : vector<32xf32> to vector<1x32xf32>
    %cst_78 = arith.constant 8.000000e+00 : f32
    %195 = vector.broadcast %cst_78 : f32 to vector<1x32xf32>
    %196 = arith.divf %194, %195 : vector<1x32xf32>
    %197 = vector.broadcast %196 : vector<1x32xf32> to vector<8x32xf32>
    %198 = arith.subf %190, %197 : vector<8x32xf32>
    %199 = arith.mulf %198, %198 : vector<8x32xf32>
    %cst_79 = arith.constant dense<0.000000e+00> : vector<32xf32>
    %200 = vector.multi_reduction <add>, %199, %cst_79 [0] : vector<8x32xf32> to vector<32xf32>
    %201 = vector.shape_cast %200 : vector<32xf32> to vector<1x32xf32>
    %cst_80 = arith.constant 8.000000e+00 : f32
    %202 = vector.broadcast %cst_80 : f32 to vector<1x32xf32>
    %203 = arith.divf %201, %202 : vector<1x32xf32>
    %204 = vector.broadcast %196 : vector<1x32xf32> to vector<8x32xf32>
    %205 = arith.subf %190, %204 : vector<8x32xf32>
    %cst_81 = arith.constant 9.99999974E-6 : f32
    %206 = vector.broadcast %cst_81 : f32 to vector<1x32xf32>
    %207 = arith.addf %203, %206 : vector<1x32xf32>
    %208 = math.rsqrt %207 : vector<1x32xf32>
    %209 = vector.broadcast %208 : vector<1x32xf32> to vector<8x32xf32>
    %210 = arith.mulf %205, %209 : vector<8x32xf32>
    %211 = vector.broadcast %191 : vector<1x32xf32> to vector<8x32xf32>
    %212 = arith.mulf %210, %211 : vector<8x32xf32>
    %213 = vector.broadcast %192 : vector<1x32xf32> to vector<8x32xf32>
    %214 = arith.addf %212, %213 : vector<8x32xf32>
    %cst_82 = arith.constant 0.000000e+00 : f32
    %215 = vector.broadcast %cst_82 : f32 to vector<8x32xf32>
    %216 = arith.maximumf %214, %215 : vector<8x32xf32>
    %c424 = arith.constant 424 : index
    %c0_83 = arith.constant 0 : index
    %217 = vector.load %arg3[%c424, %c0_83] : memref<1936x128xf32, #tpu.memory_space<vmem>>, vector<32x16xf32>
    %cst_84 = arith.constant dense<0.000000e+00> : vector<8x16xf32>
    %218 = tpu.matmul %216, %217, %cst_84 {dimension_numbers = #tpu.dot_dimension_numbers<[1], [0], [0], [1], [0, 0, 1, 1], [], []>} : vector<8x32xf32>, vector<32x16xf32>, vector<8x16xf32> -> vector<8x16xf32>
    %c456 = arith.constant 456 : index
    %c0_85 = arith.constant 0 : index
    %219 = vector.load %arg3[%c456, %c0_85] : memref<1936x128xf32, #tpu.memory_space<vmem>>, vector<1x16xf32>
    %220 = vector.broadcast %219 : vector<1x16xf32> to vector<8x16xf32>
    %221 = arith.addf %218, %220 : vector<8x16xf32>
    %222 = arith.addf %185, %221 : vector<8x16xf32>
    %c464 = arith.constant 464 : index
    %c0_86 = arith.constant 0 : index
    %223 = vector.load %arg3[%c464, %c0_86] : memref<1936x128xf32, #tpu.memory_space<vmem>>, vector<1x16xf32>
    %c472 = arith.constant 472 : index
    %c0_87 = arith.constant 0 : index
    %224 = vector.load %arg3[%c472, %c0_87] : memref<1936x128xf32, #tpu.memory_space<vmem>>, vector<1x16xf32>
    %cst_88 = arith.constant dense<0.000000e+00> : vector<16xf32>
    %225 = vector.multi_reduction <add>, %222, %cst_88 [0] : vector<8x16xf32> to vector<16xf32>
    %226 = vector.shape_cast %225 : vector<16xf32> to vector<1x16xf32>
    %cst_89 = arith.constant 8.000000e+00 : f32
    %227 = vector.broadcast %cst_89 : f32 to vector<1x16xf32>
    %228 = arith.divf %226, %227 : vector<1x16xf32>
    %229 = vector.broadcast %228 : vector<1x16xf32> to vector<8x16xf32>
    %230 = arith.subf %222, %229 : vector<8x16xf32>
    %231 = arith.mulf %230, %230 : vector<8x16xf32>
    %cst_90 = arith.constant dense<0.000000e+00> : vector<16xf32>
    %232 = vector.multi_reduction <add>, %231, %cst_90 [0] : vector<8x16xf32> to vector<16xf32>
    %233 = vector.shape_cast %232 : vector<16xf32> to vector<1x16xf32>
    %cst_91 = arith.constant 8.000000e+00 : f32
    %234 = vector.broadcast %cst_91 : f32 to vector<1x16xf32>
    %235 = arith.divf %233, %234 : vector<1x16xf32>
    %236 = vector.broadcast %228 : vector<1x16xf32> to vector<8x16xf32>
    %237 = arith.subf %222, %236 : vector<8x16xf32>
    %cst_92 = arith.constant 9.99999974E-6 : f32
    %238 = vector.broadcast %cst_92 : f32 to vector<1x16xf32>
    %239 = arith.addf %235, %238 : vector<1x16xf32>
    %240 = math.rsqrt %239 : vector<1x16xf32>
    %241 = vector.broadcast %240 : vector<1x16xf32> to vector<8x16xf32>
    %242 = arith.mulf %237, %241 : vector<8x16xf32>
    %243 = vector.broadcast %223 : vector<1x16xf32> to vector<8x16xf32>
    %244 = arith.mulf %242, %243 : vector<8x16xf32>
    %245 = vector.broadcast %224 : vector<1x16xf32> to vector<8x16xf32>
    %246 = arith.addf %244, %245 : vector<8x16xf32>
    %cst_93 = arith.constant 0.000000e+00 : f32
    %247 = vector.broadcast %cst_93 : f32 to vector<8x16xf32>
    %248 = arith.maximumf %246, %247 : vector<8x16xf32>
    %249 = vector.extract_strided_slice %14 {offsets = [0, 16], sizes = [8, 8], strides = [1, 1]} : vector<8x80xf32> to vector<8x8xf32>
    %c480 = arith.constant 480 : index
    %c0_94 = arith.constant 0 : index
    %250 = vector.load %arg3[%c480, %c0_94] : memref<1936x128xf32, #tpu.memory_space<vmem>>, vector<8x16xf32>
    %cst_95 = arith.constant dense<0.000000e+00> : vector<8x16xf32>
    %251 = tpu.matmul %9, %250, %cst_95 {dimension_numbers = #tpu.dot_dimension_numbers<[1], [0], [0], [1], [0, 0, 1, 1], [], []>} : vector<8x8xf32>, vector<8x16xf32>, vector<8x16xf32> -> vector<8x16xf32>
    %252 = arith.addf %248, %251 : vector<8x16xf32>
    %c488 = arith.constant 488 : index
    %c0_96 = arith.constant 0 : index
    %253 = vector.load %arg3[%c488, %c0_96] : memref<1936x128xf32, #tpu.memory_space<vmem>>, vector<1x16xf32>
    %254 = vector.broadcast %253 : vector<1x16xf32> to vector<8x16xf32>
    %255 = arith.addf %252, %254 : vector<8x16xf32>
    %c496 = arith.constant 496 : index
    %c0_97 = arith.constant 0 : index
    %256 = vector.load %arg3[%c496, %c0_97] : memref<1936x128xf32, #tpu.memory_space<vmem>>, vector<16x40xf32>
    %cst_98 = arith.constant dense<0.000000e+00> : vector<8x40xf32>
    %257 = tpu.matmul %255, %256, %cst_98 {dimension_numbers = #tpu.dot_dimension_numbers<[1], [0], [0], [1], [0, 0, 1, 1], [], []>} : vector<8x16xf32>, vector<16x40xf32>, vector<8x40xf32> -> vector<8x40xf32>
    %c512 = arith.constant 512 : index
    %c0_99 = arith.constant 0 : index
    %258 = vector.load %arg3[%c512, %c0_99] : memref<1936x128xf32, #tpu.memory_space<vmem>>, vector<1x40xf32>
    %259 = vector.broadcast %258 : vector<1x40xf32> to vector<8x40xf32>
    %260 = arith.addf %257, %259 : vector<8x40xf32>
    %261 = vector.extract_strided_slice %260 {offsets = [0, 0], sizes = [8, 8], strides = [1, 1]} : vector<8x40xf32> to vector<8x8xf32>
    %262 = vector.extract_strided_slice %260 {offsets = [0, 8], sizes = [8, 32], strides = [1, 1]} : vector<8x40xf32> to vector<8x32xf32>
    %c520 = arith.constant 520 : index
    %c0_100 = arith.constant 0 : index
    %263 = vector.load %arg3[%c520, %c0_100] : memref<1936x128xf32, #tpu.memory_space<vmem>>, vector<1x32xf32>
    %c528 = arith.constant 528 : index
    %c0_101 = arith.constant 0 : index
    %264 = vector.load %arg3[%c528, %c0_101] : memref<1936x128xf32, #tpu.memory_space<vmem>>, vector<1x32xf32>
    %cst_102 = arith.constant dense<0.000000e+00> : vector<32xf32>
    %265 = vector.multi_reduction <add>, %262, %cst_102 [0] : vector<8x32xf32> to vector<32xf32>
    %266 = vector.shape_cast %265 : vector<32xf32> to vector<1x32xf32>
    %cst_103 = arith.constant 8.000000e+00 : f32
    %267 = vector.broadcast %cst_103 : f32 to vector<1x32xf32>
    %268 = arith.divf %266, %267 : vector<1x32xf32>
    %269 = vector.broadcast %268 : vector<1x32xf32> to vector<8x32xf32>
    %270 = arith.subf %262, %269 : vector<8x32xf32>
    %271 = arith.mulf %270, %270 : vector<8x32xf32>
    %cst_104 = arith.constant dense<0.000000e+00> : vector<32xf32>
    %272 = vector.multi_reduction <add>, %271, %cst_104 [0] : vector<8x32xf32> to vector<32xf32>
    %273 = vector.shape_cast %272 : vector<32xf32> to vector<1x32xf32>
    %cst_105 = arith.constant 8.000000e+00 : f32
    %274 = vector.broadcast %cst_105 : f32 to vector<1x32xf32>
    %275 = arith.divf %273, %274 : vector<1x32xf32>
    %276 = vector.broadcast %268 : vector<1x32xf32> to vector<8x32xf32>
    %277 = arith.subf %262, %276 : vector<8x32xf32>
    %cst_106 = arith.constant 9.99999974E-6 : f32
    %278 = vector.broadcast %cst_106 : f32 to vector<1x32xf32>
    %279 = arith.addf %275, %278 : vector<1x32xf32>
    %280 = math.rsqrt %279 : vector<1x32xf32>
    %281 = vector.broadcast %280 : vector<1x32xf32> to vector<8x32xf32>
    %282 = arith.mulf %277, %281 : vector<8x32xf32>
    %283 = vector.broadcast %263 : vector<1x32xf32> to vector<8x32xf32>
    %284 = arith.mulf %282, %283 : vector<8x32xf32>
    %285 = vector.broadcast %264 : vector<1x32xf32> to vector<8x32xf32>
    %286 = arith.addf %284, %285 : vector<8x32xf32>
    %cst_107 = arith.constant 0.000000e+00 : f32
    %287 = vector.broadcast %cst_107 : f32 to vector<8x32xf32>
    %288 = arith.maximumf %286, %287 : vector<8x32xf32>
    %c536 = arith.constant 536 : index
    %c0_108 = arith.constant 0 : index
    %289 = vector.load %arg3[%c536, %c0_108] : memref<1936x128xf32, #tpu.memory_space<vmem>>, vector<32x8xf32>
    %cst_109 = arith.constant dense<0.000000e+00> : vector<8x8xf32>
    %290 = tpu.matmul %288, %289, %cst_109 {dimension_numbers = #tpu.dot_dimension_numbers<[1], [0], [0], [1], [0, 0, 1, 1], [], []>} : vector<8x32xf32>, vector<32x8xf32>, vector<8x8xf32> -> vector<8x8xf32>
    %c568 = arith.constant 568 : index
    %c0_110 = arith.constant 0 : index
    %291 = vector.load %arg3[%c568, %c0_110] : memref<1936x128xf32, #tpu.memory_space<vmem>>, vector<1x8xf32>
    %292 = vector.broadcast %291 : vector<1x8xf32> to vector<8x8xf32>
    %293 = arith.addf %290, %292 : vector<8x8xf32>
    %294 = arith.addf %261, %293 : vector<8x8xf32>
    %c576 = arith.constant 576 : index
    %c0_111 = arith.constant 0 : index
    %295 = vector.load %arg3[%c576, %c0_111] : memref<1936x128xf32, #tpu.memory_space<vmem>>, vector<1x8xf32>
    %c584 = arith.constant 584 : index
    %c0_112 = arith.constant 0 : index
    %296 = vector.load %arg3[%c584, %c0_112] : memref<1936x128xf32, #tpu.memory_space<vmem>>, vector<1x8xf32>
    %cst_113 = arith.constant dense<0.000000e+00> : vector<8xf32>
    %297 = vector.multi_reduction <add>, %294, %cst_113 [0] : vector<8x8xf32> to vector<8xf32>
    %298 = vector.shape_cast %297 : vector<8xf32> to vector<1x8xf32>
    %cst_114 = arith.constant 8.000000e+00 : f32
    %299 = vector.broadcast %cst_114 : f32 to vector<1x8xf32>
    %300 = arith.divf %298, %299 : vector<1x8xf32>
    %301 = vector.broadcast %300 : vector<1x8xf32> to vector<8x8xf32>
    %302 = arith.subf %294, %301 : vector<8x8xf32>
    %303 = arith.mulf %302, %302 : vector<8x8xf32>
    %cst_115 = arith.constant dense<0.000000e+00> : vector<8xf32>
    %304 = vector.multi_reduction <add>, %303, %cst_115 [0] : vector<8x8xf32> to vector<8xf32>
    %305 = vector.shape_cast %304 : vector<8xf32> to vector<1x8xf32>
    %cst_116 = arith.constant 8.000000e+00 : f32
    %306 = vector.broadcast %cst_116 : f32 to vector<1x8xf32>
    %307 = arith.divf %305, %306 : vector<1x8xf32>
    %308 = vector.broadcast %300 : vector<1x8xf32> to vector<8x8xf32>
    %309 = arith.subf %294, %308 : vector<8x8xf32>
    %cst_117 = arith.constant 9.99999974E-6 : f32
    %310 = vector.broadcast %cst_117 : f32 to vector<1x8xf32>
    %311 = arith.addf %307, %310 : vector<1x8xf32>
    %312 = math.rsqrt %311 : vector<1x8xf32>
    %313 = vector.broadcast %312 : vector<1x8xf32> to vector<8x8xf32>
    %314 = arith.mulf %309, %313 : vector<8x8xf32>
    %315 = vector.broadcast %295 : vector<1x8xf32> to vector<8x8xf32>
    %316 = arith.mulf %314, %315 : vector<8x8xf32>
    %317 = vector.broadcast %296 : vector<1x8xf32> to vector<8x8xf32>
    %318 = arith.addf %316, %317 : vector<8x8xf32>
    %cst_118 = arith.constant 0.000000e+00 : f32
    %319 = vector.broadcast %cst_118 : f32 to vector<8x8xf32>
    %320 = arith.maximumf %318, %319 : vector<8x8xf32>
    %321 = arith.addf %320, %249 : vector<8x8xf32>
    %c592 = arith.constant 592 : index
    %c0_119 = arith.constant 0 : index
    %322 = vector.load %arg3[%c592, %c0_119] : memref<1936x128xf32, #tpu.memory_space<vmem>>, vector<1x8xf32>
    %c600 = arith.constant 600 : index
    %c0_120 = arith.constant 0 : index
    %323 = vector.load %arg3[%c600, %c0_120] : memref<1936x128xf32, #tpu.memory_space<vmem>>, vector<1x8xf32>
    %cst_121 = arith.constant dense<0.000000e+00> : vector<8xf32>
    %324 = vector.multi_reduction <add>, %321, %cst_121 [1] : vector<8x8xf32> to vector<8xf32>
    %325 = vector.shape_cast %324 : vector<8xf32> to vector<8x1xf32>
    %cst_122 = arith.constant 8.000000e+00 : f32
    %326 = vector.broadcast %cst_122 : f32 to vector<8x1xf32>
    %327 = arith.divf %325, %326 : vector<8x1xf32>
    %328 = vector.broadcast %327 : vector<8x1xf32> to vector<8x8xf32>
    %329 = arith.subf %321, %328 : vector<8x8xf32>
    %330 = arith.mulf %329, %329 : vector<8x8xf32>
    %cst_123 = arith.constant dense<0.000000e+00> : vector<8xf32>
    %331 = vector.multi_reduction <add>, %330, %cst_123 [1] : vector<8x8xf32> to vector<8xf32>
    %332 = vector.shape_cast %331 : vector<8xf32> to vector<8x1xf32>
    %cst_124 = arith.constant 8.000000e+00 : f32
    %333 = vector.broadcast %cst_124 : f32 to vector<8x1xf32>
    %334 = arith.divf %332, %333 : vector<8x1xf32>
    %335 = vector.broadcast %327 : vector<8x1xf32> to vector<8x8xf32>
    %336 = arith.subf %321, %335 : vector<8x8xf32>
    %cst_125 = arith.constant 9.99999974E-6 : f32
    %337 = vector.broadcast %cst_125 : f32 to vector<8x1xf32>
    %338 = arith.addf %334, %337 : vector<8x1xf32>
    %339 = math.rsqrt %338 : vector<8x1xf32>
    %340 = vector.broadcast %339 : vector<8x1xf32> to vector<8x8xf32>
    %341 = arith.mulf %336, %340 : vector<8x8xf32>
    %342 = vector.broadcast %322 : vector<1x8xf32> to vector<8x8xf32>
    %343 = arith.mulf %341, %342 : vector<8x8xf32>
    %344 = vector.broadcast %323 : vector<1x8xf32> to vector<8x8xf32>
    %345 = arith.addf %343, %344 : vector<8x8xf32>
    %c608 = arith.constant 608 : index
    %c0_126 = arith.constant 0 : index
    %346 = vector.load %arg3[%c608, %c0_126] : memref<1936x128xf32, #tpu.memory_space<vmem>>, vector<8x32xf32>
    %cst_127 = arith.constant dense<0.000000e+00> : vector<8x32xf32>
    %347 = tpu.matmul %345, %346, %cst_127 {dimension_numbers = #tpu.dot_dimension_numbers<[1], [0], [0], [1], [0, 0, 1, 1], [], []>} : vector<8x8xf32>, vector<8x32xf32>, vector<8x32xf32> -> vector<8x32xf32>
    %c616 = arith.constant 616 : index
    %c0_128 = arith.constant 0 : index
    %348 = vector.load %arg3[%c616, %c0_128] : memref<1936x128xf32, #tpu.memory_space<vmem>>, vector<1x32xf32>
    %349 = vector.broadcast %348 : vector<1x32xf32> to vector<8x32xf32>
    %350 = arith.addf %347, %349 : vector<8x32xf32>
    %cst_129 = arith.constant 0.000000e+00 : f32
    %351 = vector.broadcast %cst_129 : f32 to vector<8x32xf32>
    %352 = arith.maximumf %350, %351 : vector<8x32xf32>
    %c624 = arith.constant 624 : index
    %c0_130 = arith.constant 0 : index
    %353 = vector.load %arg3[%c624, %c0_130] : memref<1936x128xf32, #tpu.memory_space<vmem>>, vector<32x8xf32>
    %cst_131 = arith.constant dense<0.000000e+00> : vector<8x8xf32>
    %354 = tpu.matmul %352, %353, %cst_131 {dimension_numbers = #tpu.dot_dimension_numbers<[1], [0], [0], [1], [0, 0, 1, 1], [], []>} : vector<8x32xf32>, vector<32x8xf32>, vector<8x8xf32> -> vector<8x8xf32>
    %c656 = arith.constant 656 : index
    %c0_132 = arith.constant 0 : index
    %355 = vector.load %arg3[%c656, %c0_132] : memref<1936x128xf32, #tpu.memory_space<vmem>>, vector<1x8xf32>
    %356 = vector.broadcast %355 : vector<1x8xf32> to vector<8x8xf32>
    %357 = arith.addf %354, %356 : vector<8x8xf32>
    %358 = arith.addf %345, %357 : vector<8x8xf32>
    %c664 = arith.constant 664 : index
    %c0_133 = arith.constant 0 : index
    %359 = vector.load %arg3[%c664, %c0_133] : memref<1936x128xf32, #tpu.memory_space<vmem>>, vector<1x8xf32>
    %c672 = arith.constant 672 : index
    %c0_134 = arith.constant 0 : index
    %360 = vector.load %arg3[%c672, %c0_134] : memref<1936x128xf32, #tpu.memory_space<vmem>>, vector<1x8xf32>
    %cst_135 = arith.constant dense<0.000000e+00> : vector<8xf32>
    %361 = vector.multi_reduction <add>, %358, %cst_135 [1] : vector<8x8xf32> to vector<8xf32>
    %362 = vector.shape_cast %361 : vector<8xf32> to vector<8x1xf32>
    %cst_136 = arith.constant 8.000000e+00 : f32
    %363 = vector.broadcast %cst_136 : f32 to vector<8x1xf32>
    %364 = arith.divf %362, %363 : vector<8x1xf32>
    %365 = vector.broadcast %364 : vector<8x1xf32> to vector<8x8xf32>
    %366 = arith.subf %358, %365 : vector<8x8xf32>
    %367 = arith.mulf %366, %366 : vector<8x8xf32>
    %cst_137 = arith.constant dense<0.000000e+00> : vector<8xf32>
    %368 = vector.multi_reduction <add>, %367, %cst_137 [1] : vector<8x8xf32> to vector<8xf32>
    %369 = vector.shape_cast %368 : vector<8xf32> to vector<8x1xf32>
    %cst_138 = arith.constant 8.000000e+00 : f32
    %370 = vector.broadcast %cst_138 : f32 to vector<8x1xf32>
    %371 = arith.divf %369, %370 : vector<8x1xf32>
    %372 = vector.broadcast %364 : vector<8x1xf32> to vector<8x8xf32>
    %373 = arith.subf %358, %372 : vector<8x8xf32>
    %cst_139 = arith.constant 9.99999974E-6 : f32
    %374 = vector.broadcast %cst_139 : f32 to vector<8x1xf32>
    %375 = arith.addf %371, %374 : vector<8x1xf32>
    %376 = math.rsqrt %375 : vector<8x1xf32>
    %377 = vector.broadcast %376 : vector<8x1xf32> to vector<8x8xf32>
    %378 = arith.mulf %373, %377 : vector<8x8xf32>
    %379 = vector.broadcast %359 : vector<1x8xf32> to vector<8x8xf32>
    %380 = arith.mulf %378, %379 : vector<8x8xf32>
    %381 = vector.broadcast %360 : vector<1x8xf32> to vector<8x8xf32>
    %382 = arith.addf %380, %381 : vector<8x8xf32>
    %c680 = arith.constant 680 : index
    %c0_140 = arith.constant 0 : index
    %383 = vector.load %arg3[%c680, %c0_140] : memref<1936x128xf32, #tpu.memory_space<vmem>>, vector<8x16xf32>
    %cst_141 = arith.constant dense<0.000000e+00> : vector<8x16xf32>
    %384 = tpu.matmul %382, %383, %cst_141 {dimension_numbers = #tpu.dot_dimension_numbers<[1], [0], [0], [1], [0, 0, 1, 1], [], []>} : vector<8x8xf32>, vector<8x16xf32>, vector<8x16xf32> -> vector<8x16xf32>
    %c688 = arith.constant 688 : index
    %c0_142 = arith.constant 0 : index
    %385 = vector.load %arg3[%c688, %c0_142] : memref<1936x128xf32, #tpu.memory_space<vmem>>, vector<1x16xf32>
    %386 = vector.broadcast %385 : vector<1x16xf32> to vector<8x16xf32>
    %387 = arith.addf %384, %386 : vector<8x16xf32>
    %c696 = arith.constant 696 : index
    %c0_143 = arith.constant 0 : index
    %388 = vector.load %arg3[%c696, %c0_143] : memref<1936x128xf32, #tpu.memory_space<vmem>>, vector<1x16xf32>
    %c704 = arith.constant 704 : index
    %c0_144 = arith.constant 0 : index
    %389 = vector.load %arg3[%c704, %c0_144] : memref<1936x128xf32, #tpu.memory_space<vmem>>, vector<1x16xf32>
    %cst_145 = arith.constant dense<0.000000e+00> : vector<16xf32>
    %390 = vector.multi_reduction <add>, %387, %cst_145 [0] : vector<8x16xf32> to vector<16xf32>
    %391 = vector.shape_cast %390 : vector<16xf32> to vector<1x16xf32>
    %cst_146 = arith.constant 8.000000e+00 : f32
    %392 = vector.broadcast %cst_146 : f32 to vector<1x16xf32>
    %393 = arith.divf %391, %392 : vector<1x16xf32>
    %394 = vector.broadcast %393 : vector<1x16xf32> to vector<8x16xf32>
    %395 = arith.subf %387, %394 : vector<8x16xf32>
    %396 = arith.mulf %395, %395 : vector<8x16xf32>
    %cst_147 = arith.constant dense<0.000000e+00> : vector<16xf32>
    %397 = vector.multi_reduction <add>, %396, %cst_147 [0] : vector<8x16xf32> to vector<16xf32>
    %398 = vector.shape_cast %397 : vector<16xf32> to vector<1x16xf32>
    %cst_148 = arith.constant 8.000000e+00 : f32
    %399 = vector.broadcast %cst_148 : f32 to vector<1x16xf32>
    %400 = arith.divf %398, %399 : vector<1x16xf32>
    %401 = vector.broadcast %393 : vector<1x16xf32> to vector<8x16xf32>
    %402 = arith.subf %387, %401 : vector<8x16xf32>
    %cst_149 = arith.constant 9.99999974E-6 : f32
    %403 = vector.broadcast %cst_149 : f32 to vector<1x16xf32>
    %404 = arith.addf %400, %403 : vector<1x16xf32>
    %405 = math.rsqrt %404 : vector<1x16xf32>
    %406 = vector.broadcast %405 : vector<1x16xf32> to vector<8x16xf32>
    %407 = arith.mulf %402, %406 : vector<8x16xf32>
    %408 = vector.broadcast %388 : vector<1x16xf32> to vector<8x16xf32>
    %409 = arith.mulf %407, %408 : vector<8x16xf32>
    %410 = vector.broadcast %389 : vector<1x16xf32> to vector<8x16xf32>
    %411 = arith.addf %409, %410 : vector<8x16xf32>
    %cst_150 = arith.constant 0.000000e+00 : f32
    %412 = vector.broadcast %cst_150 : f32 to vector<8x16xf32>
    %413 = arith.maximumf %411, %412 : vector<8x16xf32>
    %c712 = arith.constant 712 : index
    %c0_151 = arith.constant 0 : index
    %414 = vector.load %arg3[%c712, %c0_151] : memref<1936x128xf32, #tpu.memory_space<vmem>>, vector<16x8xf32>
    %cst_152 = arith.constant dense<0.000000e+00> : vector<8x8xf32>
    %415 = tpu.matmul %413, %414, %cst_152 {dimension_numbers = #tpu.dot_dimension_numbers<[1], [0], [0], [1], [0, 0, 1, 1], [], []>} : vector<8x16xf32>, vector<16x8xf32>, vector<8x8xf32> -> vector<8x8xf32>
    %c728 = arith.constant 728 : index
    %c0_153 = arith.constant 0 : index
    %416 = vector.load %arg3[%c728, %c0_153] : memref<1936x128xf32, #tpu.memory_space<vmem>>, vector<1x8xf32>
    %417 = vector.broadcast %416 : vector<1x8xf32> to vector<8x8xf32>
    %418 = arith.addf %415, %417 : vector<8x8xf32>
    %419 = arith.addf %382, %418 : vector<8x8xf32>
    %c736 = arith.constant 736 : index
    %c0_154 = arith.constant 0 : index
    %420 = vector.load %arg3[%c736, %c0_154] : memref<1936x128xf32, #tpu.memory_space<vmem>>, vector<1x8xf32>
    %c744 = arith.constant 744 : index
    %c0_155 = arith.constant 0 : index
    %421 = vector.load %arg3[%c744, %c0_155] : memref<1936x128xf32, #tpu.memory_space<vmem>>, vector<1x8xf32>
    %cst_156 = arith.constant dense<0.000000e+00> : vector<8xf32>
    %422 = vector.multi_reduction <add>, %419, %cst_156 [0] : vector<8x8xf32> to vector<8xf32>
    %423 = vector.shape_cast %422 : vector<8xf32> to vector<1x8xf32>
    %cst_157 = arith.constant 8.000000e+00 : f32
    %424 = vector.broadcast %cst_157 : f32 to vector<1x8xf32>
    %425 = arith.divf %423, %424 : vector<1x8xf32>
    %426 = vector.broadcast %425 : vector<1x8xf32> to vector<8x8xf32>
    %427 = arith.subf %419, %426 : vector<8x8xf32>
    %428 = arith.mulf %427, %427 : vector<8x8xf32>
    %cst_158 = arith.constant dense<0.000000e+00> : vector<8xf32>
    %429 = vector.multi_reduction <add>, %428, %cst_158 [0] : vector<8x8xf32> to vector<8xf32>
    %430 = vector.shape_cast %429 : vector<8xf32> to vector<1x8xf32>
    %cst_159 = arith.constant 8.000000e+00 : f32
    %431 = vector.broadcast %cst_159 : f32 to vector<1x8xf32>
    %432 = arith.divf %430, %431 : vector<1x8xf32>
    %433 = vector.broadcast %425 : vector<1x8xf32> to vector<8x8xf32>
    %434 = arith.subf %419, %433 : vector<8x8xf32>
    %cst_160 = arith.constant 9.99999974E-6 : f32
    %435 = vector.broadcast %cst_160 : f32 to vector<1x8xf32>
    %436 = arith.addf %432, %435 : vector<1x8xf32>
    %437 = math.rsqrt %436 : vector<1x8xf32>
    %438 = vector.broadcast %437 : vector<1x8xf32> to vector<8x8xf32>
    %439 = arith.mulf %434, %438 : vector<8x8xf32>
    %440 = vector.broadcast %420 : vector<1x8xf32> to vector<8x8xf32>
    %441 = arith.mulf %439, %440 : vector<8x8xf32>
    %442 = vector.broadcast %421 : vector<1x8xf32> to vector<8x8xf32>
    %443 = arith.addf %441, %442 : vector<8x8xf32>
    %cst_161 = arith.constant 0.000000e+00 : f32
    %444 = vector.broadcast %cst_161 : f32 to vector<8x8xf32>
    %445 = arith.maximumf %443, %444 : vector<8x8xf32>
    %446 = vector.extract_strided_slice %14 {offsets = [0, 24], sizes = [8, 8], strides = [1, 1]} : vector<8x80xf32> to vector<8x8xf32>
    %c752 = arith.constant 752 : index
    %c0_162 = arith.constant 0 : index
    %447 = vector.load %arg3[%c752, %c0_162] : memref<1936x128xf32, #tpu.memory_space<vmem>>, vector<8x8xf32>
    %cst_163 = arith.constant dense<0.000000e+00> : vector<8x8xf32>
    %448 = tpu.matmul %9, %447, %cst_163 {dimension_numbers = #tpu.dot_dimension_numbers<[1], [0], [0], [1], [0, 0, 1, 1], [], []>} : vector<8x8xf32>, vector<8x8xf32>, vector<8x8xf32> -> vector<8x8xf32>
    %449 = arith.addf %445, %448 : vector<8x8xf32>
    %c760 = arith.constant 760 : index
    %c0_164 = arith.constant 0 : index
    %450 = vector.load %arg3[%c760, %c0_164] : memref<1936x128xf32, #tpu.memory_space<vmem>>, vector<1x8xf32>
    %451 = vector.broadcast %450 : vector<1x8xf32> to vector<8x8xf32>
    %452 = arith.addf %449, %451 : vector<8x8xf32>
    %c768 = arith.constant 768 : index
    %c0_165 = arith.constant 0 : index
    %453 = vector.load %arg3[%c768, %c0_165] : memref<1936x128xf32, #tpu.memory_space<vmem>>, vector<8x16xf32>
    %cst_166 = arith.constant dense<0.000000e+00> : vector<8x16xf32>
    %454 = tpu.matmul %452, %453, %cst_166 {dimension_numbers = #tpu.dot_dimension_numbers<[1], [0], [0], [1], [0, 0, 1, 1], [], []>} : vector<8x8xf32>, vector<8x16xf32>, vector<8x16xf32> -> vector<8x16xf32>
    %c776 = arith.constant 776 : index
    %c0_167 = arith.constant 0 : index
    %455 = vector.load %arg3[%c776, %c0_167] : memref<1936x128xf32, #tpu.memory_space<vmem>>, vector<1x16xf32>
    %456 = vector.broadcast %455 : vector<1x16xf32> to vector<8x16xf32>
    %457 = arith.addf %454, %456 : vector<8x16xf32>
    %c784 = arith.constant 784 : index
    %c0_168 = arith.constant 0 : index
    %458 = vector.load %arg3[%c784, %c0_168] : memref<1936x128xf32, #tpu.memory_space<vmem>>, vector<1x16xf32>
    %c792 = arith.constant 792 : index
    %c0_169 = arith.constant 0 : index
    %459 = vector.load %arg3[%c792, %c0_169] : memref<1936x128xf32, #tpu.memory_space<vmem>>, vector<1x16xf32>
    %cst_170 = arith.constant dense<0.000000e+00> : vector<16xf32>
    %460 = vector.multi_reduction <add>, %457, %cst_170 [0] : vector<8x16xf32> to vector<16xf32>
    %461 = vector.shape_cast %460 : vector<16xf32> to vector<1x16xf32>
    %cst_171 = arith.constant 8.000000e+00 : f32
    %462 = vector.broadcast %cst_171 : f32 to vector<1x16xf32>
    %463 = arith.divf %461, %462 : vector<1x16xf32>
    %464 = vector.broadcast %463 : vector<1x16xf32> to vector<8x16xf32>
    %465 = arith.subf %457, %464 : vector<8x16xf32>
    %466 = arith.mulf %465, %465 : vector<8x16xf32>
    %cst_172 = arith.constant dense<0.000000e+00> : vector<16xf32>
    %467 = vector.multi_reduction <add>, %466, %cst_172 [0] : vector<8x16xf32> to vector<16xf32>
    %468 = vector.shape_cast %467 : vector<16xf32> to vector<1x16xf32>
    %cst_173 = arith.constant 8.000000e+00 : f32
    %469 = vector.broadcast %cst_173 : f32 to vector<1x16xf32>
    %470 = arith.divf %468, %469 : vector<1x16xf32>
    %471 = vector.broadcast %463 : vector<1x16xf32> to vector<8x16xf32>
    %472 = arith.subf %457, %471 : vector<8x16xf32>
    %cst_174 = arith.constant 9.99999974E-6 : f32
    %473 = vector.broadcast %cst_174 : f32 to vector<1x16xf32>
    %474 = arith.addf %470, %473 : vector<1x16xf32>
    %475 = math.rsqrt %474 : vector<1x16xf32>
    %476 = vector.broadcast %475 : vector<1x16xf32> to vector<8x16xf32>
    %477 = arith.mulf %472, %476 : vector<8x16xf32>
    %478 = vector.broadcast %458 : vector<1x16xf32> to vector<8x16xf32>
    %479 = arith.mulf %477, %478 : vector<8x16xf32>
    %480 = vector.broadcast %459 : vector<1x16xf32> to vector<8x16xf32>
    %481 = arith.addf %479, %480 : vector<8x16xf32>
    %cst_175 = arith.constant 0.000000e+00 : f32
    %482 = vector.broadcast %cst_175 : f32 to vector<8x16xf32>
    %483 = arith.maximumf %481, %482 : vector<8x16xf32>
    %c800 = arith.constant 800 : index
    %c0_176 = arith.constant 0 : index
    %484 = vector.load %arg3[%c800, %c0_176] : memref<1936x128xf32, #tpu.memory_space<vmem>>, vector<16x8xf32>
    %cst_177 = arith.constant dense<0.000000e+00> : vector<8x8xf32>
    %485 = tpu.matmul %483, %484, %cst_177 {dimension_numbers = #tpu.dot_dimension_numbers<[1], [0], [0], [1], [0, 0, 1, 1], [], []>} : vector<8x16xf32>, vector<16x8xf32>, vector<8x8xf32> -> vector<8x8xf32>
    %c816 = arith.constant 816 : index
    %c0_178 = arith.constant 0 : index
    %486 = vector.load %arg3[%c816, %c0_178] : memref<1936x128xf32, #tpu.memory_space<vmem>>, vector<1x8xf32>
    %487 = vector.broadcast %486 : vector<1x8xf32> to vector<8x8xf32>
    %488 = arith.addf %485, %487 : vector<8x8xf32>
    %489 = arith.addf %452, %488 : vector<8x8xf32>
    %c824 = arith.constant 824 : index
    %c0_179 = arith.constant 0 : index
    %490 = vector.load %arg3[%c824, %c0_179] : memref<1936x128xf32, #tpu.memory_space<vmem>>, vector<1x8xf32>
    %c832 = arith.constant 832 : index
    %c0_180 = arith.constant 0 : index
    %491 = vector.load %arg3[%c832, %c0_180] : memref<1936x128xf32, #tpu.memory_space<vmem>>, vector<1x8xf32>
    %cst_181 = arith.constant dense<0.000000e+00> : vector<8xf32>
    %492 = vector.multi_reduction <add>, %489, %cst_181 [0] : vector<8x8xf32> to vector<8xf32>
    %493 = vector.shape_cast %492 : vector<8xf32> to vector<1x8xf32>
    %cst_182 = arith.constant 8.000000e+00 : f32
    %494 = vector.broadcast %cst_182 : f32 to vector<1x8xf32>
    %495 = arith.divf %493, %494 : vector<1x8xf32>
    %496 = vector.broadcast %495 : vector<1x8xf32> to vector<8x8xf32>
    %497 = arith.subf %489, %496 : vector<8x8xf32>
    %498 = arith.mulf %497, %497 : vector<8x8xf32>
    %cst_183 = arith.constant dense<0.000000e+00> : vector<8xf32>
    %499 = vector.multi_reduction <add>, %498, %cst_183 [0] : vector<8x8xf32> to vector<8xf32>
    %500 = vector.shape_cast %499 : vector<8xf32> to vector<1x8xf32>
    %cst_184 = arith.constant 8.000000e+00 : f32
    %501 = vector.broadcast %cst_184 : f32 to vector<1x8xf32>
    %502 = arith.divf %500, %501 : vector<1x8xf32>
    %503 = vector.broadcast %495 : vector<1x8xf32> to vector<8x8xf32>
    %504 = arith.subf %489, %503 : vector<8x8xf32>
    %cst_185 = arith.constant 9.99999974E-6 : f32
    %505 = vector.broadcast %cst_185 : f32 to vector<1x8xf32>
    %506 = arith.addf %502, %505 : vector<1x8xf32>
    %507 = math.rsqrt %506 : vector<1x8xf32>
    %508 = vector.broadcast %507 : vector<1x8xf32> to vector<8x8xf32>
    %509 = arith.mulf %504, %508 : vector<8x8xf32>
    %510 = vector.broadcast %490 : vector<1x8xf32> to vector<8x8xf32>
    %511 = arith.mulf %509, %510 : vector<8x8xf32>
    %512 = vector.broadcast %491 : vector<1x8xf32> to vector<8x8xf32>
    %513 = arith.addf %511, %512 : vector<8x8xf32>
    %cst_186 = arith.constant 0.000000e+00 : f32
    %514 = vector.broadcast %cst_186 : f32 to vector<8x8xf32>
    %515 = arith.maximumf %513, %514 : vector<8x8xf32>
    %516 = arith.addf %515, %446 : vector<8x8xf32>
    %c840 = arith.constant 840 : index
    %c0_187 = arith.constant 0 : index
    %517 = vector.load %arg3[%c840, %c0_187] : memref<1936x128xf32, #tpu.memory_space<vmem>>, vector<1x8xf32>
    %c848 = arith.constant 848 : index
    %c0_188 = arith.constant 0 : index
    %518 = vector.load %arg3[%c848, %c0_188] : memref<1936x128xf32, #tpu.memory_space<vmem>>, vector<1x8xf32>
    %cst_189 = arith.constant dense<0.000000e+00> : vector<8xf32>
    %519 = vector.multi_reduction <add>, %516, %cst_189 [1] : vector<8x8xf32> to vector<8xf32>
    %520 = vector.shape_cast %519 : vector<8xf32> to vector<8x1xf32>
    %cst_190 = arith.constant 8.000000e+00 : f32
    %521 = vector.broadcast %cst_190 : f32 to vector<8x1xf32>
    %522 = arith.divf %520, %521 : vector<8x1xf32>
    %523 = vector.broadcast %522 : vector<8x1xf32> to vector<8x8xf32>
    %524 = arith.subf %516, %523 : vector<8x8xf32>
    %525 = arith.mulf %524, %524 : vector<8x8xf32>
    %cst_191 = arith.constant dense<0.000000e+00> : vector<8xf32>
    %526 = vector.multi_reduction <add>, %525, %cst_191 [1] : vector<8x8xf32> to vector<8xf32>
    %527 = vector.shape_cast %526 : vector<8xf32> to vector<8x1xf32>
    %cst_192 = arith.constant 8.000000e+00 : f32
    %528 = vector.broadcast %cst_192 : f32 to vector<8x1xf32>
    %529 = arith.divf %527, %528 : vector<8x1xf32>
    %530 = vector.broadcast %522 : vector<8x1xf32> to vector<8x8xf32>
    %531 = arith.subf %516, %530 : vector<8x8xf32>
    %cst_193 = arith.constant 9.99999974E-6 : f32
    %532 = vector.broadcast %cst_193 : f32 to vector<8x1xf32>
    %533 = arith.addf %529, %532 : vector<8x1xf32>
    %534 = math.rsqrt %533 : vector<8x1xf32>
    %535 = vector.broadcast %534 : vector<8x1xf32> to vector<8x8xf32>
    %536 = arith.mulf %531, %535 : vector<8x8xf32>
    %537 = vector.broadcast %517 : vector<1x8xf32> to vector<8x8xf32>
    %538 = arith.mulf %536, %537 : vector<8x8xf32>
    %539 = vector.broadcast %518 : vector<1x8xf32> to vector<8x8xf32>
    %540 = arith.addf %538, %539 : vector<8x8xf32>
    %c856 = arith.constant 856 : index
    %c0_194 = arith.constant 0 : index
    %541 = vector.load %arg3[%c856, %c0_194] : memref<1936x128xf32, #tpu.memory_space<vmem>>, vector<8x32xf32>
    %cst_195 = arith.constant dense<0.000000e+00> : vector<8x32xf32>
    %542 = tpu.matmul %540, %541, %cst_195 {dimension_numbers = #tpu.dot_dimension_numbers<[1], [0], [0], [1], [0, 0, 1, 1], [], []>} : vector<8x8xf32>, vector<8x32xf32>, vector<8x32xf32> -> vector<8x32xf32>
    %c864 = arith.constant 864 : index
    %c0_196 = arith.constant 0 : index
    %543 = vector.load %arg3[%c864, %c0_196] : memref<1936x128xf32, #tpu.memory_space<vmem>>, vector<1x32xf32>
    %544 = vector.broadcast %543 : vector<1x32xf32> to vector<8x32xf32>
    %545 = arith.addf %542, %544 : vector<8x32xf32>
    %cst_197 = arith.constant 0.000000e+00 : f32
    %546 = vector.broadcast %cst_197 : f32 to vector<8x32xf32>
    %547 = arith.maximumf %545, %546 : vector<8x32xf32>
    %c872 = arith.constant 872 : index
    %c0_198 = arith.constant 0 : index
    %548 = vector.load %arg3[%c872, %c0_198] : memref<1936x128xf32, #tpu.memory_space<vmem>>, vector<32x8xf32>
    %cst_199 = arith.constant dense<0.000000e+00> : vector<8x8xf32>
    %549 = tpu.matmul %547, %548, %cst_199 {dimension_numbers = #tpu.dot_dimension_numbers<[1], [0], [0], [1], [0, 0, 1, 1], [], []>} : vector<8x32xf32>, vector<32x8xf32>, vector<8x8xf32> -> vector<8x8xf32>
    %c904 = arith.constant 904 : index
    %c0_200 = arith.constant 0 : index
    %550 = vector.load %arg3[%c904, %c0_200] : memref<1936x128xf32, #tpu.memory_space<vmem>>, vector<1x8xf32>
    %551 = vector.broadcast %550 : vector<1x8xf32> to vector<8x8xf32>
    %552 = arith.addf %549, %551 : vector<8x8xf32>
    %553 = arith.addf %540, %552 : vector<8x8xf32>
    %c912 = arith.constant 912 : index
    %c0_201 = arith.constant 0 : index
    %554 = vector.load %arg3[%c912, %c0_201] : memref<1936x128xf32, #tpu.memory_space<vmem>>, vector<1x8xf32>
    %c920 = arith.constant 920 : index
    %c0_202 = arith.constant 0 : index
    %555 = vector.load %arg3[%c920, %c0_202] : memref<1936x128xf32, #tpu.memory_space<vmem>>, vector<1x8xf32>
    %cst_203 = arith.constant dense<0.000000e+00> : vector<8xf32>
    %556 = vector.multi_reduction <add>, %553, %cst_203 [1] : vector<8x8xf32> to vector<8xf32>
    %557 = vector.shape_cast %556 : vector<8xf32> to vector<8x1xf32>
    %cst_204 = arith.constant 8.000000e+00 : f32
    %558 = vector.broadcast %cst_204 : f32 to vector<8x1xf32>
    %559 = arith.divf %557, %558 : vector<8x1xf32>
    %560 = vector.broadcast %559 : vector<8x1xf32> to vector<8x8xf32>
    %561 = arith.subf %553, %560 : vector<8x8xf32>
    %562 = arith.mulf %561, %561 : vector<8x8xf32>
    %cst_205 = arith.constant dense<0.000000e+00> : vector<8xf32>
    %563 = vector.multi_reduction <add>, %562, %cst_205 [1] : vector<8x8xf32> to vector<8xf32>
    %564 = vector.shape_cast %563 : vector<8xf32> to vector<8x1xf32>
    %cst_206 = arith.constant 8.000000e+00 : f32
    %565 = vector.broadcast %cst_206 : f32 to vector<8x1xf32>
    %566 = arith.divf %564, %565 : vector<8x1xf32>
    %567 = vector.broadcast %559 : vector<8x1xf32> to vector<8x8xf32>
    %568 = arith.subf %553, %567 : vector<8x8xf32>
    %cst_207 = arith.constant 9.99999974E-6 : f32
    %569 = vector.broadcast %cst_207 : f32 to vector<8x1xf32>
    %570 = arith.addf %566, %569 : vector<8x1xf32>
    %571 = math.rsqrt %570 : vector<8x1xf32>
    %572 = vector.broadcast %571 : vector<8x1xf32> to vector<8x8xf32>
    %573 = arith.mulf %568, %572 : vector<8x8xf32>
    %574 = vector.broadcast %554 : vector<1x8xf32> to vector<8x8xf32>
    %575 = arith.mulf %573, %574 : vector<8x8xf32>
    %576 = vector.broadcast %555 : vector<1x8xf32> to vector<8x8xf32>
    %577 = arith.addf %575, %576 : vector<8x8xf32>
    %c928 = arith.constant 928 : index
    %c0_208 = arith.constant 0 : index
    %578 = vector.load %arg3[%c928, %c0_208] : memref<1936x128xf32, #tpu.memory_space<vmem>>, vector<8x16xf32>
    %cst_209 = arith.constant dense<0.000000e+00> : vector<8x16xf32>
    %579 = tpu.matmul %577, %578, %cst_209 {dimension_numbers = #tpu.dot_dimension_numbers<[1], [0], [0], [1], [0, 0, 1, 1], [], []>} : vector<8x8xf32>, vector<8x16xf32>, vector<8x16xf32> -> vector<8x16xf32>
    %c936 = arith.constant 936 : index
    %c0_210 = arith.constant 0 : index
    %580 = vector.load %arg3[%c936, %c0_210] : memref<1936x128xf32, #tpu.memory_space<vmem>>, vector<1x16xf32>
    %581 = vector.broadcast %580 : vector<1x16xf32> to vector<8x16xf32>
    %582 = arith.addf %579, %581 : vector<8x16xf32>
    %c944 = arith.constant 944 : index
    %c0_211 = arith.constant 0 : index
    %583 = vector.load %arg3[%c944, %c0_211] : memref<1936x128xf32, #tpu.memory_space<vmem>>, vector<1x16xf32>
    %c952 = arith.constant 952 : index
    %c0_212 = arith.constant 0 : index
    %584 = vector.load %arg3[%c952, %c0_212] : memref<1936x128xf32, #tpu.memory_space<vmem>>, vector<1x16xf32>
    %cst_213 = arith.constant dense<0.000000e+00> : vector<16xf32>
    %585 = vector.multi_reduction <add>, %582, %cst_213 [0] : vector<8x16xf32> to vector<16xf32>
    %586 = vector.shape_cast %585 : vector<16xf32> to vector<1x16xf32>
    %cst_214 = arith.constant 8.000000e+00 : f32
    %587 = vector.broadcast %cst_214 : f32 to vector<1x16xf32>
    %588 = arith.divf %586, %587 : vector<1x16xf32>
    %589 = vector.broadcast %588 : vector<1x16xf32> to vector<8x16xf32>
    %590 = arith.subf %582, %589 : vector<8x16xf32>
    %591 = arith.mulf %590, %590 : vector<8x16xf32>
    %cst_215 = arith.constant dense<0.000000e+00> : vector<16xf32>
    %592 = vector.multi_reduction <add>, %591, %cst_215 [0] : vector<8x16xf32> to vector<16xf32>
    %593 = vector.shape_cast %592 : vector<16xf32> to vector<1x16xf32>
    %cst_216 = arith.constant 8.000000e+00 : f32
    %594 = vector.broadcast %cst_216 : f32 to vector<1x16xf32>
    %595 = arith.divf %593, %594 : vector<1x16xf32>
    %596 = vector.broadcast %588 : vector<1x16xf32> to vector<8x16xf32>
    %597 = arith.subf %582, %596 : vector<8x16xf32>
    %cst_217 = arith.constant 9.99999974E-6 : f32
    %598 = vector.broadcast %cst_217 : f32 to vector<1x16xf32>
    %599 = arith.addf %595, %598 : vector<1x16xf32>
    %600 = math.rsqrt %599 : vector<1x16xf32>
    %601 = vector.broadcast %600 : vector<1x16xf32> to vector<8x16xf32>
    %602 = arith.mulf %597, %601 : vector<8x16xf32>
    %603 = vector.broadcast %583 : vector<1x16xf32> to vector<8x16xf32>
    %604 = arith.mulf %602, %603 : vector<8x16xf32>
    %605 = vector.broadcast %584 : vector<1x16xf32> to vector<8x16xf32>
    %606 = arith.addf %604, %605 : vector<8x16xf32>
    %cst_218 = arith.constant 0.000000e+00 : f32
    %607 = vector.broadcast %cst_218 : f32 to vector<8x16xf32>
    %608 = arith.maximumf %606, %607 : vector<8x16xf32>
    %c960 = arith.constant 960 : index
    %c0_219 = arith.constant 0 : index
    %609 = vector.load %arg3[%c960, %c0_219] : memref<1936x128xf32, #tpu.memory_space<vmem>>, vector<16x8xf32>
    %cst_220 = arith.constant dense<0.000000e+00> : vector<8x8xf32>
    %610 = tpu.matmul %608, %609, %cst_220 {dimension_numbers = #tpu.dot_dimension_numbers<[1], [0], [0], [1], [0, 0, 1, 1], [], []>} : vector<8x16xf32>, vector<16x8xf32>, vector<8x8xf32> -> vector<8x8xf32>
    %c976 = arith.constant 976 : index
    %c0_221 = arith.constant 0 : index
    %611 = vector.load %arg3[%c976, %c0_221] : memref<1936x128xf32, #tpu.memory_space<vmem>>, vector<1x8xf32>
    %612 = vector.broadcast %611 : vector<1x8xf32> to vector<8x8xf32>
    %613 = arith.addf %610, %612 : vector<8x8xf32>
    %614 = arith.addf %577, %613 : vector<8x8xf32>
    %c984 = arith.constant 984 : index
    %c0_222 = arith.constant 0 : index
    %615 = vector.load %arg3[%c984, %c0_222] : memref<1936x128xf32, #tpu.memory_space<vmem>>, vector<1x8xf32>
    %c992 = arith.constant 992 : index
    %c0_223 = arith.constant 0 : index
    %616 = vector.load %arg3[%c992, %c0_223] : memref<1936x128xf32, #tpu.memory_space<vmem>>, vector<1x8xf32>
    %cst_224 = arith.constant dense<0.000000e+00> : vector<8xf32>
    %617 = vector.multi_reduction <add>, %614, %cst_224 [0] : vector<8x8xf32> to vector<8xf32>
    %618 = vector.shape_cast %617 : vector<8xf32> to vector<1x8xf32>
    %cst_225 = arith.constant 8.000000e+00 : f32
    %619 = vector.broadcast %cst_225 : f32 to vector<1x8xf32>
    %620 = arith.divf %618, %619 : vector<1x8xf32>
    %621 = vector.broadcast %620 : vector<1x8xf32> to vector<8x8xf32>
    %622 = arith.subf %614, %621 : vector<8x8xf32>
    %623 = arith.mulf %622, %622 : vector<8x8xf32>
    %cst_226 = arith.constant dense<0.000000e+00> : vector<8xf32>
    %624 = vector.multi_reduction <add>, %623, %cst_226 [0] : vector<8x8xf32> to vector<8xf32>
    %625 = vector.shape_cast %624 : vector<8xf32> to vector<1x8xf32>
    %cst_227 = arith.constant 8.000000e+00 : f32
    %626 = vector.broadcast %cst_227 : f32 to vector<1x8xf32>
    %627 = arith.divf %625, %626 : vector<1x8xf32>
    %628 = vector.broadcast %620 : vector<1x8xf32> to vector<8x8xf32>
    %629 = arith.subf %614, %628 : vector<8x8xf32>
    %cst_228 = arith.constant 9.99999974E-6 : f32
    %630 = vector.broadcast %cst_228 : f32 to vector<1x8xf32>
    %631 = arith.addf %627, %630 : vector<1x8xf32>
    %632 = math.rsqrt %631 : vector<1x8xf32>
    %633 = vector.broadcast %632 : vector<1x8xf32> to vector<8x8xf32>
    %634 = arith.mulf %629, %633 : vector<8x8xf32>
    %635 = vector.broadcast %615 : vector<1x8xf32> to vector<8x8xf32>
    %636 = arith.mulf %634, %635 : vector<8x8xf32>
    %637 = vector.broadcast %616 : vector<1x8xf32> to vector<8x8xf32>
    %638 = arith.addf %636, %637 : vector<8x8xf32>
    %cst_229 = arith.constant 0.000000e+00 : f32
    %639 = vector.broadcast %cst_229 : f32 to vector<8x8xf32>
    %640 = arith.maximumf %638, %639 : vector<8x8xf32>
    %641 = tpu.iota {dimensions = array<i32: 0>} : vector<8x16xi32>
    %642 = tpu.iota {dimensions = array<i32: 1>} : vector<8x16xi32>
    %643 = tpu.iota {dimensions = array<i32: 0>} : vector<8x16xi32>
    %644 = tpu.iota {dimensions = array<i32: 1>} : vector<8x16xi32>
    %645 = arith.cmpi eq, %642, %641 : vector<8x16xi32>
    %646 = arith.extui %645 : vector<8x16xi1> to vector<8x16xi32>
    %647 = arith.sitofp %646 : vector<8x16xi32> to vector<8x16xf32>
    %c8_i32 = arith.constant 8 : i32
    %648 = vector.broadcast %c8_i32 : i32 to vector<8x16xi32>
    %649 = arith.addi %643, %648 : vector<8x16xi32>
    %650 = arith.cmpi eq, %644, %649 : vector<8x16xi32>
    %651 = arith.extui %650 : vector<8x16xi1> to vector<8x16xi32>
    %652 = arith.sitofp %651 : vector<8x16xi32> to vector<8x16xf32>
    %cst_230 = arith.constant dense<0.000000e+00> : vector<8x16xf32>
    %653 = tpu.matmul %640, %647, %cst_230 {dimension_numbers = #tpu.dot_dimension_numbers<[1], [0], [0], [1], [0, 0, 1, 1], [], []>} : vector<8x8xf32>, vector<8x16xf32>, vector<8x16xf32> -> vector<8x16xf32>
    %cst_231 = arith.constant dense<0.000000e+00> : vector<8x16xf32>
    %654 = tpu.matmul %445, %652, %cst_231 {dimension_numbers = #tpu.dot_dimension_numbers<[1], [0], [0], [1], [0, 0, 1, 1], [], []>} : vector<8x8xf32>, vector<8x16xf32>, vector<8x16xf32> -> vector<8x16xf32>
    %655 = arith.addf %653, %654 : vector<8x16xf32>
    %656 = vector.extract_strided_slice %14 {offsets = [0, 32], sizes = [8, 16], strides = [1, 1]} : vector<8x80xf32> to vector<8x16xf32>
    %c1000 = arith.constant 1000 : index
    %c0_232 = arith.constant 0 : index
    %657 = vector.load %arg3[%c1000, %c0_232] : memref<1936x128xf32, #tpu.memory_space<vmem>>, vector<8x16xf32>
    %cst_233 = arith.constant dense<0.000000e+00> : vector<8x16xf32>
    %658 = tpu.matmul %9, %657, %cst_233 {dimension_numbers = #tpu.dot_dimension_numbers<[1], [0], [0], [1], [0, 0, 1, 1], [], []>} : vector<8x8xf32>, vector<8x16xf32>, vector<8x16xf32> -> vector<8x16xf32>
    %659 = arith.addf %655, %658 : vector<8x16xf32>
    %c1008 = arith.constant 1008 : index
    %c0_234 = arith.constant 0 : index
    %660 = vector.load %arg3[%c1008, %c0_234] : memref<1936x128xf32, #tpu.memory_space<vmem>>, vector<1x16xf32>
    %661 = vector.broadcast %660 : vector<1x16xf32> to vector<8x16xf32>
    %662 = arith.addf %659, %661 : vector<8x16xf32>
    %c1016 = arith.constant 1016 : index
    %c0_235 = arith.constant 0 : index
    %663 = vector.load %arg3[%c1016, %c0_235] : memref<1936x128xf32, #tpu.memory_space<vmem>>, vector<16x32xf32>
    %cst_236 = arith.constant dense<0.000000e+00> : vector<8x32xf32>
    %664 = tpu.matmul %662, %663, %cst_236 {dimension_numbers = #tpu.dot_dimension_numbers<[1], [0], [0], [1], [0, 0, 1, 1], [], []>} : vector<8x16xf32>, vector<16x32xf32>, vector<8x32xf32> -> vector<8x32xf32>
    %c1032 = arith.constant 1032 : index
    %c0_237 = arith.constant 0 : index
    %665 = vector.load %arg3[%c1032, %c0_237] : memref<1936x128xf32, #tpu.memory_space<vmem>>, vector<1x32xf32>
    %666 = vector.broadcast %665 : vector<1x32xf32> to vector<8x32xf32>
    %667 = arith.addf %664, %666 : vector<8x32xf32>
    %c1040 = arith.constant 1040 : index
    %c0_238 = arith.constant 0 : index
    %668 = vector.load %arg3[%c1040, %c0_238] : memref<1936x128xf32, #tpu.memory_space<vmem>>, vector<1x32xf32>
    %c1048 = arith.constant 1048 : index
    %c0_239 = arith.constant 0 : index
    %669 = vector.load %arg3[%c1048, %c0_239] : memref<1936x128xf32, #tpu.memory_space<vmem>>, vector<1x32xf32>
    %cst_240 = arith.constant dense<0.000000e+00> : vector<32xf32>
    %670 = vector.multi_reduction <add>, %667, %cst_240 [0] : vector<8x32xf32> to vector<32xf32>
    %671 = vector.shape_cast %670 : vector<32xf32> to vector<1x32xf32>
    %cst_241 = arith.constant 8.000000e+00 : f32
    %672 = vector.broadcast %cst_241 : f32 to vector<1x32xf32>
    %673 = arith.divf %671, %672 : vector<1x32xf32>
    %674 = vector.broadcast %673 : vector<1x32xf32> to vector<8x32xf32>
    %675 = arith.subf %667, %674 : vector<8x32xf32>
    %676 = arith.mulf %675, %675 : vector<8x32xf32>
    %cst_242 = arith.constant dense<0.000000e+00> : vector<32xf32>
    %677 = vector.multi_reduction <add>, %676, %cst_242 [0] : vector<8x32xf32> to vector<32xf32>
    %678 = vector.shape_cast %677 : vector<32xf32> to vector<1x32xf32>
    %cst_243 = arith.constant 8.000000e+00 : f32
    %679 = vector.broadcast %cst_243 : f32 to vector<1x32xf32>
    %680 = arith.divf %678, %679 : vector<1x32xf32>
    %681 = vector.broadcast %673 : vector<1x32xf32> to vector<8x32xf32>
    %682 = arith.subf %667, %681 : vector<8x32xf32>
    %cst_244 = arith.constant 9.99999974E-6 : f32
    %683 = vector.broadcast %cst_244 : f32 to vector<1x32xf32>
    %684 = arith.addf %680, %683 : vector<1x32xf32>
    %685 = math.rsqrt %684 : vector<1x32xf32>
    %686 = vector.broadcast %685 : vector<1x32xf32> to vector<8x32xf32>
    %687 = arith.mulf %682, %686 : vector<8x32xf32>
    %688 = vector.broadcast %668 : vector<1x32xf32> to vector<8x32xf32>
    %689 = arith.mulf %687, %688 : vector<8x32xf32>
    %690 = vector.broadcast %669 : vector<1x32xf32> to vector<8x32xf32>
    %691 = arith.addf %689, %690 : vector<8x32xf32>
    %cst_245 = arith.constant 0.000000e+00 : f32
    %692 = vector.broadcast %cst_245 : f32 to vector<8x32xf32>
    %693 = arith.maximumf %691, %692 : vector<8x32xf32>
    %c1056 = arith.constant 1056 : index
    %c0_246 = arith.constant 0 : index
    %694 = vector.load %arg3[%c1056, %c0_246] : memref<1936x128xf32, #tpu.memory_space<vmem>>, vector<32x16xf32>
    %cst_247 = arith.constant dense<0.000000e+00> : vector<8x16xf32>
    %695 = tpu.matmul %693, %694, %cst_247 {dimension_numbers = #tpu.dot_dimension_numbers<[1], [0], [0], [1], [0, 0, 1, 1], [], []>} : vector<8x32xf32>, vector<32x16xf32>, vector<8x16xf32> -> vector<8x16xf32>
    %c1088 = arith.constant 1088 : index
    %c0_248 = arith.constant 0 : index
    %696 = vector.load %arg3[%c1088, %c0_248] : memref<1936x128xf32, #tpu.memory_space<vmem>>, vector<1x16xf32>
    %697 = vector.broadcast %696 : vector<1x16xf32> to vector<8x16xf32>
    %698 = arith.addf %695, %697 : vector<8x16xf32>
    %699 = arith.addf %662, %698 : vector<8x16xf32>
    %c1096 = arith.constant 1096 : index
    %c0_249 = arith.constant 0 : index
    %700 = vector.load %arg3[%c1096, %c0_249] : memref<1936x128xf32, #tpu.memory_space<vmem>>, vector<1x16xf32>
    %c1104 = arith.constant 1104 : index
    %c0_250 = arith.constant 0 : index
    %701 = vector.load %arg3[%c1104, %c0_250] : memref<1936x128xf32, #tpu.memory_space<vmem>>, vector<1x16xf32>
    %cst_251 = arith.constant dense<0.000000e+00> : vector<16xf32>
    %702 = vector.multi_reduction <add>, %699, %cst_251 [0] : vector<8x16xf32> to vector<16xf32>
    %703 = vector.shape_cast %702 : vector<16xf32> to vector<1x16xf32>
    %cst_252 = arith.constant 8.000000e+00 : f32
    %704 = vector.broadcast %cst_252 : f32 to vector<1x16xf32>
    %705 = arith.divf %703, %704 : vector<1x16xf32>
    %706 = vector.broadcast %705 : vector<1x16xf32> to vector<8x16xf32>
    %707 = arith.subf %699, %706 : vector<8x16xf32>
    %708 = arith.mulf %707, %707 : vector<8x16xf32>
    %cst_253 = arith.constant dense<0.000000e+00> : vector<16xf32>
    %709 = vector.multi_reduction <add>, %708, %cst_253 [0] : vector<8x16xf32> to vector<16xf32>
    %710 = vector.shape_cast %709 : vector<16xf32> to vector<1x16xf32>
    %cst_254 = arith.constant 8.000000e+00 : f32
    %711 = vector.broadcast %cst_254 : f32 to vector<1x16xf32>
    %712 = arith.divf %710, %711 : vector<1x16xf32>
    %713 = vector.broadcast %705 : vector<1x16xf32> to vector<8x16xf32>
    %714 = arith.subf %699, %713 : vector<8x16xf32>
    %cst_255 = arith.constant 9.99999974E-6 : f32
    %715 = vector.broadcast %cst_255 : f32 to vector<1x16xf32>
    %716 = arith.addf %712, %715 : vector<1x16xf32>
    %717 = math.rsqrt %716 : vector<1x16xf32>
    %718 = vector.broadcast %717 : vector<1x16xf32> to vector<8x16xf32>
    %719 = arith.mulf %714, %718 : vector<8x16xf32>
    %720 = vector.broadcast %700 : vector<1x16xf32> to vector<8x16xf32>
    %721 = arith.mulf %719, %720 : vector<8x16xf32>
    %722 = vector.broadcast %701 : vector<1x16xf32> to vector<8x16xf32>
    %723 = arith.addf %721, %722 : vector<8x16xf32>
    %cst_256 = arith.constant 0.000000e+00 : f32
    %724 = vector.broadcast %cst_256 : f32 to vector<8x16xf32>
    %725 = arith.maximumf %723, %724 : vector<8x16xf32>
    %726 = arith.addf %725, %656 : vector<8x16xf32>
    %c1112 = arith.constant 1112 : index
    %c0_257 = arith.constant 0 : index
    %727 = vector.load %arg3[%c1112, %c0_257] : memref<1936x128xf32, #tpu.memory_space<vmem>>, vector<1x16xf32>
    %c1120 = arith.constant 1120 : index
    %c0_258 = arith.constant 0 : index
    %728 = vector.load %arg3[%c1120, %c0_258] : memref<1936x128xf32, #tpu.memory_space<vmem>>, vector<1x16xf32>
    %cst_259 = arith.constant dense<0.000000e+00> : vector<8xf32>
    %729 = vector.multi_reduction <add>, %726, %cst_259 [1] : vector<8x16xf32> to vector<8xf32>
    %730 = vector.shape_cast %729 : vector<8xf32> to vector<8x1xf32>
    %cst_260 = arith.constant 1.600000e+01 : f32
    %731 = vector.broadcast %cst_260 : f32 to vector<8x1xf32>
    %732 = arith.divf %730, %731 : vector<8x1xf32>
    %733 = vector.broadcast %732 : vector<8x1xf32> to vector<8x16xf32>
    %734 = arith.subf %726, %733 : vector<8x16xf32>
    %735 = arith.mulf %734, %734 : vector<8x16xf32>
    %cst_261 = arith.constant dense<0.000000e+00> : vector<8xf32>
    %736 = vector.multi_reduction <add>, %735, %cst_261 [1] : vector<8x16xf32> to vector<8xf32>
    %737 = vector.shape_cast %736 : vector<8xf32> to vector<8x1xf32>
    %cst_262 = arith.constant 1.600000e+01 : f32
    %738 = vector.broadcast %cst_262 : f32 to vector<8x1xf32>
    %739 = arith.divf %737, %738 : vector<8x1xf32>
    %740 = vector.broadcast %732 : vector<8x1xf32> to vector<8x16xf32>
    %741 = arith.subf %726, %740 : vector<8x16xf32>
    %cst_263 = arith.constant 9.99999974E-6 : f32
    %742 = vector.broadcast %cst_263 : f32 to vector<8x1xf32>
    %743 = arith.addf %739, %742 : vector<8x1xf32>
    %744 = math.rsqrt %743 : vector<8x1xf32>
    %745 = vector.broadcast %744 : vector<8x1xf32> to vector<8x16xf32>
    %746 = arith.mulf %741, %745 : vector<8x16xf32>
    %747 = vector.broadcast %727 : vector<1x16xf32> to vector<8x16xf32>
    %748 = arith.mulf %746, %747 : vector<8x16xf32>
    %749 = vector.broadcast %728 : vector<1x16xf32> to vector<8x16xf32>
    %750 = arith.addf %748, %749 : vector<8x16xf32>
    %c1128 = arith.constant 1128 : index
    %c0_264 = arith.constant 0 : index
    %751 = vector.load %arg3[%c1128, %c0_264] : memref<1936x128xf32, #tpu.memory_space<vmem>>, vector<16x64xf32>
    %cst_265 = arith.constant dense<0.000000e+00> : vector<8x64xf32>
    %752 = tpu.matmul %750, %751, %cst_265 {dimension_numbers = #tpu.dot_dimension_numbers<[1], [0], [0], [1], [0, 0, 1, 1], [], []>} : vector<8x16xf32>, vector<16x64xf32>, vector<8x64xf32> -> vector<8x64xf32>
    %c1144 = arith.constant 1144 : index
    %c0_266 = arith.constant 0 : index
    %753 = vector.load %arg3[%c1144, %c0_266] : memref<1936x128xf32, #tpu.memory_space<vmem>>, vector<1x64xf32>
    %754 = vector.broadcast %753 : vector<1x64xf32> to vector<8x64xf32>
    %755 = arith.addf %752, %754 : vector<8x64xf32>
    %cst_267 = arith.constant 0.000000e+00 : f32
    %756 = vector.broadcast %cst_267 : f32 to vector<8x64xf32>
    %757 = arith.maximumf %755, %756 : vector<8x64xf32>
    %c1152 = arith.constant 1152 : index
    %c0_268 = arith.constant 0 : index
    %758 = vector.load %arg3[%c1152, %c0_268] : memref<1936x128xf32, #tpu.memory_space<vmem>>, vector<64x16xf32>
    %cst_269 = arith.constant dense<0.000000e+00> : vector<8x16xf32>
    %759 = tpu.matmul %757, %758, %cst_269 {dimension_numbers = #tpu.dot_dimension_numbers<[1], [0], [0], [1], [0, 0, 1, 1], [], []>} : vector<8x64xf32>, vector<64x16xf32>, vector<8x16xf32> -> vector<8x16xf32>
    %c1216 = arith.constant 1216 : index
    %c0_270 = arith.constant 0 : index
    %760 = vector.load %arg3[%c1216, %c0_270] : memref<1936x128xf32, #tpu.memory_space<vmem>>, vector<1x16xf32>
    %761 = vector.broadcast %760 : vector<1x16xf32> to vector<8x16xf32>
    %762 = arith.addf %759, %761 : vector<8x16xf32>
    %763 = arith.addf %750, %762 : vector<8x16xf32>
    %c1224 = arith.constant 1224 : index
    %c0_271 = arith.constant 0 : index
    %764 = vector.load %arg3[%c1224, %c0_271] : memref<1936x128xf32, #tpu.memory_space<vmem>>, vector<1x16xf32>
    %c1232 = arith.constant 1232 : index
    %c0_272 = arith.constant 0 : index
    %765 = vector.load %arg3[%c1232, %c0_272] : memref<1936x128xf32, #tpu.memory_space<vmem>>, vector<1x16xf32>
    %cst_273 = arith.constant dense<0.000000e+00> : vector<8xf32>
    %766 = vector.multi_reduction <add>, %763, %cst_273 [1] : vector<8x16xf32> to vector<8xf32>
    %767 = vector.shape_cast %766 : vector<8xf32> to vector<8x1xf32>
    %cst_274 = arith.constant 1.600000e+01 : f32
    %768 = vector.broadcast %cst_274 : f32 to vector<8x1xf32>
    %769 = arith.divf %767, %768 : vector<8x1xf32>
    %770 = vector.broadcast %769 : vector<8x1xf32> to vector<8x16xf32>
    %771 = arith.subf %763, %770 : vector<8x16xf32>
    %772 = arith.mulf %771, %771 : vector<8x16xf32>
    %cst_275 = arith.constant dense<0.000000e+00> : vector<8xf32>
    %773 = vector.multi_reduction <add>, %772, %cst_275 [1] : vector<8x16xf32> to vector<8xf32>
    %774 = vector.shape_cast %773 : vector<8xf32> to vector<8x1xf32>
    %cst_276 = arith.constant 1.600000e+01 : f32
    %775 = vector.broadcast %cst_276 : f32 to vector<8x1xf32>
    %776 = arith.divf %774, %775 : vector<8x1xf32>
    %777 = vector.broadcast %769 : vector<8x1xf32> to vector<8x16xf32>
    %778 = arith.subf %763, %777 : vector<8x16xf32>
    %cst_277 = arith.constant 9.99999974E-6 : f32
    %779 = vector.broadcast %cst_277 : f32 to vector<8x1xf32>
    %780 = arith.addf %776, %779 : vector<8x1xf32>
    %781 = math.rsqrt %780 : vector<8x1xf32>
    %782 = vector.broadcast %781 : vector<8x1xf32> to vector<8x16xf32>
    %783 = arith.mulf %778, %782 : vector<8x16xf32>
    %784 = vector.broadcast %764 : vector<1x16xf32> to vector<8x16xf32>
    %785 = arith.mulf %783, %784 : vector<8x16xf32>
    %786 = vector.broadcast %765 : vector<1x16xf32> to vector<8x16xf32>
    %787 = arith.addf %785, %786 : vector<8x16xf32>
    %c1240 = arith.constant 1240 : index
    %c0_278 = arith.constant 0 : index
    %788 = vector.load %arg3[%c1240, %c0_278] : memref<1936x128xf32, #tpu.memory_space<vmem>>, vector<16x32xf32>
    %cst_279 = arith.constant dense<0.000000e+00> : vector<8x32xf32>
    %789 = tpu.matmul %787, %788, %cst_279 {dimension_numbers = #tpu.dot_dimension_numbers<[1], [0], [0], [1], [0, 0, 1, 1], [], []>} : vector<8x16xf32>, vector<16x32xf32>, vector<8x32xf32> -> vector<8x32xf32>
    %c1256 = arith.constant 1256 : index
    %c0_280 = arith.constant 0 : index
    %790 = vector.load %arg3[%c1256, %c0_280] : memref<1936x128xf32, #tpu.memory_space<vmem>>, vector<1x32xf32>
    %791 = vector.broadcast %790 : vector<1x32xf32> to vector<8x32xf32>
    %792 = arith.addf %789, %791 : vector<8x32xf32>
    %c1264 = arith.constant 1264 : index
    %c0_281 = arith.constant 0 : index
    %793 = vector.load %arg3[%c1264, %c0_281] : memref<1936x128xf32, #tpu.memory_space<vmem>>, vector<1x32xf32>
    %c1272 = arith.constant 1272 : index
    %c0_282 = arith.constant 0 : index
    %794 = vector.load %arg3[%c1272, %c0_282] : memref<1936x128xf32, #tpu.memory_space<vmem>>, vector<1x32xf32>
    %cst_283 = arith.constant dense<0.000000e+00> : vector<32xf32>
    %795 = vector.multi_reduction <add>, %792, %cst_283 [0] : vector<8x32xf32> to vector<32xf32>
    %796 = vector.shape_cast %795 : vector<32xf32> to vector<1x32xf32>
    %cst_284 = arith.constant 8.000000e+00 : f32
    %797 = vector.broadcast %cst_284 : f32 to vector<1x32xf32>
    %798 = arith.divf %796, %797 : vector<1x32xf32>
    %799 = vector.broadcast %798 : vector<1x32xf32> to vector<8x32xf32>
    %800 = arith.subf %792, %799 : vector<8x32xf32>
    %801 = arith.mulf %800, %800 : vector<8x32xf32>
    %cst_285 = arith.constant dense<0.000000e+00> : vector<32xf32>
    %802 = vector.multi_reduction <add>, %801, %cst_285 [0] : vector<8x32xf32> to vector<32xf32>
    %803 = vector.shape_cast %802 : vector<32xf32> to vector<1x32xf32>
    %cst_286 = arith.constant 8.000000e+00 : f32
    %804 = vector.broadcast %cst_286 : f32 to vector<1x32xf32>
    %805 = arith.divf %803, %804 : vector<1x32xf32>
    %806 = vector.broadcast %798 : vector<1x32xf32> to vector<8x32xf32>
    %807 = arith.subf %792, %806 : vector<8x32xf32>
    %cst_287 = arith.constant 9.99999974E-6 : f32
    %808 = vector.broadcast %cst_287 : f32 to vector<1x32xf32>
    %809 = arith.addf %805, %808 : vector<1x32xf32>
    %810 = math.rsqrt %809 : vector<1x32xf32>
    %811 = vector.broadcast %810 : vector<1x32xf32> to vector<8x32xf32>
    %812 = arith.mulf %807, %811 : vector<8x32xf32>
    %813 = vector.broadcast %793 : vector<1x32xf32> to vector<8x32xf32>
    %814 = arith.mulf %812, %813 : vector<8x32xf32>
    %815 = vector.broadcast %794 : vector<1x32xf32> to vector<8x32xf32>
    %816 = arith.addf %814, %815 : vector<8x32xf32>
    %cst_288 = arith.constant 0.000000e+00 : f32
    %817 = vector.broadcast %cst_288 : f32 to vector<8x32xf32>
    %818 = arith.maximumf %816, %817 : vector<8x32xf32>
    %c1280 = arith.constant 1280 : index
    %c0_289 = arith.constant 0 : index
    %819 = vector.load %arg3[%c1280, %c0_289] : memref<1936x128xf32, #tpu.memory_space<vmem>>, vector<32x16xf32>
    %cst_290 = arith.constant dense<0.000000e+00> : vector<8x16xf32>
    %820 = tpu.matmul %818, %819, %cst_290 {dimension_numbers = #tpu.dot_dimension_numbers<[1], [0], [0], [1], [0, 0, 1, 1], [], []>} : vector<8x32xf32>, vector<32x16xf32>, vector<8x16xf32> -> vector<8x16xf32>
    %c1312 = arith.constant 1312 : index
    %c0_291 = arith.constant 0 : index
    %821 = vector.load %arg3[%c1312, %c0_291] : memref<1936x128xf32, #tpu.memory_space<vmem>>, vector<1x16xf32>
    %822 = vector.broadcast %821 : vector<1x16xf32> to vector<8x16xf32>
    %823 = arith.addf %820, %822 : vector<8x16xf32>
    %824 = arith.addf %787, %823 : vector<8x16xf32>
    %c1320 = arith.constant 1320 : index
    %c0_292 = arith.constant 0 : index
    %825 = vector.load %arg3[%c1320, %c0_292] : memref<1936x128xf32, #tpu.memory_space<vmem>>, vector<1x16xf32>
    %c1328 = arith.constant 1328 : index
    %c0_293 = arith.constant 0 : index
    %826 = vector.load %arg3[%c1328, %c0_293] : memref<1936x128xf32, #tpu.memory_space<vmem>>, vector<1x16xf32>
    %cst_294 = arith.constant dense<0.000000e+00> : vector<16xf32>
    %827 = vector.multi_reduction <add>, %824, %cst_294 [0] : vector<8x16xf32> to vector<16xf32>
    %828 = vector.shape_cast %827 : vector<16xf32> to vector<1x16xf32>
    %cst_295 = arith.constant 8.000000e+00 : f32
    %829 = vector.broadcast %cst_295 : f32 to vector<1x16xf32>
    %830 = arith.divf %828, %829 : vector<1x16xf32>
    %831 = vector.broadcast %830 : vector<1x16xf32> to vector<8x16xf32>
    %832 = arith.subf %824, %831 : vector<8x16xf32>
    %833 = arith.mulf %832, %832 : vector<8x16xf32>
    %cst_296 = arith.constant dense<0.000000e+00> : vector<16xf32>
    %834 = vector.multi_reduction <add>, %833, %cst_296 [0] : vector<8x16xf32> to vector<16xf32>
    %835 = vector.shape_cast %834 : vector<16xf32> to vector<1x16xf32>
    %cst_297 = arith.constant 8.000000e+00 : f32
    %836 = vector.broadcast %cst_297 : f32 to vector<1x16xf32>
    %837 = arith.divf %835, %836 : vector<1x16xf32>
    %838 = vector.broadcast %830 : vector<1x16xf32> to vector<8x16xf32>
    %839 = arith.subf %824, %838 : vector<8x16xf32>
    %cst_298 = arith.constant 9.99999974E-6 : f32
    %840 = vector.broadcast %cst_298 : f32 to vector<1x16xf32>
    %841 = arith.addf %837, %840 : vector<1x16xf32>
    %842 = math.rsqrt %841 : vector<1x16xf32>
    %843 = vector.broadcast %842 : vector<1x16xf32> to vector<8x16xf32>
    %844 = arith.mulf %839, %843 : vector<8x16xf32>
    %845 = vector.broadcast %825 : vector<1x16xf32> to vector<8x16xf32>
    %846 = arith.mulf %844, %845 : vector<8x16xf32>
    %847 = vector.broadcast %826 : vector<1x16xf32> to vector<8x16xf32>
    %848 = arith.addf %846, %847 : vector<8x16xf32>
    %cst_299 = arith.constant 0.000000e+00 : f32
    %849 = vector.broadcast %cst_299 : f32 to vector<8x16xf32>
    %850 = arith.maximumf %848, %849 : vector<8x16xf32>
    %851 = tpu.iota {dimensions = array<i32: 0>} : vector<16x32xi32>
    %852 = tpu.iota {dimensions = array<i32: 1>} : vector<16x32xi32>
    %853 = tpu.iota {dimensions = array<i32: 0>} : vector<16x32xi32>
    %854 = tpu.iota {dimensions = array<i32: 1>} : vector<16x32xi32>
    %855 = arith.cmpi eq, %852, %851 : vector<16x32xi32>
    %856 = arith.extui %855 : vector<16x32xi1> to vector<16x32xi32>
    %857 = arith.sitofp %856 : vector<16x32xi32> to vector<16x32xf32>
    %c16_i32 = arith.constant 16 : i32
    %858 = vector.broadcast %c16_i32 : i32 to vector<16x32xi32>
    %859 = arith.addi %853, %858 : vector<16x32xi32>
    %860 = arith.cmpi eq, %854, %859 : vector<16x32xi32>
    %861 = arith.extui %860 : vector<16x32xi1> to vector<16x32xi32>
    %862 = arith.sitofp %861 : vector<16x32xi32> to vector<16x32xf32>
    %cst_300 = arith.constant dense<0.000000e+00> : vector<8x32xf32>
    %863 = tpu.matmul %850, %857, %cst_300 {dimension_numbers = #tpu.dot_dimension_numbers<[1], [0], [0], [1], [0, 0, 1, 1], [], []>} : vector<8x16xf32>, vector<16x32xf32>, vector<8x32xf32> -> vector<8x32xf32>
    %cst_301 = arith.constant dense<0.000000e+00> : vector<8x32xf32>
    %864 = tpu.matmul %248, %862, %cst_301 {dimension_numbers = #tpu.dot_dimension_numbers<[1], [0], [0], [1], [0, 0, 1, 1], [], []>} : vector<8x16xf32>, vector<16x32xf32>, vector<8x32xf32> -> vector<8x32xf32>
    %865 = arith.addf %863, %864 : vector<8x32xf32>
    %866 = vector.extract_strided_slice %14 {offsets = [0, 48], sizes = [8, 32], strides = [1, 1]} : vector<8x80xf32> to vector<8x32xf32>
    %c1336 = arith.constant 1336 : index
    %c0_302 = arith.constant 0 : index
    %867 = vector.load %arg3[%c1336, %c0_302] : memref<1936x128xf32, #tpu.memory_space<vmem>>, vector<8x32xf32>
    %cst_303 = arith.constant dense<0.000000e+00> : vector<8x32xf32>
    %868 = tpu.matmul %9, %867, %cst_303 {dimension_numbers = #tpu.dot_dimension_numbers<[1], [0], [0], [1], [0, 0, 1, 1], [], []>} : vector<8x8xf32>, vector<8x32xf32>, vector<8x32xf32> -> vector<8x32xf32>
    %869 = arith.addf %865, %868 : vector<8x32xf32>
    %c1344 = arith.constant 1344 : index
    %c0_304 = arith.constant 0 : index
    %870 = vector.load %arg3[%c1344, %c0_304] : memref<1936x128xf32, #tpu.memory_space<vmem>>, vector<1x32xf32>
    %871 = vector.broadcast %870 : vector<1x32xf32> to vector<8x32xf32>
    %872 = arith.addf %869, %871 : vector<8x32xf32>
    %c1352 = arith.constant 1352 : index
    %c0_305 = arith.constant 0 : index
    %873 = vector.load %arg3[%c1352, %c0_305] : memref<1936x128xf32, #tpu.memory_space<vmem>>, vector<32x64xf32>
    %cst_306 = arith.constant dense<0.000000e+00> : vector<8x64xf32>
    %874 = tpu.matmul %872, %873, %cst_306 {dimension_numbers = #tpu.dot_dimension_numbers<[1], [0], [0], [1], [0, 0, 1, 1], [], []>} : vector<8x32xf32>, vector<32x64xf32>, vector<8x64xf32> -> vector<8x64xf32>
    %c1384 = arith.constant 1384 : index
    %c0_307 = arith.constant 0 : index
    %875 = vector.load %arg3[%c1384, %c0_307] : memref<1936x128xf32, #tpu.memory_space<vmem>>, vector<1x64xf32>
    %876 = vector.broadcast %875 : vector<1x64xf32> to vector<8x64xf32>
    %877 = arith.addf %874, %876 : vector<8x64xf32>
    %c1392 = arith.constant 1392 : index
    %c0_308 = arith.constant 0 : index
    %878 = vector.load %arg3[%c1392, %c0_308] : memref<1936x128xf32, #tpu.memory_space<vmem>>, vector<1x64xf32>
    %c1400 = arith.constant 1400 : index
    %c0_309 = arith.constant 0 : index
    %879 = vector.load %arg3[%c1400, %c0_309] : memref<1936x128xf32, #tpu.memory_space<vmem>>, vector<1x64xf32>
    %cst_310 = arith.constant dense<0.000000e+00> : vector<64xf32>
    %880 = vector.multi_reduction <add>, %877, %cst_310 [0] : vector<8x64xf32> to vector<64xf32>
    %881 = vector.shape_cast %880 : vector<64xf32> to vector<1x64xf32>
    %cst_311 = arith.constant 8.000000e+00 : f32
    %882 = vector.broadcast %cst_311 : f32 to vector<1x64xf32>
    %883 = arith.divf %881, %882 : vector<1x64xf32>
    %884 = vector.broadcast %883 : vector<1x64xf32> to vector<8x64xf32>
    %885 = arith.subf %877, %884 : vector<8x64xf32>
    %886 = arith.mulf %885, %885 : vector<8x64xf32>
    %cst_312 = arith.constant dense<0.000000e+00> : vector<64xf32>
    %887 = vector.multi_reduction <add>, %886, %cst_312 [0] : vector<8x64xf32> to vector<64xf32>
    %888 = vector.shape_cast %887 : vector<64xf32> to vector<1x64xf32>
    %cst_313 = arith.constant 8.000000e+00 : f32
    %889 = vector.broadcast %cst_313 : f32 to vector<1x64xf32>
    %890 = arith.divf %888, %889 : vector<1x64xf32>
    %891 = vector.broadcast %883 : vector<1x64xf32> to vector<8x64xf32>
    %892 = arith.subf %877, %891 : vector<8x64xf32>
    %cst_314 = arith.constant 9.99999974E-6 : f32
    %893 = vector.broadcast %cst_314 : f32 to vector<1x64xf32>
    %894 = arith.addf %890, %893 : vector<1x64xf32>
    %895 = math.rsqrt %894 : vector<1x64xf32>
    %896 = vector.broadcast %895 : vector<1x64xf32> to vector<8x64xf32>
    %897 = arith.mulf %892, %896 : vector<8x64xf32>
    %898 = vector.broadcast %878 : vector<1x64xf32> to vector<8x64xf32>
    %899 = arith.mulf %897, %898 : vector<8x64xf32>
    %900 = vector.broadcast %879 : vector<1x64xf32> to vector<8x64xf32>
    %901 = arith.addf %899, %900 : vector<8x64xf32>
    %cst_315 = arith.constant 0.000000e+00 : f32
    %902 = vector.broadcast %cst_315 : f32 to vector<8x64xf32>
    %903 = arith.maximumf %901, %902 : vector<8x64xf32>
    %c1408 = arith.constant 1408 : index
    %c0_316 = arith.constant 0 : index
    %904 = vector.load %arg3[%c1408, %c0_316] : memref<1936x128xf32, #tpu.memory_space<vmem>>, vector<64x32xf32>
    %cst_317 = arith.constant dense<0.000000e+00> : vector<8x32xf32>
    %905 = tpu.matmul %903, %904, %cst_317 {dimension_numbers = #tpu.dot_dimension_numbers<[1], [0], [0], [1], [0, 0, 1, 1], [], []>} : vector<8x64xf32>, vector<64x32xf32>, vector<8x32xf32> -> vector<8x32xf32>
    %c1472 = arith.constant 1472 : index
    %c0_318 = arith.constant 0 : index
    %906 = vector.load %arg3[%c1472, %c0_318] : memref<1936x128xf32, #tpu.memory_space<vmem>>, vector<1x32xf32>
    %907 = vector.broadcast %906 : vector<1x32xf32> to vector<8x32xf32>
    %908 = arith.addf %905, %907 : vector<8x32xf32>
    %909 = arith.addf %872, %908 : vector<8x32xf32>
    %c1480 = arith.constant 1480 : index
    %c0_319 = arith.constant 0 : index
    %910 = vector.load %arg3[%c1480, %c0_319] : memref<1936x128xf32, #tpu.memory_space<vmem>>, vector<1x32xf32>
    %c1488 = arith.constant 1488 : index
    %c0_320 = arith.constant 0 : index
    %911 = vector.load %arg3[%c1488, %c0_320] : memref<1936x128xf32, #tpu.memory_space<vmem>>, vector<1x32xf32>
    %cst_321 = arith.constant dense<0.000000e+00> : vector<32xf32>
    %912 = vector.multi_reduction <add>, %909, %cst_321 [0] : vector<8x32xf32> to vector<32xf32>
    %913 = vector.shape_cast %912 : vector<32xf32> to vector<1x32xf32>
    %cst_322 = arith.constant 8.000000e+00 : f32
    %914 = vector.broadcast %cst_322 : f32 to vector<1x32xf32>
    %915 = arith.divf %913, %914 : vector<1x32xf32>
    %916 = vector.broadcast %915 : vector<1x32xf32> to vector<8x32xf32>
    %917 = arith.subf %909, %916 : vector<8x32xf32>
    %918 = arith.mulf %917, %917 : vector<8x32xf32>
    %cst_323 = arith.constant dense<0.000000e+00> : vector<32xf32>
    %919 = vector.multi_reduction <add>, %918, %cst_323 [0] : vector<8x32xf32> to vector<32xf32>
    %920 = vector.shape_cast %919 : vector<32xf32> to vector<1x32xf32>
    %cst_324 = arith.constant 8.000000e+00 : f32
    %921 = vector.broadcast %cst_324 : f32 to vector<1x32xf32>
    %922 = arith.divf %920, %921 : vector<1x32xf32>
    %923 = vector.broadcast %915 : vector<1x32xf32> to vector<8x32xf32>
    %924 = arith.subf %909, %923 : vector<8x32xf32>
    %cst_325 = arith.constant 9.99999974E-6 : f32
    %925 = vector.broadcast %cst_325 : f32 to vector<1x32xf32>
    %926 = arith.addf %922, %925 : vector<1x32xf32>
    %927 = math.rsqrt %926 : vector<1x32xf32>
    %928 = vector.broadcast %927 : vector<1x32xf32> to vector<8x32xf32>
    %929 = arith.mulf %924, %928 : vector<8x32xf32>
    %930 = vector.broadcast %910 : vector<1x32xf32> to vector<8x32xf32>
    %931 = arith.mulf %929, %930 : vector<8x32xf32>
    %932 = vector.broadcast %911 : vector<1x32xf32> to vector<8x32xf32>
    %933 = arith.addf %931, %932 : vector<8x32xf32>
    %cst_326 = arith.constant 0.000000e+00 : f32
    %934 = vector.broadcast %cst_326 : f32 to vector<8x32xf32>
    %935 = arith.maximumf %933, %934 : vector<8x32xf32>
    %936 = arith.addf %935, %866 : vector<8x32xf32>
    %c1496 = arith.constant 1496 : index
    %c0_327 = arith.constant 0 : index
    %937 = vector.load %arg3[%c1496, %c0_327] : memref<1936x128xf32, #tpu.memory_space<vmem>>, vector<1x32xf32>
    %c1504 = arith.constant 1504 : index
    %c0_328 = arith.constant 0 : index
    %938 = vector.load %arg3[%c1504, %c0_328] : memref<1936x128xf32, #tpu.memory_space<vmem>>, vector<1x32xf32>
    %cst_329 = arith.constant dense<0.000000e+00> : vector<8xf32>
    %939 = vector.multi_reduction <add>, %936, %cst_329 [1] : vector<8x32xf32> to vector<8xf32>
    %940 = vector.shape_cast %939 : vector<8xf32> to vector<8x1xf32>
    %cst_330 = arith.constant 3.200000e+01 : f32
    %941 = vector.broadcast %cst_330 : f32 to vector<8x1xf32>
    %942 = arith.divf %940, %941 : vector<8x1xf32>
    %943 = vector.broadcast %942 : vector<8x1xf32> to vector<8x32xf32>
    %944 = arith.subf %936, %943 : vector<8x32xf32>
    %945 = arith.mulf %944, %944 : vector<8x32xf32>
    %cst_331 = arith.constant dense<0.000000e+00> : vector<8xf32>
    %946 = vector.multi_reduction <add>, %945, %cst_331 [1] : vector<8x32xf32> to vector<8xf32>
    %947 = vector.shape_cast %946 : vector<8xf32> to vector<8x1xf32>
    %cst_332 = arith.constant 3.200000e+01 : f32
    %948 = vector.broadcast %cst_332 : f32 to vector<8x1xf32>
    %949 = arith.divf %947, %948 : vector<8x1xf32>
    %950 = vector.broadcast %942 : vector<8x1xf32> to vector<8x32xf32>
    %951 = arith.subf %936, %950 : vector<8x32xf32>
    %cst_333 = arith.constant 9.99999974E-6 : f32
    %952 = vector.broadcast %cst_333 : f32 to vector<8x1xf32>
    %953 = arith.addf %949, %952 : vector<8x1xf32>
    %954 = math.rsqrt %953 : vector<8x1xf32>
    %955 = vector.broadcast %954 : vector<8x1xf32> to vector<8x32xf32>
    %956 = arith.mulf %951, %955 : vector<8x32xf32>
    %957 = vector.broadcast %937 : vector<1x32xf32> to vector<8x32xf32>
    %958 = arith.mulf %956, %957 : vector<8x32xf32>
    %959 = vector.broadcast %938 : vector<1x32xf32> to vector<8x32xf32>
    %960 = arith.addf %958, %959 : vector<8x32xf32>
    %c1512 = arith.constant 1512 : index
    %c0_334 = arith.constant 0 : index
    %961 = vector.load %arg3[%c1512, %c0_334] : memref<1936x128xf32, #tpu.memory_space<vmem>>, vector<32x128xf32>
    %cst_335 = arith.constant dense<0.000000e+00> : vector<8x128xf32>
    %962 = tpu.matmul %960, %961, %cst_335 {dimension_numbers = #tpu.dot_dimension_numbers<[1], [0], [0], [1], [0, 0, 1, 1], [], []>} : vector<8x32xf32>, vector<32x128xf32>, vector<8x128xf32> -> vector<8x128xf32>
    %c1544 = arith.constant 1544 : index
    %c0_336 = arith.constant 0 : index
    %963 = vector.load %arg3[%c1544, %c0_336] : memref<1936x128xf32, #tpu.memory_space<vmem>>, vector<1x128xf32>
    %964 = vector.broadcast %963 : vector<1x128xf32> to vector<8x128xf32>
    %965 = arith.addf %962, %964 : vector<8x128xf32>
    %cst_337 = arith.constant 0.000000e+00 : f32
    %966 = vector.broadcast %cst_337 : f32 to vector<8x128xf32>
    %967 = arith.maximumf %965, %966 : vector<8x128xf32>
    %c1552 = arith.constant 1552 : index
    %c0_338 = arith.constant 0 : index
    %968 = vector.load %arg3[%c1552, %c0_338] : memref<1936x128xf32, #tpu.memory_space<vmem>>, vector<128x32xf32>
    %cst_339 = arith.constant dense<0.000000e+00> : vector<8x32xf32>
    %969 = tpu.matmul %967, %968, %cst_339 {dimension_numbers = #tpu.dot_dimension_numbers<[1], [0], [0], [1], [0, 0, 1, 1], [], []>} : vector<8x128xf32>, vector<128x32xf32>, vector<8x32xf32> -> vector<8x32xf32>
    %c1680 = arith.constant 1680 : index
    %c0_340 = arith.constant 0 : index
    %970 = vector.load %arg3[%c1680, %c0_340] : memref<1936x128xf32, #tpu.memory_space<vmem>>, vector<1x32xf32>
    %971 = vector.broadcast %970 : vector<1x32xf32> to vector<8x32xf32>
    %972 = arith.addf %969, %971 : vector<8x32xf32>
    %973 = arith.addf %960, %972 : vector<8x32xf32>
    %c1688 = arith.constant 1688 : index
    %c0_341 = arith.constant 0 : index
    %974 = vector.load %arg3[%c1688, %c0_341] : memref<1936x128xf32, #tpu.memory_space<vmem>>, vector<1x32xf32>
    %c1696 = arith.constant 1696 : index
    %c0_342 = arith.constant 0 : index
    %975 = vector.load %arg3[%c1696, %c0_342] : memref<1936x128xf32, #tpu.memory_space<vmem>>, vector<1x32xf32>
    %cst_343 = arith.constant dense<0.000000e+00> : vector<8xf32>
    %976 = vector.multi_reduction <add>, %973, %cst_343 [1] : vector<8x32xf32> to vector<8xf32>
    %977 = vector.shape_cast %976 : vector<8xf32> to vector<8x1xf32>
    %cst_344 = arith.constant 3.200000e+01 : f32
    %978 = vector.broadcast %cst_344 : f32 to vector<8x1xf32>
    %979 = arith.divf %977, %978 : vector<8x1xf32>
    %980 = vector.broadcast %979 : vector<8x1xf32> to vector<8x32xf32>
    %981 = arith.subf %973, %980 : vector<8x32xf32>
    %982 = arith.mulf %981, %981 : vector<8x32xf32>
    %cst_345 = arith.constant dense<0.000000e+00> : vector<8xf32>
    %983 = vector.multi_reduction <add>, %982, %cst_345 [1] : vector<8x32xf32> to vector<8xf32>
    %984 = vector.shape_cast %983 : vector<8xf32> to vector<8x1xf32>
    %cst_346 = arith.constant 3.200000e+01 : f32
    %985 = vector.broadcast %cst_346 : f32 to vector<8x1xf32>
    %986 = arith.divf %984, %985 : vector<8x1xf32>
    %987 = vector.broadcast %979 : vector<8x1xf32> to vector<8x32xf32>
    %988 = arith.subf %973, %987 : vector<8x32xf32>
    %cst_347 = arith.constant 9.99999974E-6 : f32
    %989 = vector.broadcast %cst_347 : f32 to vector<8x1xf32>
    %990 = arith.addf %986, %989 : vector<8x1xf32>
    %991 = math.rsqrt %990 : vector<8x1xf32>
    %992 = vector.broadcast %991 : vector<8x1xf32> to vector<8x32xf32>
    %993 = arith.mulf %988, %992 : vector<8x32xf32>
    %994 = vector.broadcast %974 : vector<1x32xf32> to vector<8x32xf32>
    %995 = arith.mulf %993, %994 : vector<8x32xf32>
    %996 = vector.broadcast %975 : vector<1x32xf32> to vector<8x32xf32>
    %997 = arith.addf %995, %996 : vector<8x32xf32>
    %c1704 = arith.constant 1704 : index
    %c0_348 = arith.constant 0 : index
    %998 = vector.load %arg3[%c1704, %c0_348] : memref<1936x128xf32, #tpu.memory_space<vmem>>, vector<32x64xf32>
    %cst_349 = arith.constant dense<0.000000e+00> : vector<8x64xf32>
    %999 = tpu.matmul %997, %998, %cst_349 {dimension_numbers = #tpu.dot_dimension_numbers<[1], [0], [0], [1], [0, 0, 1, 1], [], []>} : vector<8x32xf32>, vector<32x64xf32>, vector<8x64xf32> -> vector<8x64xf32>
    %c1736 = arith.constant 1736 : index
    %c0_350 = arith.constant 0 : index
    %1000 = vector.load %arg3[%c1736, %c0_350] : memref<1936x128xf32, #tpu.memory_space<vmem>>, vector<1x64xf32>
    %1001 = vector.broadcast %1000 : vector<1x64xf32> to vector<8x64xf32>
    %1002 = arith.addf %999, %1001 : vector<8x64xf32>
    %c1744 = arith.constant 1744 : index
    %c0_351 = arith.constant 0 : index
    %1003 = vector.load %arg3[%c1744, %c0_351] : memref<1936x128xf32, #tpu.memory_space<vmem>>, vector<1x64xf32>
    %c1752 = arith.constant 1752 : index
    %c0_352 = arith.constant 0 : index
    %1004 = vector.load %arg3[%c1752, %c0_352] : memref<1936x128xf32, #tpu.memory_space<vmem>>, vector<1x64xf32>
    %cst_353 = arith.constant dense<0.000000e+00> : vector<64xf32>
    %1005 = vector.multi_reduction <add>, %1002, %cst_353 [0] : vector<8x64xf32> to vector<64xf32>
    %1006 = vector.shape_cast %1005 : vector<64xf32> to vector<1x64xf32>
    %cst_354 = arith.constant 8.000000e+00 : f32
    %1007 = vector.broadcast %cst_354 : f32 to vector<1x64xf32>
    %1008 = arith.divf %1006, %1007 : vector<1x64xf32>
    %1009 = vector.broadcast %1008 : vector<1x64xf32> to vector<8x64xf32>
    %1010 = arith.subf %1002, %1009 : vector<8x64xf32>
    %1011 = arith.mulf %1010, %1010 : vector<8x64xf32>
    %cst_355 = arith.constant dense<0.000000e+00> : vector<64xf32>
    %1012 = vector.multi_reduction <add>, %1011, %cst_355 [0] : vector<8x64xf32> to vector<64xf32>
    %1013 = vector.shape_cast %1012 : vector<64xf32> to vector<1x64xf32>
    %cst_356 = arith.constant 8.000000e+00 : f32
    %1014 = vector.broadcast %cst_356 : f32 to vector<1x64xf32>
    %1015 = arith.divf %1013, %1014 : vector<1x64xf32>
    %1016 = vector.broadcast %1008 : vector<1x64xf32> to vector<8x64xf32>
    %1017 = arith.subf %1002, %1016 : vector<8x64xf32>
    %cst_357 = arith.constant 9.99999974E-6 : f32
    %1018 = vector.broadcast %cst_357 : f32 to vector<1x64xf32>
    %1019 = arith.addf %1015, %1018 : vector<1x64xf32>
    %1020 = math.rsqrt %1019 : vector<1x64xf32>
    %1021 = vector.broadcast %1020 : vector<1x64xf32> to vector<8x64xf32>
    %1022 = arith.mulf %1017, %1021 : vector<8x64xf32>
    %1023 = vector.broadcast %1003 : vector<1x64xf32> to vector<8x64xf32>
    %1024 = arith.mulf %1022, %1023 : vector<8x64xf32>
    %1025 = vector.broadcast %1004 : vector<1x64xf32> to vector<8x64xf32>
    %1026 = arith.addf %1024, %1025 : vector<8x64xf32>
    %cst_358 = arith.constant 0.000000e+00 : f32
    %1027 = vector.broadcast %cst_358 : f32 to vector<8x64xf32>
    %1028 = arith.maximumf %1026, %1027 : vector<8x64xf32>
    %c1760 = arith.constant 1760 : index
    %c0_359 = arith.constant 0 : index
    %1029 = vector.load %arg3[%c1760, %c0_359] : memref<1936x128xf32, #tpu.memory_space<vmem>>, vector<64x32xf32>
    %cst_360 = arith.constant dense<0.000000e+00> : vector<8x32xf32>
    %1030 = tpu.matmul %1028, %1029, %cst_360 {dimension_numbers = #tpu.dot_dimension_numbers<[1], [0], [0], [1], [0, 0, 1, 1], [], []>} : vector<8x64xf32>, vector<64x32xf32>, vector<8x32xf32> -> vector<8x32xf32>
    %c1824 = arith.constant 1824 : index
    %c0_361 = arith.constant 0 : index
    %1031 = vector.load %arg3[%c1824, %c0_361] : memref<1936x128xf32, #tpu.memory_space<vmem>>, vector<1x32xf32>
    %1032 = vector.broadcast %1031 : vector<1x32xf32> to vector<8x32xf32>
    %1033 = arith.addf %1030, %1032 : vector<8x32xf32>
    %1034 = arith.addf %997, %1033 : vector<8x32xf32>
    %c1832 = arith.constant 1832 : index
    %c0_362 = arith.constant 0 : index
    %1035 = vector.load %arg3[%c1832, %c0_362] : memref<1936x128xf32, #tpu.memory_space<vmem>>, vector<1x32xf32>
    %c1840 = arith.constant 1840 : index
    %c0_363 = arith.constant 0 : index
    %1036 = vector.load %arg3[%c1840, %c0_363] : memref<1936x128xf32, #tpu.memory_space<vmem>>, vector<1x32xf32>
    %cst_364 = arith.constant dense<0.000000e+00> : vector<32xf32>
    %1037 = vector.multi_reduction <add>, %1034, %cst_364 [0] : vector<8x32xf32> to vector<32xf32>
    %1038 = vector.shape_cast %1037 : vector<32xf32> to vector<1x32xf32>
    %cst_365 = arith.constant 8.000000e+00 : f32
    %1039 = vector.broadcast %cst_365 : f32 to vector<1x32xf32>
    %1040 = arith.divf %1038, %1039 : vector<1x32xf32>
    %1041 = vector.broadcast %1040 : vector<1x32xf32> to vector<8x32xf32>
    %1042 = arith.subf %1034, %1041 : vector<8x32xf32>
    %1043 = arith.mulf %1042, %1042 : vector<8x32xf32>
    %cst_366 = arith.constant dense<0.000000e+00> : vector<32xf32>
    %1044 = vector.multi_reduction <add>, %1043, %cst_366 [0] : vector<8x32xf32> to vector<32xf32>
    %1045 = vector.shape_cast %1044 : vector<32xf32> to vector<1x32xf32>
    %cst_367 = arith.constant 8.000000e+00 : f32
    %1046 = vector.broadcast %cst_367 : f32 to vector<1x32xf32>
    %1047 = arith.divf %1045, %1046 : vector<1x32xf32>
    %1048 = vector.broadcast %1040 : vector<1x32xf32> to vector<8x32xf32>
    %1049 = arith.subf %1034, %1048 : vector<8x32xf32>
    %cst_368 = arith.constant 9.99999974E-6 : f32
    %1050 = vector.broadcast %cst_368 : f32 to vector<1x32xf32>
    %1051 = arith.addf %1047, %1050 : vector<1x32xf32>
    %1052 = math.rsqrt %1051 : vector<1x32xf32>
    %1053 = vector.broadcast %1052 : vector<1x32xf32> to vector<8x32xf32>
    %1054 = arith.mulf %1049, %1053 : vector<8x32xf32>
    %1055 = vector.broadcast %1035 : vector<1x32xf32> to vector<8x32xf32>
    %1056 = arith.mulf %1054, %1055 : vector<8x32xf32>
    %1057 = vector.broadcast %1036 : vector<1x32xf32> to vector<8x32xf32>
    %1058 = arith.addf %1056, %1057 : vector<8x32xf32>
    %cst_369 = arith.constant 0.000000e+00 : f32
    %1059 = vector.broadcast %cst_369 : f32 to vector<8x32xf32>
    %1060 = arith.maximumf %1058, %1059 : vector<8x32xf32>
    %1061 = tpu.iota {dimensions = array<i32: 0>} : vector<32x64xi32>
    %1062 = tpu.iota {dimensions = array<i32: 1>} : vector<32x64xi32>
    %1063 = tpu.iota {dimensions = array<i32: 0>} : vector<32x64xi32>
    %1064 = tpu.iota {dimensions = array<i32: 1>} : vector<32x64xi32>
    %1065 = arith.cmpi eq, %1062, %1061 : vector<32x64xi32>
    %1066 = arith.extui %1065 : vector<32x64xi1> to vector<32x64xi32>
    %1067 = arith.sitofp %1066 : vector<32x64xi32> to vector<32x64xf32>
    %c32_i32 = arith.constant 32 : i32
    %1068 = vector.broadcast %c32_i32 : i32 to vector<32x64xi32>
    %1069 = arith.addi %1063, %1068 : vector<32x64xi32>
    %1070 = arith.cmpi eq, %1064, %1069 : vector<32x64xi32>
    %1071 = arith.extui %1070 : vector<32x64xi1> to vector<32x64xi32>
    %1072 = arith.sitofp %1071 : vector<32x64xi32> to vector<32x64xf32>
    %cst_370 = arith.constant dense<0.000000e+00> : vector<8x64xf32>
    %1073 = tpu.matmul %1060, %1067, %cst_370 {dimension_numbers = #tpu.dot_dimension_numbers<[1], [0], [0], [1], [0, 0, 1, 1], [], []>} : vector<8x32xf32>, vector<32x64xf32>, vector<8x64xf32> -> vector<8x64xf32>
    %cst_371 = arith.constant dense<0.000000e+00> : vector<8x64xf32>
    %1074 = tpu.matmul %51, %1072, %cst_371 {dimension_numbers = #tpu.dot_dimension_numbers<[1], [0], [0], [1], [0, 0, 1, 1], [], []>} : vector<8x32xf32>, vector<32x64xf32>, vector<8x64xf32> -> vector<8x64xf32>
    %1075 = arith.addf %1073, %1074 : vector<8x64xf32>
    %c1848 = arith.constant 1848 : index
    %c0_372 = arith.constant 0 : index
    %1076 = vector.load %arg3[%c1848, %c0_372] : memref<1936x128xf32, #tpu.memory_space<vmem>>, vector<8x64xf32>
    %cst_373 = arith.constant dense<0.000000e+00> : vector<8x64xf32>
    %1077 = tpu.matmul %9, %1076, %cst_373 {dimension_numbers = #tpu.dot_dimension_numbers<[1], [0], [0], [1], [0, 0, 1, 1], [], []>} : vector<8x8xf32>, vector<8x64xf32>, vector<8x64xf32> -> vector<8x64xf32>
    %1078 = arith.addf %1075, %1077 : vector<8x64xf32>
    %c1856 = arith.constant 1856 : index
    %c0_374 = arith.constant 0 : index
    %1079 = vector.load %arg3[%c1856, %c0_374] : memref<1936x128xf32, #tpu.memory_space<vmem>>, vector<1x64xf32>
    %1080 = vector.broadcast %1079 : vector<1x64xf32> to vector<8x64xf32>
    %1081 = arith.addf %1078, %1080 : vector<8x64xf32>
    %c1864 = arith.constant 1864 : index
    %c0_375 = arith.constant 0 : index
    %1082 = vector.load %arg3[%c1864, %c0_375] : memref<1936x128xf32, #tpu.memory_space<vmem>>, vector<64x16xf32>
    %cst_376 = arith.constant dense<0.000000e+00> : vector<8x16xf32>
    %1083 = tpu.matmul %1081, %1082, %cst_376 {dimension_numbers = #tpu.dot_dimension_numbers<[1], [0], [0], [1], [0, 0, 1, 1], [], []>} : vector<8x64xf32>, vector<64x16xf32>, vector<8x16xf32> -> vector<8x16xf32>
    %c1928 = arith.constant 1928 : index
    %c0_377 = arith.constant 0 : index
    %1084 = vector.load %arg3[%c1928, %c0_377] : memref<1936x128xf32, #tpu.memory_space<vmem>>, vector<1x16xf32>
    %1085 = vector.broadcast %1084 : vector<1x16xf32> to vector<8x16xf32>
    %1086 = arith.addf %1083, %1085 : vector<8x16xf32>
    %c0_378 = arith.constant 0 : index
    %c0_379 = arith.constant 0 : index
    %1087 = vector.load %arg4[%c0_378, %c0_379] : memref<8x16xf32, #tpu.memory_space<vmem>>, vector<8x16xf32>
    tpu.vector_store %arg4[%c0_378, %c0_379], %1086 {strides = array<i32>} : memref<8x16xf32, #tpu.memory_space<vmem>>, vector<8x16xf32>,
    return
  }
}

</mosaic_0001>

<llo_original>
// kernel: forward.1
$region0: #{forward.1}
  #allocation0 [shape = 'u32[]', space=smem, size = 0x4, offset = 0x4, fixed_abs, tag = 'smem constant byte address 0x4 - core index']
  #allocation1 [shape = 'u32[72,128]{1,0:T(1,128)}', space=vmem, size = 0x9000, scoped, tag = 'internal scratch']
  %s0 = inlined_call_operand.vmem [shape: f32[8,16], index: 0, kind: input, shape index: {}]
  %s1 = inlined_call_operand.vmem [shape: f32[8,8], index: 1, kind: input, shape index: {}]
  %s2 = inlined_call_operand.vmem [shape: f32[8,16], index: 2, kind: input, shape index: {}]
  %s3 = inlined_call_operand.hbm [shape: f32[1936,128], index: 3, kind: input, shape index: {}]
  %s4 = inlined_call_operand.hbm [shape: f32[8,16], index: 4, kind: output, shape index: {}]
  %s5 = sld [smem:[#allocation0]]
  $region30: #{forward.1} parent=0
    _
  %s7 = ssub.s32 1, %s5
  %s8 = scalar_select 0, %s7, %s5
  $region1: #{forward.1} parent=0
    #allocation2 [shape = 'u8[991232]{0}', space=vmem, size = 0xf2000, scoped, tag = 'input window, operand 3, single buffered']
    #allocation3 [shape = 's32[1]{0}', space=sflag, size = 0x4, scoped, tag = 'scoped memory for forward.1']
    #allocation4 [shape = 's32[1]{0}', space=sflag, size = 0x4, scoped, tag = 'scoped memory for forward.1']
    #allocation5 [shape = 'u8[4096]{0}', space=vmem, size = 0x1000, scoped, tag = 'output window, operand 0, single buffered']
    %9 = vsyncpa [#allocation3], 0
    %10 = vsyncpa [#allocation4], 0
    // Predicated region
    $region2: #{forward.1} parent=1 // pred_check
      _
    $region3: #{forward.1} parent=1 // pred_check_branch
      %12 = sbr.rel (0) target = $region5
    $region4: #{forward.1} parent=1 // pred_region
      _
    $region5: #{forward.1} parent=1 // pred_fallthru
      _
    // Predicated region
    $region6: #{forward.1} parent=1 // pred_check
      _
    $region7: #{forward.1} parent=1 // pred_check_branch
      %14 = sbr.rel (0) target = $region9
    $region8: #{forward.1} parent=1 // pred_region
      _
    $region9: #{forward.1} parent=1 // pred_fallthru
      _
    // Predicated region
    $region10: #{forward.1} parent=1 // pred_check
      _
    $region11: #{forward.1} parent=1 // pred_check_branch
      %16 = sbr.rel (0) target = $region13
    $region12: #{forward.1} parent=1 // pred_region
      _
    $region13: #{forward.1} parent=1 // pred_fallthru
      _
    // Predicated region
    $region14: #{forward.1} parent=1 // pred_check
      _
    $region15: #{forward.1} parent=1 // pred_check_branch
      %18 = sbr.rel (0) target = $region17
    $region16: #{forward.1} parent=1 // pred_region
      %20 = vsyncadd [#allocation3], 0
      %s21 = sshll.u32 %s3, 4
      %s22 = int_to_ptr.hbm [resolvable:$true] %s21
      %s23 = sshll.u32 [#allocation2], 4
      %s24 = int_to_ptr.vmem [resolvable:$true] %s23
      %29 = dma.hbm_to_vmem [thread:$0]  %s22, 30976, %s24, [#allocation3], 128, 128, 8
    $region17: #{forward.1} parent=1 // pred_fallthru
      _
    // Predicated region
    $region18: #{forward.1} parent=1 // pred_check
      _
    $region19: #{forward.1} parent=1 // pred_check_branch
      %31 = sbr.rel (0) target = $region21
    $region20: #{forward.1} parent=1 // pred_region
      %33 = dma.done [#allocation3], 30976
    $region21: #{forward.1} parent=1 // pred_fallthru
      _
    %v34 = vld [vmem:[%s0] sm:$0xff]
    %v35 = vld [vmem:[%s1] sm:$0xff]
    %v36 = vld [vmem:[%s2] sm:$0xff]
    %v37 = vld [vmem:[#allocation2] sm:$0xff]
    %v38 = vld [vmem:[#allocation2 + $0x8] sm:$0x1]
    %v39 = vperm.slane %v38, 0
    %vm40 = vcmask 64512
    %v42 = vsel %vm40, %v35, 0
    %44 = vmatpush.msra.mxu0 0.0
    %45 = vmatpush.msra.mxu0 0.0
    %46 = vmatpush.msra.mxu0 0.0
    %47 = vmatpush.msra.mxu0 0.0
    %48 = vmatpush.msra.mxu0 0.0
    %49 = vmatpush.msra.mxu0 0.0
    %50 = vmatpush.msra.mxu0 0.0
    %51 = vmatpush.msra.mxu0 0.0
    %52 = vmatpush.msra.mxu0 0.0
    %53 = vmatpush.msra.mxu0 0.0
    %54 = vmatpush.msra.mxu0 0.0
    %55 = vmatpush.msra.mxu0 0.0
    %56 = vmatpush.msra.mxu0 0.0
    %57 = vmatpush.msra.mxu0 0.0
    %58 = vmatpush.msra.mxu0 0.0
    %59 = vmatpush.msra.mxu0 %v37
    %60 = vmatmul.f32.gmra.mxu0 %v42
    %v61 = vpop.f32.mrf.mxu0
    %v62 = vadd.f32 %v39, %v61
    %63 = vdwg.mxu0
    %v64 = vmax.f32 %v62, 0.0
    %v65 = vld [vmem:[#allocation2 + $0x48] sm:$0xff]
    %v66 = vld [vmem:[#allocation2 + $0x50] sm:$0xff]
    %v67 = vld [vmem:[#allocation2 + $0x58] sm:$0x1]
    %v68 = vperm.slane %v67, 0
    %vm69 = vcmask 130048
    %v71 = vsel %vm69, %v36, 0
    %73 = vmatpush.msra.mxu0 0.0
    %74 = vmatpush.msra.mxu0 0.0
    %75 = vmatpush.msra.mxu0 0.0
    %76 = vmatpush.msra.mxu0 0.0
    %77 = vmatpush.msra.mxu0 0.0
    %78 = vmatpush.msra.mxu0 0.0
    %79 = vmatpush.msra.mxu0 0.0
    %80 = vmatpush.msra.mxu0 0.0
    %81 = vmatpush.msra.mxu0 0.0
    %82 = vmatpush.msra.mxu0 0.0
    %83 = vmatpush.msra.mxu0 0.0
    %84 = vmatpush.msra.mxu0 0.0
    %85 = vmatpush.msra.mxu0 0.0
    %86 = vmatpush.msra.mxu0 0.0
    %87 = vmatpush.msra.mxu0 %v66
    %88 = vmatpush.msra.mxu0 %v65
    %89 = vmatmul.f32.gmra.mxu0 %v71
    %v90 = vpop.f32.mrf.mxu0
    %v91 = vadd.f32 %v68, %v90
    %92 = vdwg.mxu0
    %v93 = vld [vmem:[#allocation2 + $0x10] sm:$0xff]
    %v95 = vsel %vm40, %v64, 0
    %97 = vmatpush.msra.mxu0 0.0
    %98 = vmatpush.msra.mxu0 0.0
    %99 = vmatpush.msra.mxu0 0.0
    %100 = vmatpush.msra.mxu0 0.0
    %101 = vmatpush.msra.mxu0 0.0
    %102 = vmatpush.msra.mxu0 0.0
    %103 = vmatpush.msra.mxu0 0.0
    %104 = vmatpush.msra.mxu0 0.0
    %105 = vmatpush.msra.mxu0 0.0
    %106 = vmatpush.msra.mxu0 0.0
    %107 = vmatpush.msra.mxu0 0.0
    %108 = vmatpush.msra.mxu0 0.0
    %109 = vmatpush.msra.mxu0 0.0
    %110 = vmatpush.msra.mxu0 0.0
    %111 = vmatpush.msra.mxu0 0.0
    %112 = vmatpush.msra.mxu0 %v93
    %113 = vmatmul.f32.gmra.mxu0 %v95
    %v114 = vpop.f32.mrf.mxu0
    %v115 = vadd.f32 0.0, %v114
    %116 = vdwg.mxu0
    %v117 = vadd.f32 %v34, %v115
    %v118 = vld [vmem:[#allocation2 + $0x18] sm:$0x1]
    %v119 = vperm.slane %v118, 0
    %v120 = vadd.f32 %v117, %v119
    %v121 = vld [vmem:[#allocation2 + $0x20] sm:$0xff]
    %v122 = vld [vmem:[#allocation2 + $0x28] sm:$0xff]
    %v123 = vld [vmem:[#allocation2 + $0x30] sm:$0x1]
    %v124 = vperm.slane %v123, 0
    %v126 = vsel %vm69, %v120, 0
    %128 = vmatpush.msra.mxu0 0.0
    %129 = vmatpush.msra.mxu0 0.0
    %130 = vmatpush.msra.mxu0 0.0
    %131 = vmatpush.msra.mxu0 0.0
    %132 = vmatpush.msra.mxu0 0.0
    %133 = vmatpush.msra.mxu0 0.0
    %134 = vmatpush.msra.mxu0 0.0
    %135 = vmatpush.msra.mxu0 0.0
    %136 = vmatpush.msra.mxu0 0.0
    %137 = vmatpush.msra.mxu0 0.0
    %138 = vmatpush.msra.mxu0 0.0
    %139 = vmatpush.msra.mxu0 0.0
    %140 = vmatpush.msra.mxu0 0.0
    %141 = vmatpush.msra.mxu0 0.0
    %142 = vmatpush.msra.mxu0 %v122
    %143 = vmatpush.msra.mxu0 %v121
    %144 = vmatmul.f32.gmra.mxu0 %v126
    %v145 = vpop.f32.mrf.mxu0
    %v146 = vadd.f32 %v124, %v145
    %147 = vdwg.mxu0
    %v148 = vld [vmem:[#allocation2 + $0x38] sm:$0x1]
    %v149 = vld [vmem:[#allocation2 + $0x40] sm:$0x1]
    %vm150 = vcmask 261120
    %v151 = vsel %vm150, %v146, 0.0
    %v152 = vrot.slane %v151, 4
    %v153 = vadd.f32 %v151, %v152
    %v154 = vrot.slane %v153, 2
    %v155 = vadd.f32 %v153, %v154
    %v156 = vrot.slane %v155, 1
    %v157 = vadd.f32 %v155, %v156
    %v158 = vrcp.pop 8.0
    %v159 = vmul.f32 8.0, %v158
    %v160 = vsub.f32 1.0, %v159
    %v161 = vmul.f32 %v158, %v160
    %v162 = vadd.f32 %v158, %v161
    %vm163 = vweird.f32 %v158
    %v164 = vsel %vm163, %v158, %v162
    %v165 = vmul.f32 %v157, %v164
    %v166 = vsub.f32 %v146, %v165
    %v167 = vmul.f32 %v166, %v166
    %v168 = vsel %vm150, %v167, 0.0
    %v169 = vrot.slane %v168, 4
    %v170 = vadd.f32 %v168, %v169
    %v171 = vrot.slane %v170, 2
    %v172 = vadd.f32 %v170, %v171
    %v173 = vrot.slane %v172, 1
    %v174 = vadd.f32 %v172, %v173
    %v175 = vmul.f32 %v174, %v164
    %v176 = vadd.f32 %v175, 1e-05
    %v177 = vrsqrt.pop %v176
    %v178 = vmul.f32 %v177, %v176
    %v179 = vmul.f32 %v178, %v177
    %v180 = vmul.f32 0.5, %v179
    %v181 = vsub.f32 1.5, %v180
    %v182 = vmul.f32 %v177, %v181
    %vm183 = vweird.f32 %v176
    %vm184 = vweird.f32 %v177
    %vm185 = vmor %vm183, %vm184
    %v186 = vsel %vm185, %v177, %v182
    %v187 = vmul.f32 %v166, %v186
    %v188 = vperm.slane %v148, 0
    %v189 = vmul.f32 %v187, %v188
    %v190 = vperm.slane %v149, 0
    %v191 = vadd.f32 %v189, %v190
    %v192 = vmax.f32 %v191, 0.0
    %v193 = vld [vmem:[#allocation2 + $0x60] sm:$0xff]
    %194 = vmatpush.msra.mxu0 0.0
    %195 = vmatpush.msra.mxu0 0.0
    %196 = vmatpush.msra.mxu0 0.0
    %197 = vmatpush.msra.mxu0 0.0
    %198 = vmatpush.msra.mxu0 0.0
    %199 = vmatpush.msra.mxu0 0.0
    %200 = vmatpush.msra.mxu0 0.0
    %201 = vmatpush.msra.mxu0 0.0
    %202 = vmatpush.msra.mxu0 0.0
    %203 = vmatpush.msra.mxu0 0.0
    %204 = vmatpush.msra.mxu0 0.0
    %205 = vmatpush.msra.mxu0 0.0
    %206 = vmatpush.msra.mxu0 0.0
    %207 = vmatpush.msra.mxu0 0.0
    %208 = vmatpush.msra.mxu0 0.0
    %209 = vmatpush.msra.mxu0 %v193
    %210 = vmatmul.f32.gmra.mxu0 %v95
    %v211 = vpop.f32.mrf.mxu0
    %v212 = vadd.f32 0.0, %v211
    %213 = vdwg.mxu0
    %v214 = vadd.f32 %v192, %v212
    %v215 = vld [vmem:[#allocation2 + $0x68] sm:$0x1]
    %v216 = vperm.slane %v215, 0
    %v217 = vadd.f32 %v214, %v216
    %v218 = vld [vmem:[#allocation2 + $0x70] sm:$0xff]
    %v219 = vld [vmem:[#allocation2 + $0x78] sm:$0xff]
    %v220 = vld [vmem:[#allocation2 + $0x80] sm:$0xff]
    %v221 = vld [vmem:[#allocation2 + $0x88] sm:$0xff]
    %v222 = vld [vmem:[#allocation2 + $0x90] sm:$0x1]
    %v223 = vperm.slane %v222, 0
    %v225 = vsel %vm150, %v217, 0
    %227 = vmatpush.msra.mxu0 0.0
    %228 = vmatpush.msra.mxu0 0.0
    %229 = vmatpush.msra.mxu0 0.0
    %230 = vmatpush.msra.mxu0 0.0
    %231 = vmatpush.msra.mxu0 0.0
    %232 = vmatpush.msra.mxu0 0.0
    %233 = vmatpush.msra.mxu0 0.0
    %234 = vmatpush.msra.mxu0 0.0
    %235 = vmatpush.msra.mxu0 0.0
    %236 = vmatpush.msra.mxu0 0.0
    %237 = vmatpush.msra.mxu0 0.0
    %238 = vmatpush.msra.mxu0 0.0
    %239 = vmatpush.msra.mxu0 %v221
    %240 = vmatpush.msra.mxu0 %v220
    %241 = vmatpush.msra.mxu0 %v219
    %242 = vmatpush.msra.mxu0 %v218
    %243 = vmatmul.f32.gmra.mxu0 %v225
    %v244 = vpop.f32.mrf.mxu0
    %v245 = vadd.f32 %v223, %v244
    %246 = vdwg.mxu0
    %v247 = vld [vmem:[#allocation2 + $0x98] sm:$0x1]
    %v248 = vld [vmem:[#allocation2 + $0xa0] sm:$0x1]
    %vm249 = vcmask 654464
    %v250 = vsel %vm249, %v245, 0.0
    %v251 = vrot.slane %v250, 4
    %v252 = vadd.f32 %v250, %v251
    %v253 = vrot.slane %v252, 2
    %v254 = vadd.f32 %v252, %v253
    %v255 = vrot.slane %v254, 1
    %v256 = vadd.f32 %v254, %v255
    %v257 = vmul.f32 %v256, %v164
    %v258 = vsub.f32 %v245, %v257
    %v259 = vmul.f32 %v258, %v258
    %v260 = vsel %vm249, %v259, 0.0
    %v261 = vrot.slane %v260, 4
    %v262 = vadd.f32 %v260, %v261
    %v263 = vrot.slane %v262, 2
    %v264 = vadd.f32 %v262, %v263
    %v265 = vrot.slane %v264, 1
    %v266 = vadd.f32 %v264, %v265
    %v267 = vmul.f32 %v266, %v164
    %v268 = vadd.f32 %v267, 1e-05
    %v269 = vrsqrt.pop %v268
    %v270 = vmul.f32 %v269, %v268
    %v271 = vmul.f32 %v270, %v269
    %v272 = vmul.f32 0.5, %v271
    %v273 = vsub.f32 1.5, %v272
    %v274 = vmul.f32 %v269, %v273
    %vm275 = vweird.f32 %v268
    %vm276 = vweird.f32 %v269
    %vm277 = vmor %vm275, %vm276
    %v278 = vsel %vm277, %v269, %v274
    %v279 = vmul.f32 %v258, %v278
    %v280 = vperm.slane %v247, 0
    %282 = vrot.lane.b32.xlu0 %v280, 16
    %v283 = vpop.permute.xlu0 %282
    %v285 = vmul.f32 %v279, %v283
    %v286 = vperm.slane %v248, 0
    %288 = vrot.lane.b32.xlu0 %v286, 16
    %v289 = vpop.permute.xlu0 %288
    %v291 = vadd.f32 %v285, %v289
    %v292 = vmax.f32 %v291, 0.0
    %v293 = vld [vmem:[#allocation2 + $0xa8] sm:$0xff]
    %v294 = vld [vmem:[#allocation2 + $0xb0] sm:$0xff]
    %v295 = vld [vmem:[#allocation2 + $0xb8] sm:$0xff]
    %v296 = vld [vmem:[#allocation2 + $0xc0] sm:$0xff]
    %v297 = vld [vmem:[#allocation2 + $0xc8] sm:$0xff]
    %v298 = vld [vmem:[#allocation2 + $0xd0] sm:$0xff]
    %v299 = vld [vmem:[#allocation2 + $0xd8] sm:$0xff]
    %v300 = vld [vmem:[#allocation2 + $0xe0] sm:$0xff]
    %v301 = vld [vmem:[#allocation2 + $0xe8] sm:$0x1]
    %v302 = vperm.slane %v301, 0
    %304 = vrot.lane.b32.xlu0 %v292, 112
    %v305 = vpop.permute.xlu0 %304
    %vm306 = vcmask 523264
    %v307 = vsel %vm306, %v305, 0
    %309 = vmatpush.msra.mxu0 0.0
    %310 = vmatpush.msra.mxu0 0.0
    %311 = vmatpush.msra.mxu0 0.0
    %312 = vmatpush.msra.mxu0 0.0
    %313 = vmatpush.msra.mxu0 0.0
    %314 = vmatpush.msra.mxu0 0.0
    %315 = vmatpush.msra.mxu0 0.0
    %316 = vmatpush.msra.mxu0 0.0
    %317 = vmatpush.msra.mxu0 %v300
    %318 = vmatpush.msra.mxu0 %v299
    %319 = vmatpush.msra.mxu0 %v298
    %320 = vmatpush.msra.mxu0 %v297
    %321 = vmatpush.msra.mxu0 %v296
    %322 = vmatpush.msra.mxu0 %v295
    %323 = vmatpush.msra.mxu0 %v294
    %324 = vmatpush.msra.mxu0 %v293
    %325 = vmatmul.f32.gmra.mxu0 %v307
    %v326 = vpop.f32.mrf.mxu0
    %v327 = vadd.f32 %v302, %v326
    %328 = vdwg.mxu0
    %v329 = vadd.f32 %v245, %v327
    %v330 = vld [vmem:[#allocation2 + $0xf0] sm:$0x1]
    %v331 = vld [vmem:[#allocation2 + $0xf8] sm:$0x1]
    %v332 = vsel %vm69, %v329, 0.0
    %v333 = vrot.slane %v332, 4
    %v334 = vadd.f32 %v332, %v333
    %v335 = vrot.slane %v334, 2
    %v336 = vadd.f32 %v334, %v335
    %v337 = vrot.slane %v336, 1
    %v338 = vadd.f32 %v336, %v337
    %v339 = vmul.f32 %v338, %v164
    %v340 = vsub.f32 %v329, %v339
    %v341 = vmul.f32 %v340, %v340
    %v342 = vsel %vm69, %v341, 0.0
    %v343 = vrot.slane %v342, 4
    %v344 = vadd.f32 %v342, %v343
    %v345 = vrot.slane %v344, 2
    %v346 = vadd.f32 %v344, %v345
    %v347 = vrot.slane %v346, 1
    %v348 = vadd.f32 %v346, %v347
    %v349 = vmul.f32 %v348, %v164
    %v350 = vadd.f32 %v349, 1e-05
    %v351 = vrsqrt.pop %v350
    %v352 = vmul.f32 %v351, %v350
    %v353 = vmul.f32 %v352, %v351
    %v354 = vmul.f32 0.5, %v353
    %v355 = vsub.f32 1.5, %v354
    %v356 = vmul.f32 %v351, %v355
    %vm357 = vweird.f32 %v350
    %vm358 = vweird.f32 %v351
    %vm359 = vmor %vm357, %vm358
    %v360 = vsel %vm359, %v351, %v356
    %v361 = vmul.f32 %v340, %v360
    %v362 = vperm.slane %v330, 0
    %v363 = vmul.f32 %v361, %v362
    %v364 = vperm.slane %v331, 0
    %v365 = vadd.f32 %v363, %v364
    %v366 = vmax.f32 %v365, 0.0
    %v367 = vadd.f32 %v366, %v91
    %v368 = vld [vmem:[#allocation2 + $0x100] sm:$0x1]
    %v369 = vld [vmem:[#allocation2 + $0x108] sm:$0x1]
    %v370 = vsel %vm69, %v367, 0.0
    %371 = vadd.xlane.f32.xlu0 %v370
    %v372 = vpop.xlane.xlu0 %371
    %v373 = vrcp.pop 16.0
    %v374 = vmul.f32 16.0, %v373
    %v375 = vsub.f32 1.0, %v374
    %v376 = vmul.f32 %v373, %v375
    %v377 = vadd.f32 %v373, %v376
    %vm378 = vweird.f32 %v373
    %v379 = vsel %vm378, %v373, %v377
    %v380 = vmul.f32 %v372, %v379
    %v381 = vsub.f32 %v367, %v380
    %v382 = vmul.f32 %v381, %v381
    %v383 = vsel %vm69, %v382, 0.0
    %384 = vadd.xlane.f32.xlu0 %v383
    %v385 = vpop.xlane.xlu0 %384
    %v386 = vmul.f32 %v385, %v379
    %v387 = vadd.f32 %v386, 1e-05
    %v388 = vrsqrt.pop %v387
    %v389 = vmul.f32 %v388, %v387
    %v390 = vmul.f32 %v389, %v388
    %v391 = vmul.f32 0.5, %v390
    %v392 = vsub.f32 1.5, %v391
    %v393 = vmul.f32 %v388, %v392
    %vm394 = vweird.f32 %v387
    %vm395 = vweird.f32 %v388
    %vm396 = vmor %vm394, %vm395
    %v397 = vsel %vm396, %v388, %v393
    %v398 = vmul.f32 %v381, %v397
    %v399 = vperm.slane %v368, 0
    %v400 = vmul.f32 %v398, %v399
    %v401 = vperm.slane %v369, 0
    %v402 = vadd.f32 %v400, %v401
    %v403 = vld [vmem:[#allocation2 + $0x110] sm:$0xff]
    %v404 = vld [vmem:[#allocation2 + $0x118] sm:$0xff]
    %v405 = vld [vmem:[#allocation2 + $0x120] sm:$0x1]
    %v406 = vperm.slane %v405, 0
    %v408 = vsel %vm69, %v402, 0
    %410 = vmatpush.msra.mxu0 0.0
    %411 = vmatpush.msra.mxu0 0.0
    %412 = vmatpush.msra.mxu0 0.0
    %413 = vmatpush.msra.mxu0 0.0
    %414 = vmatpush.msra.mxu0 0.0
    %415 = vmatpush.msra.mxu0 0.0
    %416 = vmatpush.msra.mxu0 0.0
    %417 = vmatpush.msra.mxu0 0.0
    %418 = vmatpush.msra.mxu0 0.0
    %419 = vmatpush.msra.mxu0 0.0
    %420 = vmatpush.msra.mxu0 0.0
    %421 = vmatpush.msra.mxu0 0.0
    %422 = vmatpush.msra.mxu0 0.0
    %423 = vmatpush.msra.mxu0 0.0
    %424 = vmatpush.msra.mxu0 %v404
    %425 = vmatpush.msra.mxu0 %v403
    %426 = vmatmul.f32.gmra.mxu0 %v408
    %v427 = vpop.f32.mrf.mxu0
    %v428 = vadd.f32 %v406, %v427
    %429 = vdwg.mxu0
    %v430 = vmax.f32 %v428, 0.0
    %v431 = vld [vmem:[#allocation2 + $0x128] sm:$0xff]
    %v432 = vld [vmem:[#allocation2 + $0x130] sm:$0xff]
    %v433 = vld [vmem:[#allocation2 + $0x138] sm:$0xff]
    %v434 = vld [vmem:[#allocation2 + $0x140] sm:$0xff]
    %v435 = vld [vmem:[#allocation2 + $0x148] sm:$0xff]
    %v436 = vld [vmem:[#allocation2 + $0x150] sm:$0xff]
    %v437 = vld [vmem:[#allocation2 + $0x158] sm:$0xff]
    %v438 = vld [vmem:[#allocation2 + $0x160] sm:$0xff]
    %v439 = vld [vmem:[#allocation2 + $0x168] sm:$0x1]
    %v440 = vperm.slane %v439, 0
    %v442 = vsel %vm306, %v430, 0
    %444 = vmatpush.msra.mxu0 0.0
    %445 = vmatpush.msra.mxu0 0.0
    %446 = vmatpush.msra.mxu0 0.0
    %447 = vmatpush.msra.mxu0 0.0
    %448 = vmatpush.msra.mxu0 0.0
    %449 = vmatpush.msra.mxu0 0.0
    %450 = vmatpush.msra.mxu0 0.0
    %451 = vmatpush.msra.mxu0 0.0
    %452 = vmatpush.msra.mxu0 %v438
    %453 = vmatpush.msra.mxu0 %v437
    %454 = vmatpush.msra.mxu0 %v436
    %455 = vmatpush.msra.mxu0 %v435
    %456 = vmatpush.msra.mxu0 %v434
    %457 = vmatpush.msra.mxu0 %v433
    %458 = vmatpush.msra.mxu0 %v432
    %459 = vmatpush.msra.mxu0 %v431
    %460 = vmatmul.f32.gmra.mxu0 %v442
    %v461 = vpop.f32.mrf.mxu0
    %v462 = vadd.f32 %v440, %v461
    %463 = vdwg.mxu0
    %v464 = vadd.f32 %v402, %v462
    %v465 = vld [vmem:[#allocation2 + $0x170] sm:$0x1]
    %v466 = vld [vmem:[#allocation2 + $0x178] sm:$0x1]
    %v467 = vsel %vm69, %v464, 0.0
    %468 = vadd.xlane.f32.xlu0 %v467
    %v469 = vpop.xlane.xlu0 %468
    %v470 = vmul.f32 %v469, %v379
    %v471 = vsub.f32 %v464, %v470
    %v472 = vmul.f32 %v471, %v471
    %v473 = vsel %vm69, %v472, 0.0
    %474 = vadd.xlane.f32.xlu0 %v473
    %v475 = vpop.xlane.xlu0 %474
    %v476 = vmul.f32 %v475, %v379
    %v477 = vadd.f32 %v476, 1e-05
    %v478 = vrsqrt.pop %v477
    %v479 = vmul.f32 %v478, %v477
    %v480 = vmul.f32 %v479, %v478
    %v481 = vmul.f32 0.5, %v480
    %v482 = vsub.f32 1.5, %v481
    %v483 = vmul.f32 %v478, %v482
    %vm484 = vweird.f32 %v477
    %vm485 = vweird.f32 %v478
    %vm486 = vmor %vm484, %vm485
    %v487 = vsel %vm486, %v478, %v483
    %v488 = vmul.f32 %v471, %v487
    %v489 = vperm.slane %v465, 0
    %v490 = vmul.f32 %v488, %v489
    %v491 = vperm.slane %v466, 0
    %v492 = vadd.f32 %v490, %v491
    %v493 = vld [vmem:[#allocation2 + $0x180] sm:$0xff]
    %v494 = vld [vmem:[#allocation2 + $0x188] sm:$0xff]
    %v495 = vld [vmem:[#allocation2 + $0x190] sm:$0x1]
    %v496 = vperm.slane %v495, 0
    %v498 = vsel %vm69, %v492, 0
    %500 = vmatpush.msra.mxu0 0.0
    %501 = vmatpush.msra.mxu0 0.0
    %502 = vmatpush.msra.mxu0 0.0
    %503 = vmatpush.msra.mxu0 0.0
    %504 = vmatpush.msra.mxu0 0.0
    %505 = vmatpush.msra.mxu0 0.0
    %506 = vmatpush.msra.mxu0 0.0
    %507 = vmatpush.msra.mxu0 0.0
    %508 = vmatpush.msra.mxu0 0.0
    %509 = vmatpush.msra.mxu0 0.0
    %510 = vmatpush.msra.mxu0 0.0
    %511 = vmatpush.msra.mxu0 0.0
    %512 = vmatpush.msra.mxu0 0.0
    %513 = vmatpush.msra.mxu0 0.0
    %514 = vmatpush.msra.mxu0 %v494
    %515 = vmatpush.msra.mxu0 %v493
    %516 = vmatmul.f32.gmra.mxu0 %v498
    %v517 = vpop.f32.mrf.mxu0
    %v518 = vadd.f32 %v496, %v517
    %519 = vdwg.mxu0
    %v520 = vld [vmem:[#allocation2 + $0x198] sm:$0x1]
    %v521 = vld [vmem:[#allocation2 + $0x1a0] sm:$0x1]
    %v522 = vsel %vm150, %v518, 0.0
    %v523 = vrot.slane %v522, 4
    %v524 = vadd.f32 %v522, %v523
    %v525 = vrot.slane %v524, 2
    %v526 = vadd.f32 %v524, %v525
    %v527 = vrot.slane %v526, 1
    %v528 = vadd.f32 %v526, %v527
    %v529 = vmul.f32 %v528, %v164
    %v530 = vsub.f32 %v518, %v529
    %v531 = vmul.f32 %v530, %v530
    %v532 = vsel %vm150, %v531, 0.0
    %v533 = vrot.slane %v532, 4
    %v534 = vadd.f32 %v532, %v533
    %v535 = vrot.slane %v534, 2
    %v536 = vadd.f32 %v534, %v535
    %v537 = vrot.slane %v536, 1
    %v538 = vadd.f32 %v536, %v537
    %v539 = vmul.f32 %v538, %v164
    %v540 = vadd.f32 %v539, 1e-05
    %v541 = vrsqrt.pop %v540
    %v542 = vmul.f32 %v541, %v540
    %v543 = vmul.f32 %v542, %v541
    %v544 = vmul.f32 0.5, %v543
    %v545 = vsub.f32 1.5, %v544
    %v546 = vmul.f32 %v541, %v545
    %vm547 = vweird.f32 %v540
    %vm548 = vweird.f32 %v541
    %vm549 = vmor %vm547, %vm548
    %v550 = vsel %vm549, %v541, %v546
    %v551 = vmul.f32 %v530, %v550
    %v552 = vperm.slane %v520, 0
    %v553 = vmul.f32 %v551, %v552
    %v554 = vperm.slane %v521, 0
    %v555 = vadd.f32 %v553, %v554
    %v556 = vmax.f32 %v555, 0.0
    %v557 = vld [vmem:[#allocation2 + $0x1a8] sm:$0xff]
    %v558 = vld [vmem:[#allocation2 + $0x1b0] sm:$0xff]
    %v559 = vld [vmem:[#allocation2 + $0x1b8] sm:$0xff]
    %v560 = vld [vmem:[#allocation2 + $0x1c0] sm:$0xff]
    %v561 = vld [vmem:[#allocation2 + $0x1c8] sm:$0x1]
    %v562 = vperm.slane %v561, 0
    %v564 = vsel %vm150, %v556, 0
    %566 = vmatpush.msra.mxu0 0.0
    %567 = vmatpush.msra.mxu0 0.0
    %568 = vmatpush.msra.mxu0 0.0
    %569 = vmatpush.msra.mxu0 0.0
    %570 = vmatpush.msra.mxu0 0.0
    %571 = vmatpush.msra.mxu0 0.0
    %572 = vmatpush.msra.mxu0 0.0
    %573 = vmatpush.msra.mxu0 0.0
    %574 = vmatpush.msra.mxu0 0.0
    %575 = vmatpush.msra.mxu0 0.0
    %576 = vmatpush.msra.mxu0 0.0
    %577 = vmatpush.msra.mxu0 0.0
    %578 = vmatpush.msra.mxu0 %v560
    %579 = vmatpush.msra.mxu0 %v559
    %580 = vmatpush.msra.mxu0 %v558
    %581 = vmatpush.msra.mxu0 %v557
    %582 = vmatmul.f32.gmra.mxu0 %v564
    %v583 = vpop.f32.mrf.mxu0
    %v584 = vadd.f32 %v562, %v583
    %585 = vdwg.mxu0
    %v586 = vadd.f32 %v492, %v584
    %v587 = vld [vmem:[#allocation2 + $0x1d0] sm:$0x1]
    %v588 = vld [vmem:[#allocation2 + $0x1d8] sm:$0x1]
    %v589 = vsel %vm69, %v586, 0.0
    %v590 = vrot.slane %v589, 4
    %v591 = vadd.f32 %v589, %v590
    %v592 = vrot.slane %v591, 2
    %v593 = vadd.f32 %v591, %v592
    %v594 = vrot.slane %v593, 1
    %v595 = vadd.f32 %v593, %v594
    %v596 = vmul.f32 %v595, %v164
    %v597 = vsub.f32 %v586, %v596
    %v598 = vmul.f32 %v597, %v597
    %v599 = vsel %vm69, %v598, 0.0
    %v600 = vrot.slane %v599, 4
    %v601 = vadd.f32 %v599, %v600
    %v602 = vrot.slane %v601, 2
    %v603 = vadd.f32 %v601, %v602
    %v604 = vrot.slane %v603, 1
    %v605 = vadd.f32 %v603, %v604
    %v606 = vmul.f32 %v605, %v164
    %v607 = vadd.f32 %v606, 1e-05
    %v608 = vrsqrt.pop %v607
    %v609 = vmul.f32 %v608, %v607
    %v610 = vmul.f32 %v609, %v608
    %v611 = vmul.f32 0.5, %v610
    %v612 = vsub.f32 1.5, %v611
    %v613 = vmul.f32 %v608, %v612
    %vm614 = vweird.f32 %v607
    %vm615 = vweird.f32 %v608
    %vm616 = vmor %vm614, %vm615
    %v617 = vsel %vm616, %v608, %v613
    %v618 = vmul.f32 %v597, %v617
    %v619 = vperm.slane %v587, 0
    %v620 = vmul.f32 %v618, %v619
    %v621 = vperm.slane %v588, 0
    %v622 = vadd.f32 %v620, %v621
    %v623 = vmax.f32 %v622, 0.0
    %v624 = vld [vmem:[#allocation2 + $0x1e0] sm:$0xff]
    %625 = vmatpush.msra.mxu0 0.0
    %626 = vmatpush.msra.mxu0 0.0
    %627 = vmatpush.msra.mxu0 0.0
    %628 = vmatpush.msra.mxu0 0.0
    %629 = vmatpush.msra.mxu0 0.0
    %630 = vmatpush.msra.mxu0 0.0
    %631 = vmatpush.msra.mxu0 0.0
    %632 = vmatpush.msra.mxu0 0.0
    %633 = vmatpush.msra.mxu0 0.0
    %634 = vmatpush.msra.mxu0 0.0
    %635 = vmatpush.msra.mxu0 0.0
    %636 = vmatpush.msra.mxu0 0.0
    %637 = vmatpush.msra.mxu0 0.0
    %638 = vmatpush.msra.mxu0 0.0
    %639 = vmatpush.msra.mxu0 0.0
    %640 = vmatpush.msra.mxu0 %v624
    %641 = vmatmul.f32.gmra.mxu0 %v95
    %v642 = vpop.f32.mrf.mxu0
    %v643 = vadd.f32 0.0, %v642
    %644 = vdwg.mxu0
    %v645 = vadd.f32 %v623, %v643
    %v646 = vld [vmem:[#allocation2 + $0x1e8] sm:$0x1]
    %v647 = vperm.slane %v646, 0
    %v648 = vadd.f32 %v645, %v647
    %v649 = vld [vmem:[#allocation2 + $0x1f0] sm:$0xff]
    %v650 = vld [vmem:[#allocation2 + $0x1f8] sm:$0xff]
    %v651 = vld [vmem:[#allocation2 + $0x200] sm:$0x1]
    %v652 = vperm.slane %v651, 0
    %v654 = vsel %vm69, %v648, 0
    %656 = vmatpush.msra.mxu0 0.0
    %657 = vmatpush.msra.mxu0 0.0
    %658 = vmatpush.msra.mxu0 0.0
    %659 = vmatpush.msra.mxu0 0.0
    %660 = vmatpush.msra.mxu0 0.0
    %661 = vmatpush.msra.mxu0 0.0
    %662 = vmatpush.msra.mxu0 0.0
    %663 = vmatpush.msra.mxu0 0.0
    %664 = vmatpush.msra.mxu0 0.0
    %665 = vmatpush.msra.mxu0 0.0
    %666 = vmatpush.msra.mxu0 0.0
    %667 = vmatpush.msra.mxu0 0.0
    %668 = vmatpush.msra.mxu0 0.0
    %669 = vmatpush.msra.mxu0 0.0
    %670 = vmatpush.msra.mxu0 %v650
    %671 = vmatpush.msra.mxu0 %v649
    %672 = vmatmul.f32.gmra.mxu0 %v654
    %v673 = vpop.f32.mrf.mxu0
    %v674 = vadd.f32 %v652, %v673
    %675 = vdwg.mxu0
    %v676 = vld [vmem:[#allocation2 + $0x208] sm:$0x1]
    %v677 = vld [vmem:[#allocation2 + $0x210] sm:$0x1]
    %vm678 = vcmask 326720
    %v679 = vsel %vm678, %v674, 0.0
    %v680 = vrot.slane %v679, 4
    %v681 = vadd.f32 %v679, %v680
    %v682 = vrot.slane %v681, 2
    %v683 = vadd.f32 %v681, %v682
    %v684 = vrot.slane %v683, 1
    %v685 = vadd.f32 %v683, %v684
    %v686 = vmul.f32 %v685, %v164
    %v687 = vsub.f32 %v674, %v686
    %v688 = vmul.f32 %v687, %v687
    %v689 = vsel %vm678, %v688, 0.0
    %v690 = vrot.slane %v689, 4
    %v691 = vadd.f32 %v689, %v690
    %v692 = vrot.slane %v691, 2
    %v693 = vadd.f32 %v691, %v692
    %v694 = vrot.slane %v693, 1
    %v695 = vadd.f32 %v693, %v694
    %v696 = vmul.f32 %v695, %v164
    %v697 = vadd.f32 %v696, 1e-05
    %v698 = vrsqrt.pop %v697
    %v699 = vmul.f32 %v698, %v697
    %v700 = vmul.f32 %v699, %v698
    %v701 = vmul.f32 0.5, %v700
    %v702 = vsub.f32 1.5, %v701
    %v703 = vmul.f32 %v698, %v702
    %vm704 = vweird.f32 %v697
    %vm705 = vweird.f32 %v698
    %vm706 = vmor %vm704, %vm705
    %v707 = vsel %vm706, %v698, %v703
    %v708 = vmul.f32 %v687, %v707
    %v709 = vperm.slane %v676, 0
    %711 = vrot.lane.b32.xlu0 %v709, 8
    %v712 = vpop.permute.xlu0 %711
    %v714 = vmul.f32 %v708, %v712
    %v715 = vperm.slane %v677, 0
    %717 = vrot.lane.b32.xlu0 %v715, 8
    %v718 = vpop.permute.xlu0 %717
    %v720 = vadd.f32 %v714, %v718
    %v721 = vmax.f32 %v720, 0.0
    %v722 = vld [vmem:[#allocation2 + $0x218] sm:$0xff]
    %v723 = vld [vmem:[#allocation2 + $0x220] sm:$0xff]
    %v724 = vld [vmem:[#allocation2 + $0x228] sm:$0xff]
    %v725 = vld [vmem:[#allocation2 + $0x230] sm:$0xff]
    %v726 = vld [vmem:[#allocation2 + $0x238] sm:$0x1]
    %v727 = vperm.slane %v726, 0
    %729 = vrot.lane.b32.xlu0 %v721, 120
    %v730 = vpop.permute.xlu0 %729
    %v731 = vsel %vm150, %v730, 0
    %733 = vmatpush.msra.mxu0 0.0
    %734 = vmatpush.msra.mxu0 0.0
    %735 = vmatpush.msra.mxu0 0.0
    %736 = vmatpush.msra.mxu0 0.0
    %737 = vmatpush.msra.mxu0 0.0
    %738 = vmatpush.msra.mxu0 0.0
    %739 = vmatpush.msra.mxu0 0.0
    %740 = vmatpush.msra.mxu0 0.0
    %741 = vmatpush.msra.mxu0 0.0
    %742 = vmatpush.msra.mxu0 0.0
    %743 = vmatpush.msra.mxu0 0.0
    %744 = vmatpush.msra.mxu0 0.0
    %745 = vmatpush.msra.mxu0 %v725
    %746 = vmatpush.msra.mxu0 %v724
    %747 = vmatpush.msra.mxu0 %v723
    %748 = vmatpush.msra.mxu0 %v722
    %749 = vmatmul.f32.gmra.mxu0 %v731
    %v750 = vpop.f32.mrf.mxu0
    %v751 = vadd.f32 %v727, %v750
    %752 = vdwg.mxu0
    %v753 = vadd.f32 %v674, %v751
    %v754 = vld [vmem:[#allocation2 + $0x240] sm:$0x1]
    %v755 = vld [vmem:[#allocation2 + $0x248] sm:$0x1]
    %v756 = vsel %vm40, %v753, 0.0
    %v757 = vrot.slane %v756, 4
    %v758 = vadd.f32 %v756, %v757
    %v759 = vrot.slane %v758, 2
    %v760 = vadd.f32 %v758, %v759
    %v761 = vrot.slane %v760, 1
    %v762 = vadd.f32 %v760, %v761
    %v763 = vmul.f32 %v762, %v164
    %v764 = vsub.f32 %v753, %v763
    %v765 = vmul.f32 %v764, %v764
    %v766 = vsel %vm40, %v765, 0.0
    %v767 = vrot.slane %v766, 4
    %v768 = vadd.f32 %v766, %v767
    %v769 = vrot.slane %v768, 2
    %v770 = vadd.f32 %v768, %v769
    %v771 = vrot.slane %v770, 1
    %v772 = vadd.f32 %v770, %v771
    %v773 = vmul.f32 %v772, %v164
    %v774 = vadd.f32 %v773, 1e-05
    %v775 = vrsqrt.pop %v774
    %v776 = vmul.f32 %v775, %v774
    %v777 = vmul.f32 %v776, %v775
    %v778 = vmul.f32 0.5, %v777
    %v779 = vsub.f32 1.5, %v778
    %v780 = vmul.f32 %v775, %v779
    %vm781 = vweird.f32 %v774
    %vm782 = vweird.f32 %v775
    %vm783 = vmor %vm781, %vm782
    %v784 = vsel %vm783, %v775, %v780
    %v785 = vmul.f32 %v764, %v784
    %v786 = vperm.slane %v754, 0
    %v787 = vmul.f32 %v785, %v786
    %v788 = vperm.slane %v755, 0
    %v789 = vadd.f32 %v787, %v788
    %v790 = vmax.f32 %v789, 0.0
    %792 = vrot.lane.b32.xlu0 %v91, 112
    %v793 = vpop.permute.xlu0 %792
    %v795 = vadd.f32 %v790, %v793
    %v796 = vld [vmem:[#allocation2 + $0x250] sm:$0x1]
    %v797 = vld [vmem:[#allocation2 + $0x258] sm:$0x1]
    %v798 = vsel %vm40, %v795, 0.0
    %799 = vadd.xlane.f32.xlu0 %v798
    %v800 = vpop.xlane.xlu0 %799
    %v801 = vmul.f32 %v800, %v164
    %v802 = vsub.f32 %v795, %v801
    %v803 = vmul.f32 %v802, %v802
    %v804 = vsel %vm40, %v803, 0.0
    %805 = vadd.xlane.f32.xlu0 %v804
    %v806 = vpop.xlane.xlu0 %805
    %v807 = vmul.f32 %v806, %v164
    %v808 = vadd.f32 %v807, 1e-05
    %v809 = vrsqrt.pop %v808
    %v810 = vmul.f32 %v809, %v808
    %v811 = vmul.f32 %v810, %v809
    %v812 = vmul.f32 0.5, %v811
    %v813 = vsub.f32 1.5, %v812
    %v814 = vmul.f32 %v809, %v813
    %vm815 = vweird.f32 %v808
    %vm816 = vweird.f32 %v809
    %vm817 = vmor %vm815, %vm816
    %v818 = vsel %vm817, %v809, %v814
    %v819 = vmul.f32 %v802, %v818
    %v820 = vperm.slane %v796, 0
    %v821 = vmul.f32 %v819, %v820
    %v822 = vperm.slane %v797, 0
    %v823 = vadd.f32 %v821, %v822
    %v824 = vld [vmem:[#allocation2 + $0x260] sm:$0xff]
    %v825 = vld [vmem:[#allocation2 + $0x268] sm:$0x1]
    %v826 = vperm.slane %v825, 0
    %v828 = vsel %vm40, %v823, 0
    %830 = vmatpush.msra.mxu0 0.0
    %831 = vmatpush.msra.mxu0 0.0
    %832 = vmatpush.msra.mxu0 0.0
    %833 = vmatpush.msra.mxu0 0.0
    %834 = vmatpush.msra.mxu0 0.0
    %835 = vmatpush.msra.mxu0 0.0
    %836 = vmatpush.msra.mxu0 0.0
    %837 = vmatpush.msra.mxu0 0.0
    %838 = vmatpush.msra.mxu0 0.0
    %839 = vmatpush.msra.mxu0 0.0
    %840 = vmatpush.msra.mxu0 0.0
    %841 = vmatpush.msra.mxu0 0.0
    %842 = vmatpush.msra.mxu0 0.0
    %843 = vmatpush.msra.mxu0 0.0
    %844 = vmatpush.msra.mxu0 0.0
    %845 = vmatpush.msra.mxu0 %v824
    %846 = vmatmul.f32.gmra.mxu0 %v828
    %v847 = vpop.f32.mrf.mxu0
    %v848 = vadd.f32 %v826, %v847
    %849 = vdwg.mxu0
    %v850 = vmax.f32 %v848, 0.0
    %v851 = vld [vmem:[#allocation2 + $0x270] sm:$0xff]
    %v852 = vld [vmem:[#allocation2 + $0x278] sm:$0xff]
    %v853 = vld [vmem:[#allocation2 + $0x280] sm:$0xff]
    %v854 = vld [vmem:[#allocation2 + $0x288] sm:$0xff]
    %v855 = vld [vmem:[#allocation2 + $0x290] sm:$0x1]
    %v856 = vperm.slane %v855, 0
    %v858 = vsel %vm150, %v850, 0
    %860 = vmatpush.msra.mxu0 0.0
    %861 = vmatpush.msra.mxu0 0.0
    %862 = vmatpush.msra.mxu0 0.0
    %863 = vmatpush.msra.mxu0 0.0
    %864 = vmatpush.msra.mxu0 0.0
    %865 = vmatpush.msra.mxu0 0.0
    %866 = vmatpush.msra.mxu0 0.0
    %867 = vmatpush.msra.mxu0 0.0
    %868 = vmatpush.msra.mxu0 0.0
    %869 = vmatpush.msra.mxu0 0.0
    %870 = vmatpush.msra.mxu0 0.0
    %871 = vmatpush.msra.mxu0 0.0
    %872 = vmatpush.msra.mxu0 %v854
    %873 = vmatpush.msra.mxu0 %v853
    %874 = vmatpush.msra.mxu0 %v852
    %875 = vmatpush.msra.mxu0 %v851
    %876 = vmatmul.f32.gmra.mxu0 %v858
    %v877 = vpop.f32.mrf.mxu0
    %v878 = vadd.f32 %v856, %v877
    %879 = vdwg.mxu0
    %v880 = vadd.f32 %v823, %v878
    %v881 = vld [vmem:[#allocation2 + $0x298] sm:$0x1]
    %v882 = vld [vmem:[#allocation2 + $0x2a0] sm:$0x1]
    %v883 = vsel %vm40, %v880, 0.0
    %884 = vadd.xlane.f32.xlu0 %v883
    %v885 = vpop.xlane.xlu0 %884
    %v886 = vmul.f32 %v885, %v164
    %v887 = vsub.f32 %v880, %v886
    %v888 = vmul.f32 %v887, %v887
    %v889 = vsel %vm40, %v888, 0.0
    %890 = vadd.xlane.f32.xlu0 %v889
    %v891 = vpop.xlane.xlu0 %890
    %v892 = vmul.f32 %v891, %v164
    %v893 = vadd.f32 %v892, 1e-05
    %v894 = vrsqrt.pop %v893
    %v895 = vmul.f32 %v894, %v893
    %v896 = vmul.f32 %v895, %v894
    %v897 = vmul.f32 0.5, %v896
    %v898 = vsub.f32 1.5, %v897
    %v899 = vmul.f32 %v894, %v898
    %vm900 = vweird.f32 %v893
    %vm901 = vweird.f32 %v894
    %vm902 = vmor %vm900, %vm901
    %v903 = vsel %vm902, %v894, %v899
    %v904 = vmul.f32 %v887, %v903
    %v905 = vperm.slane %v881, 0
    %v906 = vmul.f32 %v904, %v905
    %v907 = vperm.slane %v882, 0
    %v908 = vadd.f32 %v906, %v907
    %v909 = vld [vmem:[#allocation2 + $0x2a8] sm:$0xff]
    %v910 = vld [vmem:[#allocation2 + $0x2b0] sm:$0x1]
    %v911 = vperm.slane %v910, 0
    %v913 = vsel %vm40, %v908, 0
    %915 = vmatpush.msra.mxu0 0.0
    %916 = vmatpush.msra.mxu0 0.0
    %917 = vmatpush.msra.mxu0 0.0
    %918 = vmatpush.msra.mxu0 0.0
    %919 = vmatpush.msra.mxu0 0.0
    %920 = vmatpush.msra.mxu0 0.0
    %921 = vmatpush.msra.mxu0 0.0
    %922 = vmatpush.msra.mxu0 0.0
    %923 = vmatpush.msra.mxu0 0.0
    %924 = vmatpush.msra.mxu0 0.0
    %925 = vmatpush.msra.mxu0 0.0
    %926 = vmatpush.msra.mxu0 0.0
    %927 = vmatpush.msra.mxu0 0.0
    %928 = vmatpush.msra.mxu0 0.0
    %929 = vmatpush.msra.mxu0 0.0
    %930 = vmatpush.msra.mxu0 %v909
    %931 = vmatmul.f32.gmra.mxu0 %v913
    %v932 = vpop.f32.mrf.mxu0
    %v933 = vadd.f32 %v911, %v932
    %934 = vdwg.mxu0
    %v935 = vld [vmem:[#allocation2 + $0x2b8] sm:$0x1]
    %v936 = vld [vmem:[#allocation2 + $0x2c0] sm:$0x1]
    %v937 = vsel %vm69, %v933, 0.0
    %v938 = vrot.slane %v937, 4
    %v939 = vadd.f32 %v937, %v938
    %v940 = vrot.slane %v939, 2
    %v941 = vadd.f32 %v939, %v940
    %v942 = vrot.slane %v941, 1
    %v943 = vadd.f32 %v941, %v942
    %v944 = vmul.f32 %v943, %v164
    %v945 = vsub.f32 %v933, %v944
    %v946 = vmul.f32 %v945, %v945
    %v947 = vsel %vm69, %v946, 0.0
    %v948 = vrot.slane %v947, 4
    %v949 = vadd.f32 %v947, %v948
    %v950 = vrot.slane %v949, 2
    %v951 = vadd.f32 %v949, %v950
    %v952 = vrot.slane %v951, 1
    %v953 = vadd.f32 %v951, %v952
    %v954 = vmul.f32 %v953, %v164
    %v955 = vadd.f32 %v954, 1e-05
    %v956 = vrsqrt.pop %v955
    %v957 = vmul.f32 %v956, %v955
    %v958 = vmul.f32 %v957, %v956
    %v959 = vmul.f32 0.5, %v958
    %v960 = vsub.f32 1.5, %v959
    %v961 = vmul.f32 %v956, %v960
    %vm962 = vweird.f32 %v955
    %vm963 = vweird.f32 %v956
    %vm964 = vmor %vm962, %vm963
    %v965 = vsel %vm964, %v956, %v961
    %v966 = vmul.f32 %v945, %v965
    %v967 = vperm.slane %v935, 0
    %v968 = vmul.f32 %v966, %v967
    %v969 = vperm.slane %v936, 0
    %v970 = vadd.f32 %v968, %v969
    %v971 = vmax.f32 %v970, 0.0
    %v972 = vld [vmem:[#allocation2 + $0x2c8] sm:$0xff]
    %v973 = vld [vmem:[#allocation2 + $0x2d0] sm:$0xff]
    %v974 = vld [vmem:[#allocation2 + $0x2d8] sm:$0x1]
    %v975 = vperm.slane %v974, 0
    %v977 = vsel %vm69, %v971, 0
    %979 = vmatpush.msra.mxu0 0.0
    %980 = vmatpush.msra.mxu0 0.0
    %981 = vmatpush.msra.mxu0 0.0
    %982 = vmatpush.msra.mxu0 0.0
    %983 = vmatpush.msra.mxu0 0.0
    %984 = vmatpush.msra.mxu0 0.0
    %985 = vmatpush.msra.mxu0 0.0
    %986 = vmatpush.msra.mxu0 0.0
    %987 = vmatpush.msra.mxu0 0.0
    %988 = vmatpush.msra.mxu0 0.0
    %989 = vmatpush.msra.mxu0 0.0
    %990 = vmatpush.msra.mxu0 0.0
    %991 = vmatpush.msra.mxu0 0.0
    %992 = vmatpush.msra.mxu0 0.0
    %993 = vmatpush.msra.mxu0 %v973
    %994 = vmatpush.msra.mxu0 %v972
    %995 = vmatmul.f32.gmra.mxu0 %v977
    %v996 = vpop.f32.mrf.mxu0
    %v997 = vadd.f32 %v975, %v996
    %998 = vdwg.mxu0
    %v999 = vadd.f32 %v908, %v997
    %v1000 = vld [vmem:[#allocation2 + $0x2e0] sm:$0x1]
    %v1001 = vld [vmem:[#allocation2 + $0x2e8] sm:$0x1]
    %v1002 = vsel %vm40, %v999, 0.0
    %v1003 = vrot.slane %v1002, 4
    %v1004 = vadd.f32 %v1002, %v1003
    %v1005 = vrot.slane %v1004, 2
    %v1006 = vadd.f32 %v1004, %v1005
    %v1007 = vrot.slane %v1006, 1
    %v1008 = vadd.f32 %v1006, %v1007
    %v1009 = vmul.f32 %v1008, %v164
    %v1010 = vsub.f32 %v999, %v1009
    %v1011 = vmul.f32 %v1010, %v1010
    %v1012 = vsel %vm40, %v1011, 0.0
    %v1013 = vrot.slane %v1012, 4
    %v1014 = vadd.f32 %v1012, %v1013
    %v1015 = vrot.slane %v1014, 2
    %v1016 = vadd.f32 %v1014, %v1015
    %v1017 = vrot.slane %v1016, 1
    %v1018 = vadd.f32 %v1016, %v1017
    %v1019 = vmul.f32 %v1018, %v164
    %v1020 = vadd.f32 %v1019, 1e-05
    %v1021 = vrsqrt.pop %v1020
    %v1022 = vmul.f32 %v1021, %v1020
    %v1023 = vmul.f32 %v1022, %v1021
    %v1024 = vmul.f32 0.5, %v1023
    %v1025 = vsub.f32 1.5, %v1024
    %v1026 = vmul.f32 %v1021, %v1025
    %vm1027 = vweird.f32 %v1020
    %vm1028 = vweird.f32 %v1021
    %vm1029 = vmor %vm1027, %vm1028
    %v1030 = vsel %vm1029, %v1021, %v1026
    %v1031 = vmul.f32 %v1010, %v1030
    %v1032 = vperm.slane %v1000, 0
    %v1033 = vmul.f32 %v1031, %v1032
    %v1034 = vperm.slane %v1001, 0
    %v1035 = vadd.f32 %v1033, %v1034
    %v1036 = vmax.f32 %v1035, 0.0
    %v1037 = vld [vmem:[#allocation2 + $0x2f0] sm:$0xff]
    %1038 = vmatpush.msra.mxu0 0.0
    %1039 = vmatpush.msra.mxu0 0.0
    %1040 = vmatpush.msra.mxu0 0.0
    %1041 = vmatpush.msra.mxu0 0.0
    %1042 = vmatpush.msra.mxu0 0.0
    %1043 = vmatpush.msra.mxu0 0.0
    %1044 = vmatpush.msra.mxu0 0.0
    %1045 = vmatpush.msra.mxu0 0.0
    %1046 = vmatpush.msra.mxu0 0.0
    %1047 = vmatpush.msra.mxu0 0.0
    %1048 = vmatpush.msra.mxu0 0.0
    %1049 = vmatpush.msra.mxu0 0.0
    %1050 = vmatpush.msra.mxu0 0.0
    %1051 = vmatpush.msra.mxu0 0.0
    %1052 = vmatpush.msra.mxu0 0.0
    %1053 = vmatpush.msra.mxu0 %v1037
    %1054 = vmatmul.f32.gmra.mxu0 %v95
    %v1055 = vpop.f32.mrf.mxu0
    %v1056 = vadd.f32 0.0, %v1055
    %1057 = vdwg.mxu0
    %v1058 = vadd.f32 %v1036, %v1056
    %v1059 = vld [vmem:[#allocation2 + $0x2f8] sm:$0x1]
    %v1060 = vperm.slane %v1059, 0
    %v1061 = vadd.f32 %v1058, %v1060
    %v1062 = vld [vmem:[#allocation2 + $0x300] sm:$0xff]
    %v1063 = vld [vmem:[#allocation2 + $0x308] sm:$0x1]
    %v1064 = vperm.slane %v1063, 0
    %v1066 = vsel %vm40, %v1061, 0
    %1068 = vmatpush.msra.mxu0 0.0
    %1069 = vmatpush.msra.mxu0 0.0
    %1070 = vmatpush.msra.mxu0 0.0
    %1071 = vmatpush.msra.mxu0 0.0
    %1072 = vmatpush.msra.mxu0 0.0
    %1073 = vmatpush.msra.mxu0 0.0
    %1074 = vmatpush.msra.mxu0 0.0
    %1075 = vmatpush.msra.mxu0 0.0
    %1076 = vmatpush.msra.mxu0 0.0
    %1077 = vmatpush.msra.mxu0 0.0
    %1078 = vmatpush.msra.mxu0 0.0
    %1079 = vmatpush.msra.mxu0 0.0
    %1080 = vmatpush.msra.mxu0 0.0
    %1081 = vmatpush.msra.mxu0 0.0
    %1082 = vmatpush.msra.mxu0 0.0
    %1083 = vmatpush.msra.mxu0 %v1062
    %1084 = vmatmul.f32.gmra.mxu0 %v1066
    %v1085 = vpop.f32.mrf.mxu0
    %v1086 = vadd.f32 %v1064, %v1085
    %1087 = vdwg.mxu0
    %v1088 = vld [vmem:[#allocation2 + $0x310] sm:$0x1]
    %v1089 = vld [vmem:[#allocation2 + $0x318] sm:$0x1]
    %v1090 = vsel %vm69, %v1086, 0.0
    %v1091 = vrot.slane %v1090, 4
    %v1092 = vadd.f32 %v1090, %v1091
    %v1093 = vrot.slane %v1092, 2
    %v1094 = vadd.f32 %v1092, %v1093
    %v1095 = vrot.slane %v1094, 1
    %v1096 = vadd.f32 %v1094, %v1095
    %v1097 = vmul.f32 %v1096, %v164
    %v1098 = vsub.f32 %v1086, %v1097
    %v1099 = vmul.f32 %v1098, %v1098
    %v1100 = vsel %vm69, %v1099, 0.0
    %v1101 = vrot.slane %v1100, 4
    %v1102 = vadd.f32 %v1100, %v1101
    %v1103 = vrot.slane %v1102, 2
    %v1104 = vadd.f32 %v1102, %v1103
    %v1105 = vrot.slane %v1104, 1
    %v1106 = vadd.f32 %v1104, %v1105
    %v1107 = vmul.f32 %v1106, %v164
    %v1108 = vadd.f32 %v1107, 1e-05
    %v1109 = vrsqrt.pop %v1108
    %v1110 = vmul.f32 %v1109, %v1108
    %v1111 = vmul.f32 %v1110, %v1109
    %v1112 = vmul.f32 0.5, %v1111
    %v1113 = vsub.f32 1.5, %v1112
    %v1114 = vmul.f32 %v1109, %v1113
    %vm1115 = vweird.f32 %v1108
    %vm1116 = vweird.f32 %v1109
    %vm1117 = vmor %vm1115, %vm1116
    %v1118 = vsel %vm1117, %v1109, %v1114
    %v1119 = vmul.f32 %v1098, %v1118
    %v1120 = vperm.slane %v1088, 0
    %v1121 = vmul.f32 %v1119, %v1120
    %v1122 = vperm.slane %v1089, 0
    %v1123 = vadd.f32 %v1121, %v1122
    %v1124 = vmax.f32 %v1123, 0.0
    %v1125 = vld [vmem:[#allocation2 + $0x320] sm:$0xff]
    %v1126 = vld [vmem:[#allocation2 + $0x328] sm:$0xff]
    %v1127 = vld [vmem:[#allocation2 + $0x330] sm:$0x1]
    %v1128 = vperm.slane %v1127, 0
    %v1130 = vsel %vm69, %v1124, 0
    %1132 = vmatpush.msra.mxu0 0.0
    %1133 = vmatpush.msra.mxu0 0.0
    %1134 = vmatpush.msra.mxu0 0.0
    %1135 = vmatpush.msra.mxu0 0.0
    %1136 = vmatpush.msra.mxu0 0.0
    %1137 = vmatpush.msra.mxu0 0.0
    %1138 = vmatpush.msra.mxu0 0.0
    %1139 = vmatpush.msra.mxu0 0.0
    %1140 = vmatpush.msra.mxu0 0.0
    %1141 = vmatpush.msra.mxu0 0.0
    %1142 = vmatpush.msra.mxu0 0.0
    %1143 = vmatpush.msra.mxu0 0.0
    %1144 = vmatpush.msra.mxu0 0.0
    %1145 = vmatpush.msra.mxu0 0.0
    %1146 = vmatpush.msra.mxu0 %v1126
    %1147 = vmatpush.msra.mxu0 %v1125
    %1148 = vmatmul.f32.gmra.mxu0 %v1130
    %v1149 = vpop.f32.mrf.mxu0
    %v1150 = vadd.f32 %v1128, %v1149
    %1151 = vdwg.mxu0
    %v1152 = vadd.f32 %v1061, %v1150
    %v1153 = vld [vmem:[#allocation2 + $0x338] sm:$0x1]
    %v1154 = vld [vmem:[#allocation2 + $0x340] sm:$0x1]
    %v1155 = vsel %vm40, %v1152, 0.0
    %v1156 = vrot.slane %v1155, 4
    %v1157 = vadd.f32 %v1155, %v1156
    %v1158 = vrot.slane %v1157, 2
    %v1159 = vadd.f32 %v1157, %v1158
    %v1160 = vrot.slane %v1159, 1
    %v1161 = vadd.f32 %v1159, %v1160
    %v1162 = vmul.f32 %v1161, %v164
    %v1163 = vsub.f32 %v1152, %v1162
    %v1164 = vmul.f32 %v1163, %v1163
    %v1165 = vsel %vm40, %v1164, 0.0
    %v1166 = vrot.slane %v1165, 4
    %v1167 = vadd.f32 %v1165, %v1166
    %v1168 = vrot.slane %v1167, 2
    %v1169 = vadd.f32 %v1167, %v1168
    %v1170 = vrot.slane %v1169, 1
    %v1171 = vadd.f32 %v1169, %v1170
    %v1172 = vmul.f32 %v1171, %v164
    %v1173 = vadd.f32 %v1172, 1e-05
    %v1174 = vrsqrt.pop %v1173
    %v1175 = vmul.f32 %v1174, %v1173
    %v1176 = vmul.f32 %v1175, %v1174
    %v1177 = vmul.f32 0.5, %v1176
    %v1178 = vsub.f32 1.5, %v1177
    %v1179 = vmul.f32 %v1174, %v1178
    %vm1180 = vweird.f32 %v1173
    %vm1181 = vweird.f32 %v1174
    %vm1182 = vmor %vm1180, %vm1181
    %v1183 = vsel %vm1182, %v1174, %v1179
    %v1184 = vmul.f32 %v1163, %v1183
    %v1185 = vperm.slane %v1153, 0
    %v1186 = vmul.f32 %v1184, %v1185
    %v1187 = vperm.slane %v1154, 0
    %v1188 = vadd.f32 %v1186, %v1187
    %v1189 = vmax.f32 %v1188, 0.0
    %1190 = vrot.lane.b32.xlu0 %v91, 104
    %v1191 = vpop.permute.xlu0 %1190
    %v1193 = vadd.f32 %v1189, %v1191
    %v1194 = vld [vmem:[#allocation2 + $0x348] sm:$0x1]
    %v1195 = vld [vmem:[#allocation2 + $0x350] sm:$0x1]
    %v1196 = vsel %vm40, %v1193, 0.0
    %1197 = vadd.xlane.f32.xlu0 %v1196
    %v1198 = vpop.xlane.xlu0 %1197
    %v1199 = vmul.f32 %v1198, %v164
    %v1200 = vsub.f32 %v1193, %v1199
    %v1201 = vmul.f32 %v1200, %v1200
    %v1202 = vsel %vm40, %v1201, 0.0
    %1203 = vadd.xlane.f32.xlu0 %v1202
    %v1204 = vpop.xlane.xlu0 %1203
    %v1205 = vmul.f32 %v1204, %v164
    %v1206 = vadd.f32 %v1205, 1e-05
    %v1207 = vrsqrt.pop %v1206
    %v1208 = vmul.f32 %v1207, %v1206
    %v1209 = vmul.f32 %v1208, %v1207
    %v1210 = vmul.f32 0.5, %v1209
    %v1211 = vsub.f32 1.5, %v1210
    %v1212 = vmul.f32 %v1207, %v1211
    %vm1213 = vweird.f32 %v1206
    %vm1214 = vweird.f32 %v1207
    %vm1215 = vmor %vm1213, %vm1214
    %v1216 = vsel %vm1215, %v1207, %v1212
    %v1217 = vmul.f32 %v1200, %v1216
    %v1218 = vperm.slane %v1194, 0
    %v1219 = vmul.f32 %v1217, %v1218
    %v1220 = vperm.slane %v1195, 0
    %v1221 = vadd.f32 %v1219, %v1220
    %v1222 = vld [vmem:[#allocation2 + $0x358] sm:$0xff]
    %v1223 = vld [vmem:[#allocation2 + $0x360] sm:$0x1]
    %v1224 = vperm.slane %v1223, 0
    %v1226 = vsel %vm40, %v1221, 0
    %1228 = vmatpush.msra.mxu0 0.0
    %1229 = vmatpush.msra.mxu0 0.0
    %1230 = vmatpush.msra.mxu0 0.0
    %1231 = vmatpush.msra.mxu0 0.0
    %1232 = vmatpush.msra.mxu0 0.0
    %1233 = vmatpush.msra.mxu0 0.0
    %1234 = vmatpush.msra.mxu0 0.0
    %1235 = vmatpush.msra.mxu0 0.0
    %1236 = vmatpush.msra.mxu0 0.0
    %1237 = vmatpush.msra.mxu0 0.0
    %1238 = vmatpush.msra.mxu0 0.0
    %1239 = vmatpush.msra.mxu0 0.0
    %1240 = vmatpush.msra.mxu0 0.0
    %1241 = vmatpush.msra.mxu0 0.0
    %1242 = vmatpush.msra.mxu0 0.0
    %1243 = vmatpush.msra.mxu0 %v1222
    %1244 = vmatmul.f32.gmra.mxu0 %v1226
    %v1245 = vpop.f32.mrf.mxu0
    %v1246 = vadd.f32 %v1224, %v1245
    %1247 = vdwg.mxu0
    %v1248 = vmax.f32 %v1246, 0.0
    %v1249 = vld [vmem:[#allocation2 + $0x368] sm:$0xff]
    %v1250 = vld [vmem:[#allocation2 + $0x370] sm:$0xff]
    %v1251 = vld [vmem:[#allocation2 + $0x378] sm:$0xff]
    %v1252 = vld [vmem:[#allocation2 + $0x380] sm:$0xff]
    %v1253 = vld [vmem:[#allocation2 + $0x388] sm:$0x1]
    %v1254 = vperm.slane %v1253, 0
    %v1256 = vsel %vm150, %v1248, 0
    %1258 = vmatpush.msra.mxu0 0.0
    %1259 = vmatpush.msra.mxu0 0.0
    %1260 = vmatpush.msra.mxu0 0.0
    %1261 = vmatpush.msra.mxu0 0.0
    %1262 = vmatpush.msra.mxu0 0.0
    %1263 = vmatpush.msra.mxu0 0.0
    %1264 = vmatpush.msra.mxu0 0.0
    %1265 = vmatpush.msra.mxu0 0.0
    %1266 = vmatpush.msra.mxu0 0.0
    %1267 = vmatpush.msra.mxu0 0.0
    %1268 = vmatpush.msra.mxu0 0.0
    %1269 = vmatpush.msra.mxu0 0.0
    %1270 = vmatpush.msra.mxu0 %v1252
    %1271 = vmatpush.msra.mxu0 %v1251
    %1272 = vmatpush.msra.mxu0 %v1250
    %1273 = vmatpush.msra.mxu0 %v1249
    %1274 = vmatmul.f32.gmra.mxu0 %v1256
    %v1275 = vpop.f32.mrf.mxu0
    %v1276 = vadd.f32 %v1254, %v1275
    %1277 = vdwg.mxu0
    %v1278 = vadd.f32 %v1221, %v1276
    %v1279 = vld [vmem:[#allocation2 + $0x390] sm:$0x1]
    %v1280 = vld [vmem:[#allocation2 + $0x398] sm:$0x1]
    %v1281 = vsel %vm40, %v1278, 0.0
    %1282 = vadd.xlane.f32.xlu0 %v1281
    %v1283 = vpop.xlane.xlu0 %1282
    %v1284 = vmul.f32 %v1283, %v164
    %v1285 = vsub.f32 %v1278, %v1284
    %v1286 = vmul.f32 %v1285, %v1285
    %v1287 = vsel %vm40, %v1286, 0.0
    %1288 = vadd.xlane.f32.xlu0 %v1287
    %v1289 = vpop.xlane.xlu0 %1288
    %v1290 = vmul.f32 %v1289, %v164
    %v1291 = vadd.f32 %v1290, 1e-05
    %v1292 = vrsqrt.pop %v1291
    %v1293 = vmul.f32 %v1292, %v1291
    %v1294 = vmul.f32 %v1293, %v1292
    %v1295 = vmul.f32 0.5, %v1294
    %v1296 = vsub.f32 1.5, %v1295
    %v1297 = vmul.f32 %v1292, %v1296
    %vm1298 = vweird.f32 %v1291
    %vm1299 = vweird.f32 %v1292
    %vm1300 = vmor %vm1298, %vm1299
    %v1301 = vsel %vm1300, %v1292, %v1297
    %v1302 = vmul.f32 %v1285, %v1301
    %v1303 = vperm.slane %v1279, 0
    %v1304 = vmul.f32 %v1302, %v1303
    %v1305 = vperm.slane %v1280, 0
    %v1306 = vadd.f32 %v1304, %v1305
    %v1307 = vld [vmem:[#allocation2 + $0x3a0] sm:$0xff]
    %v1308 = vld [vmem:[#allocation2 + $0x3a8] sm:$0x1]
    %v1309 = vperm.slane %v1308, 0
    %v1311 = vsel %vm40, %v1306, 0
    %1313 = vmatpush.msra.mxu0 0.0
    %1314 = vmatpush.msra.mxu0 0.0
    %1315 = vmatpush.msra.mxu0 0.0
    %1316 = vmatpush.msra.mxu0 0.0
    %1317 = vmatpush.msra.mxu0 0.0
    %1318 = vmatpush.msra.mxu0 0.0
    %1319 = vmatpush.msra.mxu0 0.0
    %1320 = vmatpush.msra.mxu0 0.0
    %1321 = vmatpush.msra.mxu0 0.0
    %1322 = vmatpush.msra.mxu0 0.0
    %1323 = vmatpush.msra.mxu0 0.0
    %1324 = vmatpush.msra.mxu0 0.0
    %1325 = vmatpush.msra.mxu0 0.0
    %1326 = vmatpush.msra.mxu0 0.0
    %1327 = vmatpush.msra.mxu0 0.0
    %1328 = vmatpush.msra.mxu0 %v1307
    %1329 = vmatmul.f32.gmra.mxu0 %v1311
    %v1330 = vpop.f32.mrf.mxu0
    %v1331 = vadd.f32 %v1309, %v1330
    %1332 = vdwg.mxu0
    %v1333 = vld [vmem:[#allocation2 + $0x3b0] sm:$0x1]
    %v1334 = vld [vmem:[#allocation2 + $0x3b8] sm:$0x1]
    %v1335 = vsel %vm69, %v1331, 0.0
    %v1336 = vrot.slane %v1335, 4
    %v1337 = vadd.f32 %v1335, %v1336
    %v1338 = vrot.slane %v1337, 2
    %v1339 = vadd.f32 %v1337, %v1338
    %v1340 = vrot.slane %v1339, 1
    %v1341 = vadd.f32 %v1339, %v1340
    %v1342 = vmul.f32 %v1341, %v164
    %v1343 = vsub.f32 %v1331, %v1342
    %v1344 = vmul.f32 %v1343, %v1343
    %v1345 = vsel %vm69, %v1344, 0.0
    %v1346 = vrot.slane %v1345, 4
    %v1347 = vadd.f32 %v1345, %v1346
    %v1348 = vrot.slane %v1347, 2
    %v1349 = vadd.f32 %v1347, %v1348
    %v1350 = vrot.slane %v1349, 1
    %v1351 = vadd.f32 %v1349, %v1350
    %v1352 = vmul.f32 %v1351, %v164
    %v1353 = vadd.f32 %v1352, 1e-05
    %v1354 = vrsqrt.pop %v1353
    %v1355 = vmul.f32 %v1354, %v1353
    %v1356 = vmul.f32 %v1355, %v1354
    %v1357 = vmul.f32 0.5, %v1356
    %v1358 = vsub.f32 1.5, %v1357
    %v1359 = vmul.f32 %v1354, %v1358
    %vm1360 = vweird.f32 %v1353
    %vm1361 = vweird.f32 %v1354
    %vm1362 = vmor %vm1360, %vm1361
    %v1363 = vsel %vm1362, %v1354, %v1359
    %v1364 = vmul.f32 %v1343, %v1363
    %v1365 = vperm.slane %v1333, 0
    %v1366 = vmul.f32 %v1364, %v1365
    %v1367 = vperm.slane %v1334, 0
    %v1368 = vadd.f32 %v1366, %v1367
    %v1369 = vmax.f32 %v1368, 0.0
    %v1370 = vld [vmem:[#allocation2 + $0x3c0] sm:$0xff]
    %v1371 = vld [vmem:[#allocation2 + $0x3c8] sm:$0xff]
    %v1372 = vld [vmem:[#allocation2 + $0x3d0] sm:$0x1]
    %v1373 = vperm.slane %v1372, 0
    %v1375 = vsel %vm69, %v1369, 0
    %1377 = vmatpush.msra.mxu0 0.0
    %1378 = vmatpush.msra.mxu0 0.0
    %1379 = vmatpush.msra.mxu0 0.0
    %1380 = vmatpush.msra.mxu0 0.0
    %1381 = vmatpush.msra.mxu0 0.0
    %1382 = vmatpush.msra.mxu0 0.0
    %1383 = vmatpush.msra.mxu0 0.0
    %1384 = vmatpush.msra.mxu0 0.0
    %1385 = vmatpush.msra.mxu0 0.0
    %1386 = vmatpush.msra.mxu0 0.0
    %1387 = vmatpush.msra.mxu0 0.0
    %1388 = vmatpush.msra.mxu0 0.0
    %1389 = vmatpush.msra.mxu0 0.0
    %1390 = vmatpush.msra.mxu0 0.0
    %1391 = vmatpush.msra.mxu0 %v1371
    %1392 = vmatpush.msra.mxu0 %v1370
    %1393 = vmatmul.f32.gmra.mxu0 %v1375
    %v1394 = vpop.f32.mrf.mxu0
    %v1395 = vadd.f32 %v1373, %v1394
    %1396 = vdwg.mxu0
    %v1397 = vadd.f32 %v1306, %v1395
    %v1398 = vld [vmem:[#allocation2 + $0x3d8] sm:$0x1]
    %v1399 = vld [vmem:[#allocation2 + $0x3e0] sm:$0x1]
    %v1400 = vsel %vm40, %v1397, 0.0
    %v1401 = vrot.slane %v1400, 4
    %v1402 = vadd.f32 %v1400, %v1401
    %v1403 = vrot.slane %v1402, 2
    %v1404 = vadd.f32 %v1402, %v1403
    %v1405 = vrot.slane %v1404, 1
    %v1406 = vadd.f32 %v1404, %v1405
    %v1407 = vmul.f32 %v1406, %v164
    %v1408 = vsub.f32 %v1397, %v1407
    %v1409 = vmul.f32 %v1408, %v1408
    %v1410 = vsel %vm40, %v1409, 0.0
    %v1411 = vrot.slane %v1410, 4
    %v1412 = vadd.f32 %v1410, %v1411
    %v1413 = vrot.slane %v1412, 2
    %v1414 = vadd.f32 %v1412, %v1413
    %v1415 = vrot.slane %v1414, 1
    %v1416 = vadd.f32 %v1414, %v1415
    %v1417 = vmul.f32 %v1416, %v164
    %v1418 = vadd.f32 %v1417, 1e-05
    %v1419 = vrsqrt.pop %v1418
    %v1420 = vmul.f32 %v1419, %v1418
    %v1421 = vmul.f32 %v1420, %v1419
    %v1422 = vmul.f32 0.5, %v1421
    %v1423 = vsub.f32 1.5, %v1422
    %v1424 = vmul.f32 %v1419, %v1423
    %vm1425 = vweird.f32 %v1418
    %vm1426 = vweird.f32 %v1419
    %vm1427 = vmor %vm1425, %vm1426
    %v1428 = vsel %vm1427, %v1419, %v1424
    %v1429 = vmul.f32 %v1408, %v1428
    %v1430 = vperm.slane %v1398, 0
    %v1431 = vmul.f32 %v1429, %v1430
    %v1432 = vperm.slane %v1399, 0
    %v1433 = vadd.f32 %v1431, %v1432
    %v1434 = vmax.f32 %v1433, 0.0
    %v1435 = vlaneseq
    %v1436 = vshrl.u32 %v1435, 7
    %v1437 = vlaneseq
    %v1438 = vand.u32 %v1437, 127
    %vm1439 = vcmp.eq.s32.totalorder %v1438, %v1436
    %v1440 = vsel %vm1439, 1, 0
    %v1441 = vcvt.s32.f32 %v1440
    %v1442 = vadd.s32 %v1436, 8
    %vm1443 = vcmp.eq.s32.totalorder %v1438, %v1442
    %v1444 = vsel %vm1443, 1, 0
    %v1445 = vcvt.s32.f32 %v1444
    %v1447 = vsel %vm40, %v1036, 0
    %1449 = vmatpush.msra.mxu0 0.0
    %1450 = vmatpush.msra.mxu0 0.0
    %1451 = vmatpush.msra.mxu0 0.0
    %1452 = vmatpush.msra.mxu0 0.0
    %1453 = vmatpush.msra.mxu0 0.0
    %1454 = vmatpush.msra.mxu0 0.0
    %1455 = vmatpush.msra.mxu0 0.0
    %1456 = vmatpush.msra.mxu0 0.0
    %1457 = vmatpush.msra.mxu0 0.0
    %1458 = vmatpush.msra.mxu0 0.0
    %1459 = vmatpush.msra.mxu0 0.0
    %1460 = vmatpush.msra.mxu0 0.0
    %1461 = vmatpush.msra.mxu0 0.0
    %1462 = vmatpush.msra.mxu0 0.0
    %1463 = vmatpush.msra.mxu0 0.0
    %1464 = vmatpush.msra.mxu0 %v1445
    %1465 = vmatmul.f32.gmra.mxu0 %v1447
    %v1466 = vpop.f32.mrf.mxu0
    %v1467 = vadd.f32 0.0, %v1466
    %1468 = vdwg.mxu0
    %v1470 = vsel %vm40, %v1434, 0
    %1472 = vmatpush.msra.mxu0 0.0
    %1473 = vmatpush.msra.mxu0 0.0
    %1474 = vmatpush.msra.mxu0 0.0
    %1475 = vmatpush.msra.mxu0 0.0
    %1476 = vmatpush.msra.mxu0 0.0
    %1477 = vmatpush.msra.mxu0 0.0
    %1478 = vmatpush.msra.mxu0 0.0
    %1479 = vmatpush.msra.mxu0 0.0
    %1480 = vmatpush.msra.mxu0 0.0
    %1481 = vmatpush.msra.mxu0 0.0
    %1482 = vmatpush.msra.mxu0 0.0
    %1483 = vmatpush.msra.mxu0 0.0
    %1484 = vmatpush.msra.mxu0 0.0
    %1485 = vmatpush.msra.mxu0 0.0
    %1486 = vmatpush.msra.mxu0 0.0
    %1487 = vmatpush.msra.mxu0 %v1441
    %1488 = vmatmul.f32.gmra.mxu0 %v1470
    %v1489 = vpop.f32.mrf.mxu0
    %v1490 = vadd.f32 %v1467, %v1489
    %1491 = vdwg.mxu0
    %v1492 = vld [vmem:[#allocation2 + $0x3e8] sm:$0xff]
    %1493 = vmatpush.msra.mxu0 0.0
    %1494 = vmatpush.msra.mxu0 0.0
    %1495 = vmatpush.msra.mxu0 0.0
    %1496 = vmatpush.msra.mxu0 0.0
    %1497 = vmatpush.msra.mxu0 0.0
    %1498 = vmatpush.msra.mxu0 0.0
    %1499 = vmatpush.msra.mxu0 0.0
    %1500 = vmatpush.msra.mxu0 0.0
    %1501 = vmatpush.msra.mxu0 0.0
    %1502 = vmatpush.msra.mxu0 0.0
    %1503 = vmatpush.msra.mxu0 0.0
    %1504 = vmatpush.msra.mxu0 0.0
    %1505 = vmatpush.msra.mxu0 0.0
    %1506 = vmatpush.msra.mxu0 0.0
    %1507 = vmatpush.msra.mxu0 0.0
    %1508 = vmatpush.msra.mxu0 %v1492
    %1509 = vmatmul.f32.gmra.mxu0 %v95
    %v1510 = vpop.f32.mrf.mxu0
    %v1511 = vadd.f32 0.0, %v1510
    %1512 = vdwg.mxu0
    %v1513 = vadd.f32 %v1490, %v1511
    %v1514 = vld [vmem:[#allocation2 + $0x3f0] sm:$0x1]
    %v1515 = vperm.slane %v1514, 0
    %v1516 = vadd.f32 %v1513, %v1515
    %v1517 = vld [vmem:[#allocation2 + $0x3f8] sm:$0xff]
    %v1518 = vld [vmem:[#allocation2 + $0x400] sm:$0xff]
    %v1519 = vld [vmem:[#allocation2 + $0x408] sm:$0x1]
    %v1520 = vperm.slane %v1519, 0
    %v1522 = vsel %vm69, %v1516, 0
    %1524 = vmatpush.msra.mxu0 0.0
    %1525 = vmatpush.msra.mxu0 0.0
    %1526 = vmatpush.msra.mxu0 0.0
    %1527 = vmatpush.msra.mxu0 0.0
    %1528 = vmatpush.msra.mxu0 0.0
    %1529 = vmatpush.msra.mxu0 0.0
    %1530 = vmatpush.msra.mxu0 0.0
    %1531 = vmatpush.msra.mxu0 0.0
    %1532 = vmatpush.msra.mxu0 0.0
    %1533 = vmatpush.msra.mxu0 0.0
    %1534 = vmatpush.msra.mxu0 0.0
    %1535 = vmatpush.msra.mxu0 0.0
    %1536 = vmatpush.msra.mxu0 0.0
    %1537 = vmatpush.msra.mxu0 0.0
    %1538 = vmatpush.msra.mxu0 %v1518
    %1539 = vmatpush.msra.mxu0 %v1517
    %1540 = vmatmul.f32.gmra.mxu0 %v1522
    %v1541 = vpop.f32.mrf.mxu0
    %v1542 = vadd.f32 %v1520, %v1541
    %1543 = vdwg.mxu0
    %v1544 = vld [vmem:[#allocation2 + $0x410] sm:$0x1]
    %v1545 = vld [vmem:[#allocation2 + $0x418] sm:$0x1]
    %v1546 = vsel %vm150, %v1542, 0.0
    %v1547 = vrot.slane %v1546, 4
    %v1548 = vadd.f32 %v1546, %v1547
    %v1549 = vrot.slane %v1548, 2
    %v1550 = vadd.f32 %v1548, %v1549
    %v1551 = vrot.slane %v1550, 1
    %v1552 = vadd.f32 %v1550, %v1551
    %v1553 = vmul.f32 %v1552, %v164
    %v1554 = vsub.f32 %v1542, %v1553
    %v1555 = vmul.f32 %v1554, %v1554
    %v1556 = vsel %vm150, %v1555, 0.0
    %v1557 = vrot.slane %v1556, 4
    %v1558 = vadd.f32 %v1556, %v1557
    %v1559 = vrot.slane %v1558, 2
    %v1560 = vadd.f32 %v1558, %v1559
    %v1561 = vrot.slane %v1560, 1
    %v1562 = vadd.f32 %v1560, %v1561
    %v1563 = vmul.f32 %v1562, %v164
    %v1564 = vadd.f32 %v1563, 1e-05
    %v1565 = vrsqrt.pop %v1564
    %v1566 = vmul.f32 %v1565, %v1564
    %v1567 = vmul.f32 %v1566, %v1565
    %v1568 = vmul.f32 0.5, %v1567
    %v1569 = vsub.f32 1.5, %v1568
    %v1570 = vmul.f32 %v1565, %v1569
    %vm1571 = vweird.f32 %v1564
    %vm1572 = vweird.f32 %v1565
    %vm1573 = vmor %vm1571, %vm1572
    %v1574 = vsel %vm1573, %v1565, %v1570
    %v1575 = vmul.f32 %v1554, %v1574
    %v1576 = vperm.slane %v1544, 0
    %v1577 = vmul.f32 %v1575, %v1576
    %v1578 = vperm.slane %v1545, 0
    %v1579 = vadd.f32 %v1577, %v1578
    %v1580 = vmax.f32 %v1579, 0.0
    %v1581 = vld [vmem:[#allocation2 + $0x420] sm:$0xff]
    %v1582 = vld [vmem:[#allocation2 + $0x428] sm:$0xff]
    %v1583 = vld [vmem:[#allocation2 + $0x430] sm:$0xff]
    %v1584 = vld [vmem:[#allocation2 + $0x438] sm:$0xff]
    %v1585 = vld [vmem:[#allocation2 + $0x440] sm:$0x1]
    %v1586 = vperm.slane %v1585, 0
    %v1588 = vsel %vm150, %v1580, 0
    %1590 = vmatpush.msra.mxu0 0.0
    %1591 = vmatpush.msra.mxu0 0.0
    %1592 = vmatpush.msra.mxu0 0.0
    %1593 = vmatpush.msra.mxu0 0.0
    %1594 = vmatpush.msra.mxu0 0.0
    %1595 = vmatpush.msra.mxu0 0.0
    %1596 = vmatpush.msra.mxu0 0.0
    %1597 = vmatpush.msra.mxu0 0.0
    %1598 = vmatpush.msra.mxu0 0.0
    %1599 = vmatpush.msra.mxu0 0.0
    %1600 = vmatpush.msra.mxu0 0.0
    %1601 = vmatpush.msra.mxu0 0.0
    %1602 = vmatpush.msra.mxu0 %v1584
    %1603 = vmatpush.msra.mxu0 %v1583
    %1604 = vmatpush.msra.mxu0 %v1582
    %1605 = vmatpush.msra.mxu0 %v1581
    %1606 = vmatmul.f32.gmra.mxu0 %v1588
    %v1607 = vpop.f32.mrf.mxu0
    %v1608 = vadd.f32 %v1586, %v1607
    %1609 = vdwg.mxu0
    %v1610 = vadd.f32 %v1516, %v1608
    %v1611 = vld [vmem:[#allocation2 + $0x448] sm:$0x1]
    %v1612 = vld [vmem:[#allocation2 + $0x450] sm:$0x1]
    %v1613 = vsel %vm69, %v1610, 0.0
    %v1614 = vrot.slane %v1613, 4
    %v1615 = vadd.f32 %v1613, %v1614
    %v1616 = vrot.slane %v1615, 2
    %v1617 = vadd.f32 %v1615, %v1616
    %v1618 = vrot.slane %v1617, 1
    %v1619 = vadd.f32 %v1617, %v1618
    %v1620 = vmul.f32 %v1619, %v164
    %v1621 = vsub.f32 %v1610, %v1620
    %v1622 = vmul.f32 %v1621, %v1621
    %v1623 = vsel %vm69, %v1622, 0.0
    %v1624 = vrot.slane %v1623, 4
    %v1625 = vadd.f32 %v1623, %v1624
    %v1626 = vrot.slane %v1625, 2
    %v1627 = vadd.f32 %v1625, %v1626
    %v1628 = vrot.slane %v1627, 1
    %v1629 = vadd.f32 %v1627, %v1628
    %v1630 = vmul.f32 %v1629, %v164
    %v1631 = vadd.f32 %v1630, 1e-05
    %v1632 = vrsqrt.pop %v1631
    %v1633 = vmul.f32 %v1632, %v1631
    %v1634 = vmul.f32 %v1633, %v1632
    %v1635 = vmul.f32 0.5, %v1634
    %v1636 = vsub.f32 1.5, %v1635
    %v1637 = vmul.f32 %v1632, %v1636
    %vm1638 = vweird.f32 %v1631
    %vm1639 = vweird.f32 %v1632
    %vm1640 = vmor %vm1638, %vm1639
    %v1641 = vsel %vm1640, %v1632, %v1637
    %v1642 = vmul.f32 %v1621, %v1641
    %v1643 = vperm.slane %v1611, 0
    %v1644 = vmul.f32 %v1642, %v1643
    %v1645 = vperm.slane %v1612, 0
    %v1646 = vadd.f32 %v1644, %v1645
    %v1647 = vmax.f32 %v1646, 0.0
    %1648 = vrot.lane.b32.xlu0 %v91, 96
    %v1649 = vpop.permute.xlu0 %1648
    %v1651 = vadd.f32 %v1647, %v1649
    %v1652 = vld [vmem:[#allocation2 + $0x458] sm:$0x1]
    %v1653 = vld [vmem:[#allocation2 + $0x460] sm:$0x1]
    %v1654 = vsel %vm69, %v1651, 0.0
    %1655 = vadd.xlane.f32.xlu0 %v1654
    %v1656 = vpop.xlane.xlu0 %1655
    %v1657 = vmul.f32 %v1656, %v379
    %v1658 = vsub.f32 %v1651, %v1657
    %v1659 = vmul.f32 %v1658, %v1658
    %v1660 = vsel %vm69, %v1659, 0.0
    %1661 = vadd.xlane.f32.xlu0 %v1660
    %v1662 = vpop.xlane.xlu0 %1661
    %v1663 = vmul.f32 %v1662, %v379
    %v1664 = vadd.f32 %v1663, 1e-05
    %v1665 = vrsqrt.pop %v1664
    %v1666 = vmul.f32 %v1665, %v1664
    %v1667 = vmul.f32 %v1666, %v1665
    %v1668 = vmul.f32 0.5, %v1667
    %v1669 = vsub.f32 1.5, %v1668
    %v1670 = vmul.f32 %v1665, %v1669
    %vm1671 = vweird.f32 %v1664
    %vm1672 = vweird.f32 %v1665
    %vm1673 = vmor %vm1671, %vm1672
    %v1674 = vsel %vm1673, %v1665, %v1670
    %v1675 = vmul.f32 %v1658, %v1674
    %v1676 = vperm.slane %v1652, 0
    %v1677 = vmul.f32 %v1675, %v1676
    %v1678 = vperm.slane %v1653, 0
    %v1679 = vadd.f32 %v1677, %v1678
    %v1680 = vld [vmem:[#allocation2 + $0x468] sm:$0xff]
    %v1681 = vld [vmem:[#allocation2 + $0x470] sm:$0xff]
    %v1682 = vld [vmem:[#allocation2 + $0x478] sm:$0x1]
    %v1683 = vperm.slane %v1682, 0
    %v1685 = vsel %vm69, %v1679, 0
    %1687 = vmatpush.msra.mxu0 0.0
    %1688 = vmatpush.msra.mxu0 0.0
    %1689 = vmatpush.msra.mxu0 0.0
    %1690 = vmatpush.msra.mxu0 0.0
    %1691 = vmatpush.msra.mxu0 0.0
    %1692 = vmatpush.msra.mxu0 0.0
    %1693 = vmatpush.msra.mxu0 0.0
    %1694 = vmatpush.msra.mxu0 0.0
    %1695 = vmatpush.msra.mxu0 0.0
    %1696 = vmatpush.msra.mxu0 0.0
    %1697 = vmatpush.msra.mxu0 0.0
    %1698 = vmatpush.msra.mxu0 0.0
    %1699 = vmatpush.msra.mxu0 0.0
    %1700 = vmatpush.msra.mxu0 0.0
    %1701 = vmatpush.msra.mxu0 %v1681
    %1702 = vmatpush.msra.mxu0 %v1680
    %1703 = vmatmul.f32.gmra.mxu0 %v1685
    %v1704 = vpop.f32.mrf.mxu0
    %v1705 = vadd.f32 %v1683, %v1704
    %1706 = vdwg.mxu0
    %v1707 = vmax.f32 %v1705, 0.0
    %v1708 = vld [vmem:[#allocation2 + $0x480] sm:$0xff]
    %v1709 = vld [vmem:[#allocation2 + $0x488] sm:$0xff]
    %v1710 = vld [vmem:[#allocation2 + $0x490] sm:$0xff]
    %v1711 = vld [vmem:[#allocation2 + $0x498] sm:$0xff]
    %v1712 = vld [vmem:[#allocation2 + $0x4a0] sm:$0xff]
    %v1713 = vld [vmem:[#allocation2 + $0x4a8] sm:$0xff]
    %v1714 = vld [vmem:[#allocation2 + $0x4b0] sm:$0xff]
    %v1715 = vld [vmem:[#allocation2 + $0x4b8] sm:$0xff]
    %v1716 = vld [vmem:[#allocation2 + $0x4c0] sm:$0x1]
    %v1717 = vperm.slane %v1716, 0
    %v1719 = vsel %vm306, %v1707, 0
    %1721 = vmatpush.msra.mxu0 0.0
    %1722 = vmatpush.msra.mxu0 0.0
    %1723 = vmatpush.msra.mxu0 0.0
    %1724 = vmatpush.msra.mxu0 0.0
    %1725 = vmatpush.msra.mxu0 0.0
    %1726 = vmatpush.msra.mxu0 0.0
    %1727 = vmatpush.msra.mxu0 0.0
    %1728 = vmatpush.msra.mxu0 0.0
    %1729 = vmatpush.msra.mxu0 %v1715
    %1730 = vmatpush.msra.mxu0 %v1714
    %1731 = vmatpush.msra.mxu0 %v1713
    %1732 = vmatpush.msra.mxu0 %v1712
    %1733 = vmatpush.msra.mxu0 %v1711
    %1734 = vmatpush.msra.mxu0 %v1710
    %1735 = vmatpush.msra.mxu0 %v1709
    %1736 = vmatpush.msra.mxu0 %v1708
    %1737 = vmatmul.f32.gmra.mxu0 %v1719
    %v1738 = vpop.f32.mrf.mxu0
    %v1739 = vadd.f32 %v1717, %v1738
    %1740 = vdwg.mxu0
    %v1741 = vadd.f32 %v1679, %v1739
    %v1742 = vld [vmem:[#allocation2 + $0x4c8] sm:$0x1]
    %v1743 = vld [vmem:[#allocation2 + $0x4d0] sm:$0x1]
    %v1744 = vsel %vm69, %v1741, 0.0
    %1745 = vadd.xlane.f32.xlu0 %v1744
    %v1746 = vpop.xlane.xlu0 %1745
    %v1747 = vmul.f32 %v1746, %v379
    %v1748 = vsub.f32 %v1741, %v1747
    %v1749 = vmul.f32 %v1748, %v1748
    %v1750 = vsel %vm69, %v1749, 0.0
    %1751 = vadd.xlane.f32.xlu0 %v1750
    %v1752 = vpop.xlane.xlu0 %1751
    %v1753 = vmul.f32 %v1752, %v379
    %v1754 = vadd.f32 %v1753, 1e-05
    %v1755 = vrsqrt.pop %v1754
    %v1756 = vmul.f32 %v1755, %v1754
    %v1757 = vmul.f32 %v1756, %v1755
    %v1758 = vmul.f32 0.5, %v1757
    %v1759 = vsub.f32 1.5, %v1758
    %v1760 = vmul.f32 %v1755, %v1759
    %vm1761 = vweird.f32 %v1754
    %vm1762 = vweird.f32 %v1755
    %vm1763 = vmor %vm1761, %vm1762
    %v1764 = vsel %vm1763, %v1755, %v1760
    %v1765 = vmul.f32 %v1748, %v1764
    %v1766 = vperm.slane %v1742, 0
    %v1767 = vmul.f32 %v1765, %v1766
    %v1768 = vperm.slane %v1743, 0
    %v1769 = vadd.f32 %v1767, %v1768
    %v1770 = vld [vmem:[#allocation2 + $0x4d8] sm:$0xff]
    %v1771 = vld [vmem:[#allocation2 + $0x4e0] sm:$0xff]
    %v1772 = vld [vmem:[#allocation2 + $0x4e8] sm:$0x1]
    %v1773 = vperm.slane %v1772, 0
    %v1775 = vsel %vm69, %v1769, 0
    %1777 = vmatpush.msra.mxu0 0.0
    %1778 = vmatpush.msra.mxu0 0.0
    %1779 = vmatpush.msra.mxu0 0.0
    %1780 = vmatpush.msra.mxu0 0.0
    %1781 = vmatpush.msra.mxu0 0.0
    %1782 = vmatpush.msra.mxu0 0.0
    %1783 = vmatpush.msra.mxu0 0.0
    %1784 = vmatpush.msra.mxu0 0.0
    %1785 = vmatpush.msra.mxu0 0.0
    %1786 = vmatpush.msra.mxu0 0.0
    %1787 = vmatpush.msra.mxu0 0.0
    %1788 = vmatpush.msra.mxu0 0.0
    %1789 = vmatpush.msra.mxu0 0.0
    %1790 = vmatpush.msra.mxu0 0.0
    %1791 = vmatpush.msra.mxu0 %v1771
    %1792 = vmatpush.msra.mxu0 %v1770
    %1793 = vmatmul.f32.gmra.mxu0 %v1775
    %v1794 = vpop.f32.mrf.mxu0
    %v1795 = vadd.f32 %v1773, %v1794
    %1796 = vdwg.mxu0
    %v1797 = vld [vmem:[#allocation2 + $0x4f0] sm:$0x1]
    %v1798 = vld [vmem:[#allocation2 + $0x4f8] sm:$0x1]
    %v1799 = vsel %vm150, %v1795, 0.0
    %v1800 = vrot.slane %v1799, 4
    %v1801 = vadd.f32 %v1799, %v1800
    %v1802 = vrot.slane %v1801, 2
    %v1803 = vadd.f32 %v1801, %v1802
    %v1804 = vrot.slane %v1803, 1
    %v1805 = vadd.f32 %v1803, %v1804
    %v1806 = vmul.f32 %v1805, %v164
    %v1807 = vsub.f32 %v1795, %v1806
    %v1808 = vmul.f32 %v1807, %v1807
    %v1809 = vsel %vm150, %v1808, 0.0
    %v1810 = vrot.slane %v1809, 4
    %v1811 = vadd.f32 %v1809, %v1810
    %v1812 = vrot.slane %v1811, 2
    %v1813 = vadd.f32 %v1811, %v1812
    %v1814 = vrot.slane %v1813, 1
    %v1815 = vadd.f32 %v1813, %v1814
    %v1816 = vmul.f32 %v1815, %v164
    %v1817 = vadd.f32 %v1816, 1e-05
    %v1818 = vrsqrt.pop %v1817
    %v1819 = vmul.f32 %v1818, %v1817
    %v1820 = vmul.f32 %v1819, %v1818
    %v1821 = vmul.f32 0.5, %v1820
    %v1822 = vsub.f32 1.5, %v1821
    %v1823 = vmul.f32 %v1818, %v1822
    %vm1824 = vweird.f32 %v1817
    %vm1825 = vweird.f32 %v1818
    %vm1826 = vmor %vm1824, %vm1825
    %v1827 = vsel %vm1826, %v1818, %v1823
    %v1828 = vmul.f32 %v1807, %v1827
    %v1829 = vperm.slane %v1797, 0
    %v1830 = vmul.f32 %v1828, %v1829
    %v1831 = vperm.slane %v1798, 0
    %v1832 = vadd.f32 %v1830, %v1831
    %v1833 = vmax.f32 %v1832, 0.0
    %v1834 = vld [vmem:[#allocation2 + $0x500] sm:$0xff]
    %v1835 = vld [vmem:[#allocation2 + $0x508] sm:$0xff]
    %v1836 = vld [vmem:[#allocation2 + $0x510] sm:$0xff]
    %v1837 = vld [vmem:[#allocation2 + $0x518] sm:$0xff]
    %v1838 = vld [vmem:[#allocation2 + $0x520] sm:$0x1]
    %v1839 = vperm.slane %v1838, 0
    %v1841 = vsel %vm150, %v1833, 0
    %1843 = vmatpush.msra.mxu0 0.0
    %1844 = vmatpush.msra.mxu0 0.0
    %1845 = vmatpush.msra.mxu0 0.0
    %1846 = vmatpush.msra.mxu0 0.0
    %1847 = vmatpush.msra.mxu0 0.0
    %1848 = vmatpush.msra.mxu0 0.0
    %1849 = vmatpush.msra.mxu0 0.0
    %1850 = vmatpush.msra.mxu0 0.0
    %1851 = vmatpush.msra.mxu0 0.0
    %1852 = vmatpush.msra.mxu0 0.0
    %1853 = vmatpush.msra.mxu0 0.0
    %1854 = vmatpush.msra.mxu0 0.0
    %1855 = vmatpush.msra.mxu0 %v1837
    %1856 = vmatpush.msra.mxu0 %v1836
    %1857 = vmatpush.msra.mxu0 %v1835
    %1858 = vmatpush.msra.mxu0 %v1834
    %1859 = vmatmul.f32.gmra.mxu0 %v1841
    %v1860 = vpop.f32.mrf.mxu0
    %v1861 = vadd.f32 %v1839, %v1860
    %1862 = vdwg.mxu0
    %v1863 = vadd.f32 %v1769, %v1861
    %v1864 = vld [vmem:[#allocation2 + $0x528] sm:$0x1]
    %v1865 = vld [vmem:[#allocation2 + $0x530] sm:$0x1]
    %v1866 = vsel %vm69, %v1863, 0.0
    %v1867 = vrot.slane %v1866, 4
    %v1868 = vadd.f32 %v1866, %v1867
    %v1869 = vrot.slane %v1868, 2
    %v1870 = vadd.f32 %v1868, %v1869
    %v1871 = vrot.slane %v1870, 1
    %v1872 = vadd.f32 %v1870, %v1871
    %v1873 = vmul.f32 %v1872, %v164
    %v1874 = vsub.f32 %v1863, %v1873
    %v1875 = vmul.f32 %v1874, %v1874
    %v1876 = vsel %vm69, %v1875, 0.0
    %v1877 = vrot.slane %v1876, 4
    %v1878 = vadd.f32 %v1876, %v1877
    %v1879 = vrot.slane %v1878, 2
    %v1880 = vadd.f32 %v1878, %v1879
    %v1881 = vrot.slane %v1880, 1
    %v1882 = vadd.f32 %v1880, %v1881
    %v1883 = vmul.f32 %v1882, %v164
    %v1884 = vadd.f32 %v1883, 1e-05
    %v1885 = vrsqrt.pop %v1884
    %v1886 = vmul.f32 %v1885, %v1884
    %v1887 = vmul.f32 %v1886, %v1885
    %v1888 = vmul.f32 0.5, %v1887
    %v1889 = vsub.f32 1.5, %v1888
    %v1890 = vmul.f32 %v1885, %v1889
    %vm1891 = vweird.f32 %v1884
    %vm1892 = vweird.f32 %v1885
    %vm1893 = vmor %vm1891, %vm1892
    %v1894 = vsel %vm1893, %v1885, %v1890
    %v1895 = vmul.f32 %v1874, %v1894
    %v1896 = vperm.slane %v1864, 0
    %v1897 = vmul.f32 %v1895, %v1896
    %v1898 = vperm.slane %v1865, 0
    %v1899 = vadd.f32 %v1897, %v1898
    %v1900 = vmax.f32 %v1899, 0.0
    %v1901 = vadd.s32 %v1436, 16
    %v1902 = vadd.s32 %v1442, 16
    %vm1903 = vcmp.eq.s32.totalorder %v1438, %v1901
    %vm1904 = vcmp.eq.s32.totalorder %v1438, %v1902
    %v1905 = vsel %vm1903, 1, 0
    %v1906 = vsel %vm1904, 1, 0
    %v1907 = vcvt.s32.f32 %v1905
    %v1908 = vcvt.s32.f32 %v1906
    %v1910 = vsel %vm69, %v623, 0
    %1912 = vmatpush.msra.mxu0 0.0
    %1913 = vmatpush.msra.mxu0 0.0
    %1914 = vmatpush.msra.mxu0 0.0
    %1915 = vmatpush.msra.mxu0 0.0
    %1916 = vmatpush.msra.mxu0 0.0
    %1917 = vmatpush.msra.mxu0 0.0
    %1918 = vmatpush.msra.mxu0 0.0
    %1919 = vmatpush.msra.mxu0 0.0
    %1920 = vmatpush.msra.mxu0 0.0
    %1921 = vmatpush.msra.mxu0 0.0
    %1922 = vmatpush.msra.mxu0 0.0
    %1923 = vmatpush.msra.mxu0 0.0
    %1924 = vmatpush.msra.mxu0 0.0
    %1925 = vmatpush.msra.mxu0 0.0
    %1926 = vmatpush.msra.mxu0 %v1908
    %1927 = vmatpush.msra.mxu0 %v1907
    %1928 = vmatmul.f32.gmra.mxu0 %v1910
    %v1929 = vpop.f32.mrf.mxu0
    %v1930 = vadd.f32 0.0, %v1929
    %1931 = vdwg.mxu0
    %v1933 = vsel %vm69, %v1900, 0
    %1935 = vmatpush.msra.mxu0 0.0
    %1936 = vmatpush.msra.mxu0 0.0
    %1937 = vmatpush.msra.mxu0 0.0
    %1938 = vmatpush.msra.mxu0 0.0
    %1939 = vmatpush.msra.mxu0 0.0
    %1940 = vmatpush.msra.mxu0 0.0
    %1941 = vmatpush.msra.mxu0 0.0
    %1942 = vmatpush.msra.mxu0 0.0
    %1943 = vmatpush.msra.mxu0 0.0
    %1944 = vmatpush.msra.mxu0 0.0
    %1945 = vmatpush.msra.mxu0 0.0
    %1946 = vmatpush.msra.mxu0 0.0
    %1947 = vmatpush.msra.mxu0 0.0
    %1948 = vmatpush.msra.mxu0 0.0
    %1949 = vmatpush.msra.mxu0 %v1445
    %1950 = vmatpush.msra.mxu0 %v1441
    %1951 = vmatmul.f32.gmra.mxu0 %v1933
    %v1952 = vpop.f32.mrf.mxu0
    %v1953 = vadd.f32 %v1930, %v1952
    %1954 = vdwg.mxu0
    %v1955 = vld [vmem:[#allocation2 + $0x538] sm:$0xff]
    %1956 = vmatpush.msra.mxu0 0.0
    %1957 = vmatpush.msra.mxu0 0.0
    %1958 = vmatpush.msra.mxu0 0.0
    %1959 = vmatpush.msra.mxu0 0.0
    %1960 = vmatpush.msra.mxu0 0.0
    %1961 = vmatpush.msra.mxu0 0.0
    %1962 = vmatpush.msra.mxu0 0.0
    %1963 = vmatpush.msra.mxu0 0.0
    %1964 = vmatpush.msra.mxu0 0.0
    %1965 = vmatpush.msra.mxu0 0.0
    %1966 = vmatpush.msra.mxu0 0.0
    %1967 = vmatpush.msra.mxu0 0.0
    %1968 = vmatpush.msra.mxu0 0.0
    %1969 = vmatpush.msra.mxu0 0.0
    %1970 = vmatpush.msra.mxu0 0.0
    %1971 = vmatpush.msra.mxu0 %v1955
    %1972 = vmatmul.f32.gmra.mxu0 %v95
    %v1973 = vpop.f32.mrf.mxu0
    %v1974 = vadd.f32 0.0, %v1973
    %1975 = vdwg.mxu0
    %v1976 = vadd.f32 %v1953, %v1974
    %v1977 = vld [vmem:[#allocation2 + $0x540] sm:$0x1]
    %v1978 = vperm.slane %v1977, 0
    %v1979 = vadd.f32 %v1976, %v1978
    %v1980 = vld [vmem:[#allocation2 + $0x548] sm:$0xff]
    %v1981 = vld [vmem:[#allocation2 + $0x550] sm:$0xff]
    %v1982 = vld [vmem:[#allocation2 + $0x558] sm:$0xff]
    %v1983 = vld [vmem:[#allocation2 + $0x560] sm:$0xff]
    %v1984 = vld [vmem:[#allocation2 + $0x568] sm:$0x1]
    %v1985 = vperm.slane %v1984, 0
    %v1987 = vsel %vm150, %v1979, 0
    %1989 = vmatpush.msra.mxu0 0.0
    %1990 = vmatpush.msra.mxu0 0.0
    %1991 = vmatpush.msra.mxu0 0.0
    %1992 = vmatpush.msra.mxu0 0.0
    %1993 = vmatpush.msra.mxu0 0.0
    %1994 = vmatpush.msra.mxu0 0.0
    %1995 = vmatpush.msra.mxu0 0.0
    %1996 = vmatpush.msra.mxu0 0.0
    %1997 = vmatpush.msra.mxu0 0.0
    %1998 = vmatpush.msra.mxu0 0.0
    %1999 = vmatpush.msra.mxu0 0.0
    %2000 = vmatpush.msra.mxu0 0.0
    %2001 = vmatpush.msra.mxu0 %v1983
    %2002 = vmatpush.msra.mxu0 %v1982
    %2003 = vmatpush.msra.mxu0 %v1981
    %2004 = vmatpush.msra.mxu0 %v1980
    %2005 = vmatmul.f32.gmra.mxu0 %v1987
    %v2006 = vpop.f32.mrf.mxu0
    %v2007 = vadd.f32 %v1985, %v2006
    %2008 = vdwg.mxu0
    %v2009 = vld [vmem:[#allocation2 + $0x570] sm:$0x1]
    %v2010 = vld [vmem:[#allocation2 + $0x578] sm:$0x1]
    %v2011 = vsel %vm306, %v2007, 0.0
    %v2012 = vrot.slane %v2011, 4
    %v2013 = vadd.f32 %v2011, %v2012
    %v2014 = vrot.slane %v2013, 2
    %v2015 = vadd.f32 %v2013, %v2014
    %v2016 = vrot.slane %v2015, 1
    %v2017 = vadd.f32 %v2015, %v2016
    %v2018 = vmul.f32 %v2017, %v164
    %v2019 = vsub.f32 %v2007, %v2018
    %v2020 = vmul.f32 %v2019, %v2019
    %v2021 = vsel %vm306, %v2020, 0.0
    %v2022 = vrot.slane %v2021, 4
    %v2023 = vadd.f32 %v2021, %v2022
    %v2024 = vrot.slane %v2023, 2
    %v2025 = vadd.f32 %v2023, %v2024
    %v2026 = vrot.slane %v2025, 1
    %v2027 = vadd.f32 %v2025, %v2026
    %v2028 = vmul.f32 %v2027, %v164
    %v2029 = vadd.f32 %v2028, 1e-05
    %v2030 = vrsqrt.pop %v2029
    %v2031 = vmul.f32 %v2030, %v2029
    %v2032 = vmul.f32 %v2031, %v2030
    %v2033 = vmul.f32 0.5, %v2032
    %v2034 = vsub.f32 1.5, %v2033
    %v2035 = vmul.f32 %v2030, %v2034
    %vm2036 = vweird.f32 %v2029
    %vm2037 = vweird.f32 %v2030
    %vm2038 = vmor %vm2036, %vm2037
    %v2039 = vsel %vm2038, %v2030, %v2035
    %v2040 = vmul.f32 %v2019, %v2039
    %v2041 = vperm.slane %v2009, 0
    %v2042 = vmul.f32 %v2040, %v2041
    %v2043 = vperm.slane %v2010, 0
    %v2044 = vadd.f32 %v2042, %v2043
    %v2045 = vmax.f32 %v2044, 0.0
    %v2046 = vld [vmem:[#allocation2 + $0x580] sm:$0xff]
    %v2047 = vld [vmem:[#allocation2 + $0x588] sm:$0xff]
    %v2048 = vld [vmem:[#allocation2 + $0x590] sm:$0xff]
    %v2049 = vld [vmem:[#allocation2 + $0x598] sm:$0xff]
    %v2050 = vld [vmem:[#allocation2 + $0x5a0] sm:$0xff]
    %v2051 = vld [vmem:[#allocation2 + $0x5a8] sm:$0xff]
    %v2052 = vld [vmem:[#allocation2 + $0x5b0] sm:$0xff]
    %v2053 = vld [vmem:[#allocation2 + $0x5b8] sm:$0xff]
    %v2054 = vld [vmem:[#allocation2 + $0x5c0] sm:$0x1]
    %v2055 = vperm.slane %v2054, 0
    %v2057 = vsel %vm306, %v2045, 0
    %2059 = vmatpush.msra.mxu0 0.0
    %2060 = vmatpush.msra.mxu0 0.0
    %2061 = vmatpush.msra.mxu0 0.0
    %2062 = vmatpush.msra.mxu0 0.0
    %2063 = vmatpush.msra.mxu0 0.0
    %2064 = vmatpush.msra.mxu0 0.0
    %2065 = vmatpush.msra.mxu0 0.0
    %2066 = vmatpush.msra.mxu0 0.0
    %2067 = vmatpush.msra.mxu0 %v2053
    %2068 = vmatpush.msra.mxu0 %v2052
    %2069 = vmatpush.msra.mxu0 %v2051
    %2070 = vmatpush.msra.mxu0 %v2050
    %2071 = vmatpush.msra.mxu0 %v2049
    %2072 = vmatpush.msra.mxu0 %v2048
    %2073 = vmatpush.msra.mxu0 %v2047
    %2074 = vmatpush.msra.mxu0 %v2046
    %2075 = vmatmul.f32.gmra.mxu0 %v2057
    %v2076 = vpop.f32.mrf.mxu0
    %v2077 = vadd.f32 %v2055, %v2076
    %2078 = vdwg.mxu0
    %v2079 = vadd.f32 %v1979, %v2077
    %v2080 = vld [vmem:[#allocation2 + $0x5c8] sm:$0x1]
    %v2081 = vld [vmem:[#allocation2 + $0x5d0] sm:$0x1]
    %v2082 = vsel %vm150, %v2079, 0.0
    %v2083 = vrot.slane %v2082, 4
    %v2084 = vadd.f32 %v2082, %v2083
    %v2085 = vrot.slane %v2084, 2
    %v2086 = vadd.f32 %v2084, %v2085
    %v2087 = vrot.slane %v2086, 1
    %v2088 = vadd.f32 %v2086, %v2087
    %v2089 = vmul.f32 %v2088, %v164
    %v2090 = vsub.f32 %v2079, %v2089
    %v2091 = vmul.f32 %v2090, %v2090
    %v2092 = vsel %vm150, %v2091, 0.0
    %v2093 = vrot.slane %v2092, 4
    %v2094 = vadd.f32 %v2092, %v2093
    %v2095 = vrot.slane %v2094, 2
    %v2096 = vadd.f32 %v2094, %v2095
    %v2097 = vrot.slane %v2096, 1
    %v2098 = vadd.f32 %v2096, %v2097
    %v2099 = vmul.f32 %v2098, %v164
    %v2100 = vadd.f32 %v2099, 1e-05
    %v2101 = vrsqrt.pop %v2100
    %v2102 = vmul.f32 %v2101, %v2100
    %v2103 = vmul.f32 %v2102, %v2101
    %v2104 = vmul.f32 0.5, %v2103
    %v2105 = vsub.f32 1.5, %v2104
    %v2106 = vmul.f32 %v2101, %v2105
    %vm2107 = vweird.f32 %v2100
    %vm2108 = vweird.f32 %v2101
    %vm2109 = vmor %vm2107, %vm2108
    %v2110 = vsel %vm2109, %v2101, %v2106
    %v2111 = vmul.f32 %v2090, %v2110
    %v2112 = vperm.slane %v2080, 0
    %v2113 = vmul.f32 %v2111, %v2112
    %v2114 = vperm.slane %v2081, 0
    %v2115 = vadd.f32 %v2113, %v2114
    %v2116 = vmax.f32 %v2115, 0.0
    %2117 = vrot.lane.b32.xlu0 %v91, 80
    %v2118 = vpop.permute.xlu0 %2117
    %v2120 = vadd.f32 %v2116, %v2118
    %v2121 = vld [vmem:[#allocation2 + $0x5d8] sm:$0x1]
    %v2122 = vld [vmem:[#allocation2 + $0x5e0] sm:$0x1]
    %v2123 = vsel %vm150, %v2120, 0.0
    %2124 = vadd.xlane.f32.xlu0 %v2123
    %v2125 = vpop.xlane.xlu0 %2124
    %v2126 = vrcp.pop 32.0
    %v2127 = vmul.f32 32.0, %v2126
    %v2128 = vsub.f32 1.0, %v2127
    %v2129 = vmul.f32 %v2126, %v2128
    %v2130 = vadd.f32 %v2126, %v2129
    %vm2131 = vweird.f32 %v2126
    %v2132 = vsel %vm2131, %v2126, %v2130
    %v2133 = vmul.f32 %v2125, %v2132
    %v2134 = vsub.f32 %v2120, %v2133
    %v2135 = vmul.f32 %v2134, %v2134
    %v2136 = vsel %vm150, %v2135, 0.0
    %2137 = vadd.xlane.f32.xlu0 %v2136
    %v2138 = vpop.xlane.xlu0 %2137
    %v2139 = vmul.f32 %v2138, %v2132
    %v2140 = vadd.f32 %v2139, 1e-05
    %v2141 = vrsqrt.pop %v2140
    %v2142 = vmul.f32 %v2141, %v2140
    %v2143 = vmul.f32 %v2142, %v2141
    %v2144 = vmul.f32 0.5, %v2143
    %v2145 = vsub.f32 1.5, %v2144
    %v2146 = vmul.f32 %v2141, %v2145
    %vm2147 = vweird.f32 %v2140
    %vm2148 = vweird.f32 %v2141
    %vm2149 = vmor %vm2147, %vm2148
    %v2150 = vsel %vm2149, %v2141, %v2146
    %v2151 = vmul.f32 %v2134, %v2150
    %v2152 = vperm.slane %v2121, 0
    %v2153 = vmul.f32 %v2151, %v2152
    %v2154 = vperm.slane %v2122, 0
    %v2155 = vadd.f32 %v2153, %v2154
    %v2156 = vld [vmem:[#allocation2 + $0x5e8] sm:$0xff]
    %v2157 = vld [vmem:[#allocation2 + $0x5f0] sm:$0xff]
    %v2158 = vld [vmem:[#allocation2 + $0x5f8] sm:$0xff]
    %v2159 = vld [vmem:[#allocation2 + $0x600] sm:$0xff]
    %v2160 = vld [vmem:[#allocation2 + $0x608] sm:$0x1]
    %v2161 = vperm.slane %v2160, 0
    %v2163 = vsel %vm150, %v2155, 0
    %2165 = vmatpush.msra.mxu0 0.0
    %2166 = vmatpush.msra.mxu0 0.0
    %2167 = vmatpush.msra.mxu0 0.0
    %2168 = vmatpush.msra.mxu0 0.0
    %2169 = vmatpush.msra.mxu0 0.0
    %2170 = vmatpush.msra.mxu0 0.0
    %2171 = vmatpush.msra.mxu0 0.0
    %2172 = vmatpush.msra.mxu0 0.0
    %2173 = vmatpush.msra.mxu0 0.0
    %2174 = vmatpush.msra.mxu0 0.0
    %2175 = vmatpush.msra.mxu0 0.0
    %2176 = vmatpush.msra.mxu0 0.0
    %2177 = vmatpush.msra.mxu0 %v2159
    %2178 = vmatpush.msra.mxu0 %v2158
    %2179 = vmatpush.msra.mxu0 %v2157
    %2180 = vmatpush.msra.mxu0 %v2156
    %2181 = vmatmul.f32.gmra.mxu0 %v2163
    %v2182 = vpop.f32.mrf.mxu0
    %v2183 = vadd.f32 %v2161, %v2182
    %2184 = vdwg.mxu0
    %v2185 = vmax.f32 %v2183, 0.0
    %v2186 = vld [vmem:[#allocation2 + $0x610] sm:$0xff]
    %v2187 = vld [vmem:[#allocation2 + $0x618] sm:$0xff]
    %v2188 = vld [vmem:[#allocation2 + $0x620] sm:$0xff]
    %v2189 = vld [vmem:[#allocation2 + $0x628] sm:$0xff]
    %v2190 = vld [vmem:[#allocation2 + $0x630] sm:$0xff]
    %v2191 = vld [vmem:[#allocation2 + $0x638] sm:$0xff]
    %v2192 = vld [vmem:[#allocation2 + $0x640] sm:$0xff]
    %v2193 = vld [vmem:[#allocation2 + $0x648] sm:$0xff]
    %v2194 = vld [vmem:[#allocation2 + $0x650] sm:$0xff]
    %v2195 = vld [vmem:[#allocation2 + $0x658] sm:$0xff]
    %v2196 = vld [vmem:[#allocation2 + $0x660] sm:$0xff]
    %v2197 = vld [vmem:[#allocation2 + $0x668] sm:$0xff]
    %v2198 = vld [vmem:[#allocation2 + $0x670] sm:$0xff]
    %v2199 = vld [vmem:[#allocation2 + $0x678] sm:$0xff]
    %v2200 = vld [vmem:[#allocation2 + $0x680] sm:$0xff]
    %v2201 = vld [vmem:[#allocation2 + $0x688] sm:$0xff]
    %v2202 = vld [vmem:[#allocation2 + $0x690] sm:$0x1]
    %v2203 = vperm.slane %v2202, 0
    %2204 = vmatpush.msra.mxu0 %v2201
    %2205 = vmatpush.msra.mxu0 %v2200
    %2206 = vmatpush.msra.mxu0 %v2199
    %2207 = vmatpush.msra.mxu0 %v2198
    %2208 = vmatpush.msra.mxu0 %v2197
    %2209 = vmatpush.msra.mxu0 %v2196
    %2210 = vmatpush.msra.mxu0 %v2195
    %2211 = vmatpush.msra.mxu0 %v2194
    %2212 = vmatpush.msra.mxu0 %v2193
    %2213 = vmatpush.msra.mxu0 %v2192
    %2214 = vmatpush.msra.mxu0 %v2191
    %2215 = vmatpush.msra.mxu0 %v2190
    %2216 = vmatpush.msra.mxu0 %v2189
    %2217 = vmatpush.msra.mxu0 %v2188
    %2218 = vmatpush.msra.mxu0 %v2187
    %2219 = vmatpush.msra.mxu0 %v2186
    %2220 = vmatmul.f32.gmra.mxu0 %v2185
    %v2221 = vpop.f32.mrf.mxu0
    %v2222 = vadd.f32 %v2203, %v2221
    %2223 = vdwg.mxu0
    %v2224 = vadd.f32 %v2155, %v2222
    %v2225 = vld [vmem:[#allocation2 + $0x698] sm:$0x1]
    %v2226 = vld [vmem:[#allocation2 + $0x6a0] sm:$0x1]
    %v2227 = vsel %vm150, %v2224, 0.0
    %2228 = vadd.xlane.f32.xlu0 %v2227
    %v2229 = vpop.xlane.xlu0 %2228
    %v2230 = vmul.f32 %v2229, %v2132
    %v2231 = vsub.f32 %v2224, %v2230
    %v2232 = vmul.f32 %v2231, %v2231
    %v2233 = vsel %vm150, %v2232, 0.0
    %2234 = vadd.xlane.f32.xlu0 %v2233
    %v2235 = vpop.xlane.xlu0 %2234
    %v2236 = vmul.f32 %v2235, %v2132
    %v2237 = vadd.f32 %v2236, 1e-05
    %v2238 = vrsqrt.pop %v2237
    %v2239 = vmul.f32 %v2238, %v2237
    %v2240 = vmul.f32 %v2239, %v2238
    %v2241 = vmul.f32 0.5, %v2240
    %v2242 = vsub.f32 1.5, %v2241
    %v2243 = vmul.f32 %v2238, %v2242
    %vm2244 = vweird.f32 %v2237
    %vm2245 = vweird.f32 %v2238
    %vm2246 = vmor %vm2244, %vm2245
    %v2247 = vsel %vm2246, %v2238, %v2243
    %v2248 = vmul.f32 %v2231, %v2247
    %v2249 = vperm.slane %v2225, 0
    %v2250 = vmul.f32 %v2248, %v2249
    %v2251 = vperm.slane %v2226, 0
    %v2252 = vadd.f32 %v2250, %v2251
    %v2253 = vld [vmem:[#allocation2 + $0x6a8] sm:$0xff]
    %v2254 = vld [vmem:[#allocation2 + $0x6b0] sm:$0xff]
    %v2255 = vld [vmem:[#allocation2 + $0x6b8] sm:$0xff]
    %v2256 = vld [vmem:[#allocation2 + $0x6c0] sm:$0xff]
    %v2257 = vld [vmem:[#allocation2 + $0x6c8] sm:$0x1]
    %v2258 = vperm.slane %v2257, 0
    %v2260 = vsel %vm150, %v2252, 0
    %2262 = vmatpush.msra.mxu0 0.0
    %2263 = vmatpush.msra.mxu0 0.0
    %2264 = vmatpush.msra.mxu0 0.0
    %2265 = vmatpush.msra.mxu0 0.0
    %2266 = vmatpush.msra.mxu0 0.0
    %2267 = vmatpush.msra.mxu0 0.0
    %2268 = vmatpush.msra.mxu0 0.0
    %2269 = vmatpush.msra.mxu0 0.0
    %2270 = vmatpush.msra.mxu0 0.0
    %2271 = vmatpush.msra.mxu0 0.0
    %2272 = vmatpush.msra.mxu0 0.0
    %2273 = vmatpush.msra.mxu0 0.0
    %2274 = vmatpush.msra.mxu0 %v2256
    %2275 = vmatpush.msra.mxu0 %v2255
    %2276 = vmatpush.msra.mxu0 %v2254
    %2277 = vmatpush.msra.mxu0 %v2253
    %2278 = vmatmul.f32.gmra.mxu0 %v2260
    %v2279 = vpop.f32.mrf.mxu0
    %v2280 = vadd.f32 %v2258, %v2279
    %2281 = vdwg.mxu0
    %v2282 = vld [vmem:[#allocation2 + $0x6d0] sm:$0x1]
    %v2283 = vld [vmem:[#allocation2 + $0x6d8] sm:$0x1]
    %v2284 = vsel %vm306, %v2280, 0.0
    %v2285 = vrot.slane %v2284, 4
    %v2286 = vadd.f32 %v2284, %v2285
    %v2287 = vrot.slane %v2286, 2
    %v2288 = vadd.f32 %v2286, %v2287
    %v2289 = vrot.slane %v2288, 1
    %v2290 = vadd.f32 %v2288, %v2289
    %v2291 = vmul.f32 %v2290, %v164
    %v2292 = vsub.f32 %v2280, %v2291
    %v2293 = vmul.f32 %v2292, %v2292
    %v2294 = vsel %vm306, %v2293, 0.0
    %v2295 = vrot.slane %v2294, 4
    %v2296 = vadd.f32 %v2294, %v2295
    %v2297 = vrot.slane %v2296, 2
    %v2298 = vadd.f32 %v2296, %v2297
    %v2299 = vrot.slane %v2298, 1
    %v2300 = vadd.f32 %v2298, %v2299
    %v2301 = vmul.f32 %v2300, %v164
    %v2302 = vadd.f32 %v2301, 1e-05
    %v2303 = vrsqrt.pop %v2302
    %v2304 = vmul.f32 %v2303, %v2302
    %v2305 = vmul.f32 %v2304, %v2303
    %v2306 = vmul.f32 0.5, %v2305
    %v2307 = vsub.f32 1.5, %v2306
    %v2308 = vmul.f32 %v2303, %v2307
    %vm2309 = vweird.f32 %v2302
    %vm2310 = vweird.f32 %v2303
    %vm2311 = vmor %vm2309, %vm2310
    %v2312 = vsel %vm2311, %v2303, %v2308
    %v2313 = vmul.f32 %v2292, %v2312
    %v2314 = vperm.slane %v2282, 0
    %v2315 = vmul.f32 %v2313, %v2314
    %v2316 = vperm.slane %v2283, 0
    %v2317 = vadd.f32 %v2315, %v2316
    %v2318 = vmax.f32 %v2317, 0.0
    %v2319 = vld [vmem:[#allocation2 + $0x6e0] sm:$0xff]
    %v2320 = vld [vmem:[#allocation2 + $0x6e8] sm:$0xff]
    %v2321 = vld [vmem:[#allocation2 + $0x6f0] sm:$0xff]
    %v2322 = vld [vmem:[#allocation2 + $0x6f8] sm:$0xff]
    %v2323 = vld [vmem:[#allocation2 + $0x700] sm:$0xff]
    %v2324 = vld [vmem:[#allocation2 + $0x708] sm:$0xff]
    %v2325 = vld [vmem:[#allocation2 + $0x710] sm:$0xff]
    %v2326 = vld [vmem:[#allocation2 + $0x718] sm:$0xff]
    %v2327 = vld [vmem:[#allocation2 + $0x720] sm:$0x1]
    %v2328 = vperm.slane %v2327, 0
    %v2330 = vsel %vm306, %v2318, 0
    %2332 = vmatpush.msra.mxu0 0.0
    %2333 = vmatpush.msra.mxu0 0.0
    %2334 = vmatpush.msra.mxu0 0.0
    %2335 = vmatpush.msra.mxu0 0.0
    %2336 = vmatpush.msra.mxu0 0.0
    %2337 = vmatpush.msra.mxu0 0.0
    %2338 = vmatpush.msra.mxu0 0.0
    %2339 = vmatpush.msra.mxu0 0.0
    %2340 = vmatpush.msra.mxu0 %v2326
    %2341 = vmatpush.msra.mxu0 %v2325
    %2342 = vmatpush.msra.mxu0 %v2324
    %2343 = vmatpush.msra.mxu0 %v2323
    %2344 = vmatpush.msra.mxu0 %v2322
    %2345 = vmatpush.msra.mxu0 %v2321
    %2346 = vmatpush.msra.mxu0 %v2320
    %2347 = vmatpush.msra.mxu0 %v2319
    %2348 = vmatmul.f32.gmra.mxu0 %v2330
    %v2349 = vpop.f32.mrf.mxu0
    %v2350 = vadd.f32 %v2328, %v2349
    %2351 = vdwg.mxu0
    %v2352 = vadd.f32 %v2252, %v2350
    %v2353 = vld [vmem:[#allocation2 + $0x728] sm:$0x1]
    %v2354 = vld [vmem:[#allocation2 + $0x730] sm:$0x1]
    %v2355 = vsel %vm150, %v2352, 0.0
    %v2356 = vrot.slane %v2355, 4
    %v2357 = vadd.f32 %v2355, %v2356
    %v2358 = vrot.slane %v2357, 2
    %v2359 = vadd.f32 %v2357, %v2358
    %v2360 = vrot.slane %v2359, 1
    %v2361 = vadd.f32 %v2359, %v2360
    %v2362 = vmul.f32 %v2361, %v164
    %v2363 = vsub.f32 %v2352, %v2362
    %v2364 = vmul.f32 %v2363, %v2363
    %v2365 = vsel %vm150, %v2364, 0.0
    %v2366 = vrot.slane %v2365, 4
    %v2367 = vadd.f32 %v2365, %v2366
    %v2368 = vrot.slane %v2367, 2
    %v2369 = vadd.f32 %v2367, %v2368
    %v2370 = vrot.slane %v2369, 1
    %v2371 = vadd.f32 %v2369, %v2370
    %v2372 = vmul.f32 %v2371, %v164
    %v2373 = vadd.f32 %v2372, 1e-05
    %v2374 = vrsqrt.pop %v2373
    %v2375 = vmul.f32 %v2374, %v2373
    %v2376 = vmul.f32 %v2375, %v2374
    %v2377 = vmul.f32 0.5, %v2376
    %v2378 = vsub.f32 1.5, %v2377
    %v2379 = vmul.f32 %v2374, %v2378
    %vm2380 = vweird.f32 %v2373
    %vm2381 = vweird.f32 %v2374
    %vm2382 = vmor %vm2380, %vm2381
    %v2383 = vsel %vm2382, %v2374, %v2379
    %v2384 = vmul.f32 %v2363, %v2383
    %v2385 = vperm.slane %v2353, 0
    %v2386 = vmul.f32 %v2384, %v2385
    %v2387 = vperm.slane %v2354, 0
    %v2388 = vadd.f32 %v2386, %v2387
    %v2389 = vmax.f32 %v2388, 0.0
    %v2390 = vadd.s32 %v1436, 24
    %vm2391 = vcmp.eq.s32.totalorder %v1438, %v2390
    %v2392 = vsel %vm2391, 1, 0
    %v2393 = vcvt.s32.f32 %v2392
    %v2394 = vadd.s32 %v1436, 32
    %v2395 = vadd.s32 %v1442, 32
    %v2396 = vadd.s32 %v1901, 32
    %v2397 = vadd.s32 %v2390, 32
    %vm2398 = vcmp.eq.s32.totalorder %v1438, %v2394
    %vm2399 = vcmp.eq.s32.totalorder %v1438, %v2395
    %vm2400 = vcmp.eq.s32.totalorder %v1438, %v2396
    %vm2401 = vcmp.eq.s32.totalorder %v1438, %v2397
    %v2402 = vsel %vm2398, 1, 0
    %v2403 = vsel %vm2399, 1, 0
    %v2404 = vsel %vm2400, 1, 0
    %v2405 = vsel %vm2401, 1, 0
    %v2406 = vcvt.s32.f32 %v2402
    %v2407 = vcvt.s32.f32 %v2403
    %v2408 = vcvt.s32.f32 %v2404
    %v2409 = vcvt.s32.f32 %v2405
    %v2411 = vsel %vm150, %v192, 0
    %2413 = vmatpush.msra.mxu0 0.0
    %2414 = vmatpush.msra.mxu0 0.0
    %2415 = vmatpush.msra.mxu0 0.0
    %2416 = vmatpush.msra.mxu0 0.0
    %2417 = vmatpush.msra.mxu0 0.0
    %2418 = vmatpush.msra.mxu0 0.0
    %2419 = vmatpush.msra.mxu0 0.0
    %2420 = vmatpush.msra.mxu0 0.0
    %2421 = vmatpush.msra.mxu0 0.0
    %2422 = vmatpush.msra.mxu0 0.0
    %2423 = vmatpush.msra.mxu0 0.0
    %2424 = vmatpush.msra.mxu0 0.0
    %2425 = vmatpush.msra.mxu0 %v2409
    %2426 = vmatpush.msra.mxu0 %v2408
    %2427 = vmatpush.msra.mxu0 %v2407
    %2428 = vmatpush.msra.mxu0 %v2406
    %2429 = vmatmul.f32.gmra.mxu0 %v2411
    %v2430 = vpop.f32.mrf.mxu0
    %v2431 = vadd.f32 0.0, %v2430
    %2432 = vdwg.mxu0
    %v2434 = vsel %vm150, %v2389, 0
    %2436 = vmatpush.msra.mxu0 0.0
    %2437 = vmatpush.msra.mxu0 0.0
    %2438 = vmatpush.msra.mxu0 0.0
    %2439 = vmatpush.msra.mxu0 0.0
    %2440 = vmatpush.msra.mxu0 0.0
    %2441 = vmatpush.msra.mxu0 0.0
    %2442 = vmatpush.msra.mxu0 0.0
    %2443 = vmatpush.msra.mxu0 0.0
    %2444 = vmatpush.msra.mxu0 0.0
    %2445 = vmatpush.msra.mxu0 0.0
    %2446 = vmatpush.msra.mxu0 0.0
    %2447 = vmatpush.msra.mxu0 0.0
    %2448 = vmatpush.msra.mxu0 %v2393
    %2449 = vmatpush.msra.mxu0 %v1907
    %2450 = vmatpush.msra.mxu0 %v1445
    %2451 = vmatpush.msra.mxu0 %v1441
    %2452 = vmatmul.f32.gmra.mxu0 %v2434
    %v2453 = vpop.f32.mrf.mxu0
    %v2454 = vadd.f32 %v2431, %v2453
    %2455 = vdwg.mxu0
    %v2456 = vld [vmem:[#allocation2 + $0x738] sm:$0xff]
    %2457 = vmatpush.msra.mxu0 0.0
    %2458 = vmatpush.msra.mxu0 0.0
    %2459 = vmatpush.msra.mxu0 0.0
    %2460 = vmatpush.msra.mxu0 0.0
    %2461 = vmatpush.msra.mxu0 0.0
    %2462 = vmatpush.msra.mxu0 0.0
    %2463 = vmatpush.msra.mxu0 0.0
    %2464 = vmatpush.msra.mxu0 0.0
    %2465 = vmatpush.msra.mxu0 0.0
    %2466 = vmatpush.msra.mxu0 0.0
    %2467 = vmatpush.msra.mxu0 0.0
    %2468 = vmatpush.msra.mxu0 0.0
    %2469 = vmatpush.msra.mxu0 0.0
    %2470 = vmatpush.msra.mxu0 0.0
    %2471 = vmatpush.msra.mxu0 0.0
    %2472 = vmatpush.msra.mxu0 %v2456
    %2473 = vmatmul.f32.gmra.mxu0 %v95
    %v2474 = vpop.f32.mrf.mxu0
    %v2475 = vadd.f32 0.0, %v2474
    %2476 = vdwg.mxu0
    %v2477 = vadd.f32 %v2454, %v2475
    %v2478 = vld [vmem:[#allocation2 + $0x740] sm:$0x1]
    %v2479 = vperm.slane %v2478, 0
    %v2480 = vadd.f32 %v2477, %v2479
    %v2481 = vld [vmem:[#allocation2 + $0x748] sm:$0xff]
    %v2482 = vld [vmem:[#allocation2 + $0x750] sm:$0xff]
    %v2483 = vld [vmem:[#allocation2 + $0x758] sm:$0xff]
    %v2484 = vld [vmem:[#allocation2 + $0x760] sm:$0xff]
    %v2485 = vld [vmem:[#allocation2 + $0x768] sm:$0xff]
    %v2486 = vld [vmem:[#allocation2 + $0x770] sm:$0xff]
    %v2487 = vld [vmem:[#allocation2 + $0x778] sm:$0xff]
    %v2488 = vld [vmem:[#allocation2 + $0x780] sm:$0xff]
    %v2489 = vld [vmem:[#allocation2 + $0x788] sm:$0x1]
    %v2490 = vperm.slane %v2489, 0
    %v2492 = vsel %vm306, %v2480, 0
    %2494 = vmatpush.msra.mxu0 0.0
    %2495 = vmatpush.msra.mxu0 0.0
    %2496 = vmatpush.msra.mxu0 0.0
    %2497 = vmatpush.msra.mxu0 0.0
    %2498 = vmatpush.msra.mxu0 0.0
    %2499 = vmatpush.msra.mxu0 0.0
    %2500 = vmatpush.msra.mxu0 0.0
    %2501 = vmatpush.msra.mxu0 0.0
    %2502 = vmatpush.msra.mxu0 %v2488
    %2503 = vmatpush.msra.mxu0 %v2487
    %2504 = vmatpush.msra.mxu0 %v2486
    %2505 = vmatpush.msra.mxu0 %v2485
    %2506 = vmatpush.msra.mxu0 %v2484
    %2507 = vmatpush.msra.mxu0 %v2483
    %2508 = vmatpush.msra.mxu0 %v2482
    %2509 = vmatpush.msra.mxu0 %v2481
    %2510 = vmatmul.f32.gmra.mxu0 %v2492
    %v2511 = vpop.f32.mrf.mxu0
    %v2512 = vadd.f32 %v2490, %v2511
    %2513 = vdwg.mxu0
    %2514 = vst.msk [vmem:[#allocation5] sm:$0xff] %vm69, %v2512
    // Predicated region
    $region22: #{forward.1} parent=1 // pred_check
      _
    $region23: #{forward.1} parent=1 // pred_check_branch
      %2516 = sbr.rel (0) target = $region25
    $region24: #{forward.1} parent=1 // pred_region
      %2518 = vsyncadd [#allocation4], 0
      %s2520 = sshll.u32 [#allocation5], 4
      %s2521 = int_to_ptr.vmem [resolvable:$true] %s2520
      %s2522 = sshll.u32 %s4, 4
      %s2523 = int_to_ptr.hbm [resolvable:$true] %s2522
      %2525 = dma.vmem_to_hbm [thread:$0]  %s2521, 128, %s2523, [#allocation4]
    $region25: #{forward.1} parent=1 // pred_fallthru
      _
    // Predicated region
    $region26: #{forward.1} parent=1 // pred_check
      _
    $region27: #{forward.1} parent=1 // pred_check_branch
      %2527 = sbr.rel (0) target = $region29
    $region28: #{forward.1} parent=1 // pred_region
      %2529 = dma.done [#allocation4], 128
    $region29: #{forward.1} parent=1 // pred_fallthru
      _
    %2530 = vsyncpa [#allocation3], 1
    %2531 = vsyncpa [#allocation4], 1

</llo_original>
